<compile_context>
chip_gen: v6e
topology: v6e:2x2x1
jax: 0.10.0
libtpu: 0.0.40
codegen_flags: <defaults>
</compile_context>

<pallas_src>
import jax
import jax.numpy as jnp
from jax import lax
from jax.experimental import pallas as pl
from jax.experimental.pallas import tpu as pltpu

# ---- small config (real model: D_M=1024, HIDDEN=256, OUT_CLASS=args.out_class) ----
BATCH = 8
SEQ = 8
VOCAB = 50
D_M = 128          # stands in for RoBERTa hidden size (1024)
HIDDEN = 128       # args.hidden_layer (256 in the real model); 128-lane aligned
NUM_LAYERS = 2     # args.dia_layers
OUT_CLASS = 4      # args.out_class
D2 = 2 * HIDDEN    # bidirectional GRU output feature size
OUT_PAD = 128      # classifier output padded to one full lane register
ATT_CHUNK = 4      # S-chunk for the attention / pool kernel


def _vmem_spec():
    return pl.BlockSpec(memory_space=pltpu.MemorySpace.VMEM)


# ---------- Pallas kernel 1: fused bidirectional GRU layer (both directions) ----------
def gru_bidir_kernel(x_ref, wih_ref, whh_ref, bih_ref, bhh_ref, out_ref, gx_ref):
    S, B, D_in = x_ref.shape
    H = whh_ref.shape[0] // 2
    G = 6 * H

    # (1) Hoisted input projection for BOTH directions: one big bf16 MXU matmul,
    #     fwd gate columns in [:, :3H], bwd gate columns in [:, 3H:]; bias added once.
    x_flat = x_ref[...].reshape(S * B, D_in)                 # bf16
    gx = jnp.dot(x_flat, wih_ref[...], preferred_element_type=jnp.float32)
    gx_ref[...] = gx.reshape(S, B, G) + bih_ref[...]

    whh = whh_ref[...]                                       # (2H, 6H) bf16 block-diag
    bhh = jnp.broadcast_to(bhh_ref[...], (B, G))             # hoisted broadcast

    def step(i, carry):
        h_f, h_b = carry                                     # each (B, H) f32
        tf = i
        tb = S - 1 - i
        # (2) One block-diagonal recurrent matmul per step (K = 2H fills the MXU
        #     contraction depth); fwd/bwd chains interleave inside the same body.
        h_cat = jnp.concatenate([h_f, h_b], axis=-1).astype(jnp.bfloat16)
        gh = jnp.dot(h_cat, whh, preferred_element_type=jnp.float32) + bhh
        gx_f = gx_ref[tf]                                    # (B, 6H) f32
        gx_b = gx_ref[tb]
        # PyTorch GRU gate order: r, z, n (all slices 128-lane aligned at H=128).
        r_f = jax.nn.sigmoid(gx_f[:, 0:H] + gh[:, 0:H])
        z_f = jax.nn.sigmoid(gx_f[:, H:2 * H] + gh[:, H:2 * H])
        n_f = jnp.tanh(gx_f[:, 2 * H:3 * H] + r_f * gh[:, 2 * H:3 * H])
        h_f = (1.0 - z_f) * n_f + z_f * h_f
        r_b = jax.nn.sigmoid(gx_b[:, 3 * H:4 * H] + gh[:, 3 * H:4 * H])
        z_b = jax.nn.sigmoid(gx_b[:, 4 * H:5 * H] + gh[:, 4 * H:5 * H])
        n_b = jnp.tanh(gx_b[:, 5 * H:6 * H] + r_b * gh[:, 5 * H:6 * H])
        h_b = (1.0 - z_b) * n_b + z_b * h_b
        # Lane-dense half-row stores: fwd half at row tf, bwd half at row tb.
        out_ref[tf, :, 0:H] = h_f.astype(jnp.bfloat16)
        out_ref[tb, :, H:2 * H] = h_b.astype(jnp.bfloat16)
        return (h_f, h_b)

    h0 = jnp.zeros((B, H), jnp.float32)
    lax.fori_loop(0, S, step, (h0, h0), unroll=min(S, 8))    # bounded unroll


def _pack_gru_layer(lp):
    """Pack per-direction PyTorch-style weights into the fused-kernel layout."""
    H = HIDDEN
    wih = jnp.concatenate([lp["wih"][0], lp["wih"][1]], axis=1)       # (D_in, 6H)
    zeros = jnp.zeros((H, 3 * H), jnp.float32)
    whh_bd = jnp.concatenate(
        [jnp.concatenate([lp["whh"][0], zeros], axis=1),
         jnp.concatenate([zeros, lp["whh"][1]], axis=1)], axis=0)     # (2H, 6H)
    bih = jnp.concatenate([lp["bih"][0], lp["bih"][1]], axis=1)       # (1, 6H)
    bhh = jnp.concatenate([lp["bhh"][0], lp["bhh"][1]], axis=1)       # (1, 6H)
    return (wih.astype(jnp.bfloat16), whh_bd.astype(jnp.bfloat16), bih, bhh)


def gru_layer(x_tm, lp):
    """x_tm: (S, B, D_in) bf16 -> (S, B, 2H) bf16 (fwd in [..., :H], bwd in [..., H:])."""
    S, B, D_in = x_tm.shape
    H = HIDDEN
    wih, whh_bd, bih, bhh = _pack_gru_layer(lp)
    flops = 2 * S * B * D_in * 6 * H + 2 * S * B * (2 * H) * (6 * H)
    bytes_accessed = (S * B * D_in * 2 + D_in * 6 * H * 2 + 2 * H * 6 * H * 2
                      + 2 * 6 * H * 4 + S * B * 2 * H * 2)
    return pl.pallas_call(
        gru_bidir_kernel,
        out_shape=jax.ShapeDtypeStruct((S, B, 2 * H), jnp.bfloat16),
        in_specs=[_vmem_spec()] * 5,
        out_specs=_vmem_spec(),
        scratch_shapes=[pltpu.VMEM((S, B, 6 * H), jnp.float32)],
        compiler_params=pltpu.CompilerParams(vmem_limit_bytes=64 * 1024 * 1024),
        cost_estimate=pl.CostEstimate(flops=flops,
                                      transcendentals=S * B * 6 * H,
                                      bytes_accessed=bytes_accessed),
    )(x_tm, wih, whh_bd, bih, bhh)


# ---- Pallas kernel 2: MatchingAttention('dot') + tanh / seq-max-pool / tanh + Linear ----
def att_pool_label_kernel(em_ref, w_ref, b_ref, y_ref, maxacc_ref):
    """One S-chunk. em_ref is time-major (Sc, B, D2) bf16.

    The PyTorch loop `for t in emotions` (batch_first GRU output) computes, for
    every time step s, a softmax over the other batch elements c of
    <E[s,b,:], E[s,c,:]> and the corresponding weighted sum over c.  The seq
    max-pool is a running max carried in VMEM scratch across the chunk axis.
    """
    s = pl.program_id(0)
    E = em_ref[...]                                           # (Sc, B, D2) bf16
    # scores[s, b, c] = <E[s,b,:], E[s,c,:]>  (batched MXU matmul, batch dim = s)
    scores = jnp.einsum("sbd,scd->sbc", E, E,
                        preferred_element_type=jnp.float32)
    m = jnp.max(scores, axis=-1, keepdims=True)
    e = jnp.exp(scores - m)
    denom = jnp.sum(e, axis=-1, keepdims=True)
    alpha = e * pl.reciprocal(denom, approx=True)             # softmax over c
    att = jnp.einsum("sbc,scd->sbd", alpha.astype(jnp.bfloat16), E,
                     preferred_element_type=jnp.float32)      # (Sc, B, D2) f32

    @pl.when(s == 0)
    def _():
        maxacc_ref[...] = jnp.full(maxacc_ref.shape, -jnp.inf, maxacc_ref.dtype)

    maxacc_ref[...] = jnp.maximum(maxacc_ref[...], jnp.max(jnp.tanh(att), axis=0))

    @pl.when(s == pl.num_programs(0) - 1)
    def _():
        pooled = jnp.tanh(maxacc_ref[...])                    # (B, D2)
        y_ref[...] = (jnp.dot(pooled.astype(jnp.bfloat16), w_ref[...],
                              preferred_element_type=jnp.float32) + b_ref[...])


# ---------------------------------- parameters / wrapper ----------------------------------
def init_params(key):
    # Weights stored pre-transposed vs. PyTorch and stacked over direction:
    #   wih -> (2, D_in, 3H), whh -> (2, H, 3H), biases -> (2, 1, 3H).
    params = {"gru": []}
    k_emb, key = jax.random.split(key)
    params["emb"] = 0.1 * jax.random.normal(k_emb, (VOCAB, D_M), jnp.float32)
    din = D_M
    for _ in range(NUM_LAYERS):
        key, k1, k2, k3, k4 = jax.random.split(key, 5)
        params["gru"].append({
            "wih": 0.1 * jax.random.normal(k1, (2, din, 3 * HIDDEN), jnp.float32),
            "whh": 0.1 * jax.random.normal(k2, (2, HIDDEN, 3 * HIDDEN), jnp.float32),
            "bih": 0.1 * jax.random.normal(k3, (2, 1, 3 * HIDDEN), jnp.float32),
            "bhh": 0.1 * jax.random.normal(k4, (2, 1, 3 * HIDDEN), jnp.float32),
        })
        din = D2
    key, k_w, k_b = jax.random.split(key, 3)
    params["w_label"] = 0.1 * jax.random.normal(k_w, (D2, OUT_CLASS), jnp.float32)
    params["b_label"] = 0.1 * jax.random.normal(k_b, (1, OUT_CLASS), jnp.float32)
    return params


def forward(params, input_ids, attention_mask):
    # TODO(synk): pretrained RoBERTa-large encoder replaced by a deterministic
    # embedding-table stand-in (no checkpoint load); attention_mask is unused,
    # matching the MatchingAttention mask=None path of the original module.
    del attention_mask
    # Embedding gather directly in time-major order; bf16 at the kernel boundary.
    x = params["emb"][input_ids.T].astype(jnp.bfloat16)       # (S, B, D_M)
    for lp in params["gru"]:
        x = gru_layer(x, lp)                                  # (S, B, 2H) bf16
    S, B, _ = x.shape
    sc = ATT_CHUNK if S % ATT_CHUNK == 0 else S
    # Pad the classifier to 128 output lanes for a lane-dense store; slice outside.
    w_pad = jnp.zeros((D2, OUT_PAD), jnp.float32).at[:, :OUT_CLASS].set(
        params["w_label"]).astype(jnp.bfloat16)
    b_pad = jnp.zeros((1, OUT_PAD), jnp.float32).at[:, :OUT_CLASS].set(
        params["b_label"])
    flops = 4 * S * B * B * D2 + 2 * B * D2 * OUT_PAD
    transcendentals = S * B * B + S * B * D2 + B * D2
    bytes_accessed = (S * B * D2 * 2 + D2 * OUT_PAD * 2 + OUT_PAD * 4
                      + B * OUT_PAD * 4)
    y_pad = pl.pallas_call(
        att_pool_label_kernel,
        out_shape=jax.ShapeDtypeStruct((B, OUT_PAD), jnp.float32),
        grid=(S // sc,),
        in_specs=[pl.BlockSpec((sc, B, D2), lambda s: (s, 0, 0)),
                  pl.BlockSpec((D2, OUT_PAD), lambda s: (0, 0)),
                  pl.BlockSpec((1, OUT_PAD), lambda s: (0, 0))],
        out_specs=pl.BlockSpec((B, OUT_PAD), lambda s: (0, 0)),
        scratch_shapes=[pltpu.VMEM((B, D2), jnp.float32)],
        compiler_params=pltpu.CompilerParams(
            dimension_semantics=("arbitrary",),
            vmem_limit_bytes=64 * 1024 * 1024),
        cost_estimate=pl.CostEstimate(flops=flops,
                                      transcendentals=transcendentals,
                                      bytes_accessed=bytes_accessed),
    )(x, w_pad, b_pad)
    return y_pad[:, :OUT_CLASS]


# ----------------------------- pure-JAX f32 reference (checking) -----------------------------
def reference_forward(params, input_ids):
    x = params["emb"][input_ids]                              # (B, S, D)
    H = HIDDEN
    for lp in params["gru"]:
        B, S, _ = x.shape

        def cell(x_t, h, wih, whh, bih, bhh):
            gx = x_t @ wih + bih
            gh = h @ whh + bhh
            r = jax.nn.sigmoid(gx[:, :H] + gh[:, :H])
            z = jax.nn.sigmoid(gx[:, H:2 * H] + gh[:, H:2 * H])
            n = jnp.tanh(gx[:, 2 * H:] + r * gh[:, 2 * H:])
            return (1.0 - z) * n + z * h

        wih_f, wih_b = lp["wih"][0], lp["wih"][1]
        whh_f, whh_b = lp["whh"][0], lp["whh"][1]
        bih_f, bih_b = lp["bih"][0], lp["bih"][1]
        bhh_f, bhh_b = lp["bhh"][0], lp["bhh"][1]
        hf = jnp.zeros((B, H), jnp.float32)
        hb = jnp.zeros((B, H), jnp.float32)
        outs_f = []
        outs_b = [None] * S
        for t in range(S):
            rt = S - 1 - t
            hf = cell(x[:, t], hf, wih_f, whh_f, bih_f, bhh_f)
            hb = cell(x[:, rt], hb, wih_b, whh_b, bih_b, bhh_b)
            outs_f.append(hf)
            outs_b[rt] = hb
        x = jnp.concatenate([jnp.stack(outs_f, axis=1),
                             jnp.stack(outs_b, axis=1)], axis=-1)
    E = x
    scores = jnp.einsum("bsd,csd->bcs", E, E)
    alpha = jax.nn.softmax(scores, axis=1)
    att = jnp.einsum("bcs,csd->bsd", alpha, E)
    pooled = jnp.tanh(jnp.max(jnp.tanh(att), axis=1))
    return pooled @ params["w_label"] + params["b_label"]


if __name__ == "__main__":
    key = jax.random.PRNGKey(0)
    k_params, k_ids = jax.random.split(key)
    params = init_params(k_params)
    input_ids = jax.random.randint(k_ids, (BATCH, SEQ), 0, VOCAB, dtype=jnp.int32)
    attention_mask = jnp.ones((BATCH, SEQ), jnp.int32)

    y = forward(params, input_ids, attention_mask)
    y = jax.block_until_ready(y)

    assert y.shape == (BATCH, OUT_CLASS)
    assert bool(jnp.all(jnp.isfinite(y)))
    y_ref = reference_forward(params, input_ids)
    assert bool(jnp.allclose(y, y_ref, atol=2e-2, rtol=2e-2))
    print("KERNEL_OK")
</pallas_src>

<mosaic_0001>
module attributes {stable_mosaic.version = 11 : i64} {
  func.func @gru_bidir_kernel(%arg0: memref<8x8x128xbf16, #tpu.memory_space<vmem>>, %arg1: memref<128x768xbf16, #tpu.memory_space<vmem>>, %arg2: memref<256x768xbf16, #tpu.memory_space<vmem>>, %arg3: memref<1x768xf32, #tpu.memory_space<vmem>>, %arg4: memref<1x768xf32, #tpu.memory_space<vmem>>, %arg5: memref<8x8x256xbf16, #tpu.memory_space<vmem>>, %arg6: memref<8x8x768xf32, #tpu.memory_space<vmem>>) attributes {dimension_semantics = [], scalar_prefetch = 0 : i64, scratch_operands = 1 : i64, tpu.core_type = #tpu.core_type<tc>} {
    %c0 = arith.constant 0 : index
    %c0_0 = arith.constant 0 : index
    %c0_1 = arith.constant 0 : index
    %0 = vector.load %arg0[%c0, %c0_0, %c0_1] : memref<8x8x128xbf16, #tpu.memory_space<vmem>>, vector<8x8x128xbf16>
    %1 = vector.shape_cast %0 : vector<8x8x128xbf16> to vector<64x128xbf16>
    %c0_2 = arith.constant 0 : index
    %c0_3 = arith.constant 0 : index
    %2 = vector.load %arg1[%c0_2, %c0_3] : memref<128x768xbf16, #tpu.memory_space<vmem>>, vector<128x768xbf16>
    %cst = arith.constant dense<0.000000e+00> : vector<64x768xf32>
    %3 = tpu.matmul %1, %2, %cst {dimension_numbers = #tpu.dot_dimension_numbers<[1], [0], [0], [1], [0, 0, 1, 1], [], []>} : vector<64x128xbf16>, vector<128x768xbf16>, vector<64x768xf32> -> vector<64x768xf32>
    %4 = vector.shape_cast %3 : vector<64x768xf32> to vector<8x8x768xf32>
    %c0_4 = arith.constant 0 : index
    %c0_5 = arith.constant 0 : index
    %5 = vector.load %arg3[%c0_4, %c0_5] : memref<1x768xf32, #tpu.memory_space<vmem>>, vector<1x768xf32>
    %6 = vector.shape_cast %5 : vector<1x768xf32> to vector<1x1x768xf32>
    %7 = vector.broadcast %6 : vector<1x1x768xf32> to vector<8x8x768xf32>
    %8 = arith.addf %4, %7 : vector<8x8x768xf32>
    %c0_6 = arith.constant 0 : index
    %c0_7 = arith.constant 0 : index
    %c0_8 = arith.constant 0 : index
    %9 = vector.load %arg6[%c0_6, %c0_7, %c0_8] : memref<8x8x768xf32, #tpu.memory_space<vmem>>, vector<8x8x768xf32>
    tpu.vector_store %arg6[%c0_6, %c0_7, %c0_8], %8 {strides = array<i32>} : memref<8x8x768xf32, #tpu.memory_space<vmem>>, vector<8x8x768xf32>,
    %c0_9 = arith.constant 0 : index
    %c0_10 = arith.constant 0 : index
    %10 = vector.load %arg2[%c0_9, %c0_10] : memref<256x768xbf16, #tpu.memory_space<vmem>>, vector<256x768xbf16>
    %c0_11 = arith.constant 0 : index
    %c0_12 = arith.constant 0 : index
    %11 = vector.load %arg4[%c0_11, %c0_12] : memref<1x768xf32, #tpu.memory_space<vmem>>, vector<1x768xf32>
    %12 = vector.shape_cast %11 : vector<1x768xf32> to vector<1x768xf32>
    %13 = vector.broadcast %12 : vector<1x768xf32> to vector<8x768xf32>
    %cst_13 = arith.constant 0.000000e+00 : f32
    %14 = vector.broadcast %cst_13 : f32 to vector<8x128xf32>
    %c0_i32 = arith.constant 0 : i32
    %c7_i32 = arith.constant 7 : i32
    %15 = arith.subi %c7_i32, %c0_i32 : i32
    %16 = tpu.concatenate %14, %14 in 1 : vector<8x128xf32>, vector<8x128xf32> -> vector<8x256xf32>
    %17 = arith.truncf %16 : vector<8x256xf32> to vector<8x256xbf16>
    %cst_14 = arith.constant dense<0.000000e+00> : vector<8x768xf32>
    %18 = tpu.matmul %17, %10, %cst_14 {dimension_numbers = #tpu.dot_dimension_numbers<[1], [0], [0], [1], [0, 0, 1, 1], [], []>} : vector<8x256xbf16>, vector<256x768xbf16>, vector<8x768xf32> -> vector<8x768xf32>
    %19 = arith.addf %18, %13 : vector<8x768xf32>
    %20 = arith.index_cast %c0_i32 : i32 to index
    %c0_15 = arith.constant 0 : index
    %c0_16 = arith.constant 0 : index
    %21 = vector.load %arg6[%20, %c0_15, %c0_16] : memref<8x8x768xf32, #tpu.memory_space<vmem>>, vector<1x8x768xf32>
    %22 = vector.shape_cast %21 : vector<1x8x768xf32> to vector<8x768xf32>
    %23 = arith.index_cast %15 : i32 to index
    %c0_17 = arith.constant 0 : index
    %c0_18 = arith.constant 0 : index
    %24 = vector.load %arg6[%23, %c0_17, %c0_18] : memref<8x8x768xf32, #tpu.memory_space<vmem>>, vector<1x8x768xf32>
    %25 = vector.shape_cast %24 : vector<1x8x768xf32> to vector<8x768xf32>
    %26 = vector.extract_strided_slice %22 {offsets = [0, 0], sizes = [8, 128], strides = [1, 1]} : vector<8x768xf32> to vector<8x128xf32>
    %27 = vector.extract_strided_slice %19 {offsets = [0, 0], sizes = [8, 128], strides = [1, 1]} : vector<8x768xf32> to vector<8x128xf32>
    %28 = arith.addf %26, %27 : vector<8x128xf32>
    %29 = arith.negf %28 : vector<8x128xf32>
    %30 = math.exp %29 : vector<8x128xf32>
    %cst_19 = arith.constant 1.000000e+00 : f32
    %31 = vector.broadcast %cst_19 : f32 to vector<8x128xf32>
    %32 = arith.addf %31, %30 : vector<8x128xf32>
    %33 = arith.divf %31, %32 : vector<8x128xf32>
    %34 = vector.extract_strided_slice %22 {offsets = [0, 128], sizes = [8, 128], strides = [1, 1]} : vector<8x768xf32> to vector<8x128xf32>
    %35 = vector.extract_strided_slice %19 {offsets = [0, 128], sizes = [8, 128], strides = [1, 1]} : vector<8x768xf32> to vector<8x128xf32>
    %36 = arith.addf %34, %35 : vector<8x128xf32>
    %37 = arith.negf %36 : vector<8x128xf32>
    %38 = math.exp %37 : vector<8x128xf32>
    %cst_20 = arith.constant 1.000000e+00 : f32
    %39 = vector.broadcast %cst_20 : f32 to vector<8x128xf32>
    %40 = arith.addf %39, %38 : vector<8x128xf32>
    %41 = arith.divf %39, %40 : vector<8x128xf32>
    %42 = vector.extract_strided_slice %22 {offsets = [0, 256], sizes = [8, 128], strides = [1, 1]} : vector<8x768xf32> to vector<8x128xf32>
    %43 = vector.extract_strided_slice %19 {offsets = [0, 256], sizes = [8, 128], strides = [1, 1]} : vector<8x768xf32> to vector<8x128xf32>
    %44 = arith.mulf %33, %43 : vector<8x128xf32>
    %45 = arith.addf %42, %44 : vector<8x128xf32>
    %46 = math.tanh %45 : vector<8x128xf32>
    %cst_21 = arith.constant 1.000000e+00 : f32
    %47 = vector.broadcast %cst_21 : f32 to vector<8x128xf32>
    %48 = arith.subf %47, %41 : vector<8x128xf32>
    %49 = arith.mulf %48, %46 : vector<8x128xf32>
    %50 = arith.mulf %41, %14 : vector<8x128xf32>
    %51 = arith.addf %49, %50 : vector<8x128xf32>
    %52 = vector.extract_strided_slice %25 {offsets = [0, 384], sizes = [8, 128], strides = [1, 1]} : vector<8x768xf32> to vector<8x128xf32>
    %53 = vector.extract_strided_slice %19 {offsets = [0, 384], sizes = [8, 128], strides = [1, 1]} : vector<8x768xf32> to vector<8x128xf32>
    %54 = arith.addf %52, %53 : vector<8x128xf32>
    %55 = arith.negf %54 : vector<8x128xf32>
    %56 = math.exp %55 : vector<8x128xf32>
    %cst_22 = arith.constant 1.000000e+00 : f32
    %57 = vector.broadcast %cst_22 : f32 to vector<8x128xf32>
    %58 = arith.addf %57, %56 : vector<8x128xf32>
    %59 = arith.divf %57, %58 : vector<8x128xf32>
    %60 = vector.extract_strided_slice %25 {offsets = [0, 512], sizes = [8, 128], strides = [1, 1]} : vector<8x768xf32> to vector<8x128xf32>
    %61 = vector.extract_strided_slice %19 {offsets = [0, 512], sizes = [8, 128], strides = [1, 1]} : vector<8x768xf32> to vector<8x128xf32>
    %62 = arith.addf %60, %61 : vector<8x128xf32>
    %63 = arith.negf %62 : vector<8x128xf32>
    %64 = math.exp %63 : vector<8x128xf32>
    %cst_23 = arith.constant 1.000000e+00 : f32
    %65 = vector.broadcast %cst_23 : f32 to vector<8x128xf32>
    %66 = arith.addf %65, %64 : vector<8x128xf32>
    %67 = arith.divf %65, %66 : vector<8x128xf32>
    %68 = vector.extract_strided_slice %25 {offsets = [0, 640], sizes = [8, 128], strides = [1, 1]} : vector<8x768xf32> to vector<8x128xf32>
    %69 = vector.extract_strided_slice %19 {offsets = [0, 640], sizes = [8, 128], strides = [1, 1]} : vector<8x768xf32> to vector<8x128xf32>
    %70 = arith.mulf %59, %69 : vector<8x128xf32>
    %71 = arith.addf %68, %70 : vector<8x128xf32>
    %72 = math.tanh %71 : vector<8x128xf32>
    %cst_24 = arith.constant 1.000000e+00 : f32
    %73 = vector.broadcast %cst_24 : f32 to vector<8x128xf32>
    %74 = arith.subf %73, %67 : vector<8x128xf32>
    %75 = arith.mulf %74, %72 : vector<8x128xf32>
    %76 = arith.mulf %67, %14 : vector<8x128xf32>
    %77 = arith.addf %75, %76 : vector<8x128xf32>
    %78 = arith.truncf %51 : vector<8x128xf32> to vector<8x128xbf16>
    %79 = arith.index_cast %c0_i32 : i32 to index
    %c0_25 = arith.constant 0 : index
    %c0_26 = arith.constant 0 : index
    %80 = vector.load %arg5[%79, %c0_25, %c0_26] : memref<8x8x256xbf16, #tpu.memory_space<vmem>>, vector<1x8x128xbf16>
    %81 = vector.shape_cast %80 : vector<1x8x128xbf16> to vector<8x128xbf16>
    %82 = vector.shape_cast %78 : vector<8x128xbf16> to vector<1x8x128xbf16>
    tpu.vector_store %arg5[%79, %c0_25, %c0_26], %82 {strides = array<i32>} : memref<8x8x256xbf16, #tpu.memory_space<vmem>>, vector<1x8x128xbf16>,
    %83 = arith.truncf %77 : vector<8x128xf32> to vector<8x128xbf16>
    %84 = arith.index_cast %15 : i32 to index
    %c0_27 = arith.constant 0 : index
    %c128 = arith.constant 128 : index
    %85 = vector.load %arg5[%84, %c0_27, %c128] : memref<8x8x256xbf16, #tpu.memory_space<vmem>>, vector<1x8x128xbf16>
    %86 = vector.shape_cast %85 : vector<1x8x128xbf16> to vector<8x128xbf16>
    %87 = vector.shape_cast %83 : vector<8x128xbf16> to vector<1x8x128xbf16>
    tpu.vector_store %arg5[%84, %c0_27, %c128], %87 {strides = array<i32>} : memref<8x8x256xbf16, #tpu.memory_space<vmem>>, vector<1x8x128xbf16>,
    %c1_i32 = arith.constant 1 : i32
    %c7_i32_28 = arith.constant 7 : i32
    %88 = arith.subi %c7_i32_28, %c1_i32 : i32
    %89 = tpu.concatenate %51, %77 in 1 : vector<8x128xf32>, vector<8x128xf32> -> vector<8x256xf32>
    %90 = arith.truncf %89 : vector<8x256xf32> to vector<8x256xbf16>
    %cst_29 = arith.constant dense<0.000000e+00> : vector<8x768xf32>
    %91 = tpu.matmul %90, %10, %cst_29 {dimension_numbers = #tpu.dot_dimension_numbers<[1], [0], [0], [1], [0, 0, 1, 1], [], []>} : vector<8x256xbf16>, vector<256x768xbf16>, vector<8x768xf32> -> vector<8x768xf32>
    %92 = arith.addf %91, %13 : vector<8x768xf32>
    %93 = arith.index_cast %c1_i32 : i32 to index
    %c0_30 = arith.constant 0 : index
    %c0_31 = arith.constant 0 : index
    %94 = vector.load %arg6[%93, %c0_30, %c0_31] : memref<8x8x768xf32, #tpu.memory_space<vmem>>, vector<1x8x768xf32>
    %95 = vector.shape_cast %94 : vector<1x8x768xf32> to vector<8x768xf32>
    %96 = arith.index_cast %88 : i32 to index
    %c0_32 = arith.constant 0 : index
    %c0_33 = arith.constant 0 : index
    %97 = vector.load %arg6[%96, %c0_32, %c0_33] : memref<8x8x768xf32, #tpu.memory_space<vmem>>, vector<1x8x768xf32>
    %98 = vector.shape_cast %97 : vector<1x8x768xf32> to vector<8x768xf32>
    %99 = vector.extract_strided_slice %95 {offsets = [0, 0], sizes = [8, 128], strides = [1, 1]} : vector<8x768xf32> to vector<8x128xf32>
    %100 = vector.extract_strided_slice %92 {offsets = [0, 0], sizes = [8, 128], strides = [1, 1]} : vector<8x768xf32> to vector<8x128xf32>
    %101 = arith.addf %99, %100 : vector<8x128xf32>
    %102 = arith.negf %101 : vector<8x128xf32>
    %103 = math.exp %102 : vector<8x128xf32>
    %cst_34 = arith.constant 1.000000e+00 : f32
    %104 = vector.broadcast %cst_34 : f32 to vector<8x128xf32>
    %105 = arith.addf %104, %103 : vector<8x128xf32>
    %106 = arith.divf %104, %105 : vector<8x128xf32>
    %107 = vector.extract_strided_slice %95 {offsets = [0, 128], sizes = [8, 128], strides = [1, 1]} : vector<8x768xf32> to vector<8x128xf32>
    %108 = vector.extract_strided_slice %92 {offsets = [0, 128], sizes = [8, 128], strides = [1, 1]} : vector<8x768xf32> to vector<8x128xf32>
    %109 = arith.addf %107, %108 : vector<8x128xf32>
    %110 = arith.negf %109 : vector<8x128xf32>
    %111 = math.exp %110 : vector<8x128xf32>
    %cst_35 = arith.constant 1.000000e+00 : f32
    %112 = vector.broadcast %cst_35 : f32 to vector<8x128xf32>
    %113 = arith.addf %112, %111 : vector<8x128xf32>
    %114 = arith.divf %112, %113 : vector<8x128xf32>
    %115 = vector.extract_strided_slice %95 {offsets = [0, 256], sizes = [8, 128], strides = [1, 1]} : vector<8x768xf32> to vector<8x128xf32>
    %116 = vector.extract_strided_slice %92 {offsets = [0, 256], sizes = [8, 128], strides = [1, 1]} : vector<8x768xf32> to vector<8x128xf32>
    %117 = arith.mulf %106, %116 : vector<8x128xf32>
    %118 = arith.addf %115, %117 : vector<8x128xf32>
    %119 = math.tanh %118 : vector<8x128xf32>
    %cst_36 = arith.constant 1.000000e+00 : f32
    %120 = vector.broadcast %cst_36 : f32 to vector<8x128xf32>
    %121 = arith.subf %120, %114 : vector<8x128xf32>
    %122 = arith.mulf %121, %119 : vector<8x128xf32>
    %123 = arith.mulf %114, %51 : vector<8x128xf32>
    %124 = arith.addf %122, %123 : vector<8x128xf32>
    %125 = vector.extract_strided_slice %98 {offsets = [0, 384], sizes = [8, 128], strides = [1, 1]} : vector<8x768xf32> to vector<8x128xf32>
    %126 = vector.extract_strided_slice %92 {offsets = [0, 384], sizes = [8, 128], strides = [1, 1]} : vector<8x768xf32> to vector<8x128xf32>
    %127 = arith.addf %125, %126 : vector<8x128xf32>
    %128 = arith.negf %127 : vector<8x128xf32>
    %129 = math.exp %128 : vector<8x128xf32>
    %cst_37 = arith.constant 1.000000e+00 : f32
    %130 = vector.broadcast %cst_37 : f32 to vector<8x128xf32>
    %131 = arith.addf %130, %129 : vector<8x128xf32>
    %132 = arith.divf %130, %131 : vector<8x128xf32>
    %133 = vector.extract_strided_slice %98 {offsets = [0, 512], sizes = [8, 128], strides = [1, 1]} : vector<8x768xf32> to vector<8x128xf32>
    %134 = vector.extract_strided_slice %92 {offsets = [0, 512], sizes = [8, 128], strides = [1, 1]} : vector<8x768xf32> to vector<8x128xf32>
    %135 = arith.addf %133, %134 : vector<8x128xf32>
    %136 = arith.negf %135 : vector<8x128xf32>
    %137 = math.exp %136 : vector<8x128xf32>
    %cst_38 = arith.constant 1.000000e+00 : f32
    %138 = vector.broadcast %cst_38 : f32 to vector<8x128xf32>
    %139 = arith.addf %138, %137 : vector<8x128xf32>
    %140 = arith.divf %138, %139 : vector<8x128xf32>
    %141 = vector.extract_strided_slice %98 {offsets = [0, 640], sizes = [8, 128], strides = [1, 1]} : vector<8x768xf32> to vector<8x128xf32>
    %142 = vector.extract_strided_slice %92 {offsets = [0, 640], sizes = [8, 128], strides = [1, 1]} : vector<8x768xf32> to vector<8x128xf32>
    %143 = arith.mulf %132, %142 : vector<8x128xf32>
    %144 = arith.addf %141, %143 : vector<8x128xf32>
    %145 = math.tanh %144 : vector<8x128xf32>
    %cst_39 = arith.constant 1.000000e+00 : f32
    %146 = vector.broadcast %cst_39 : f32 to vector<8x128xf32>
    %147 = arith.subf %146, %140 : vector<8x128xf32>
    %148 = arith.mulf %147, %145 : vector<8x128xf32>
    %149 = arith.mulf %140, %77 : vector<8x128xf32>
    %150 = arith.addf %148, %149 : vector<8x128xf32>
    %151 = arith.truncf %124 : vector<8x128xf32> to vector<8x128xbf16>
    %152 = arith.index_cast %c1_i32 : i32 to index
    %c0_40 = arith.constant 0 : index
    %c0_41 = arith.constant 0 : index
    %153 = vector.load %arg5[%152, %c0_40, %c0_41] : memref<8x8x256xbf16, #tpu.memory_space<vmem>>, vector<1x8x128xbf16>
    %154 = vector.shape_cast %153 : vector<1x8x128xbf16> to vector<8x128xbf16>
    %155 = vector.shape_cast %151 : vector<8x128xbf16> to vector<1x8x128xbf16>
    tpu.vector_store %arg5[%152, %c0_40, %c0_41], %155 {strides = array<i32>} : memref<8x8x256xbf16, #tpu.memory_space<vmem>>, vector<1x8x128xbf16>,
    %156 = arith.truncf %150 : vector<8x128xf32> to vector<8x128xbf16>
    %157 = arith.index_cast %88 : i32 to index
    %c0_42 = arith.constant 0 : index
    %c128_43 = arith.constant 128 : index
    %158 = vector.load %arg5[%157, %c0_42, %c128_43] : memref<8x8x256xbf16, #tpu.memory_space<vmem>>, vector<1x8x128xbf16>
    %159 = vector.shape_cast %158 : vector<1x8x128xbf16> to vector<8x128xbf16>
    %160 = vector.shape_cast %156 : vector<8x128xbf16> to vector<1x8x128xbf16>
    tpu.vector_store %arg5[%157, %c0_42, %c128_43], %160 {strides = array<i32>} : memref<8x8x256xbf16, #tpu.memory_space<vmem>>, vector<1x8x128xbf16>,
    %c2_i32 = arith.constant 2 : i32
    %c7_i32_44 = arith.constant 7 : i32
    %161 = arith.subi %c7_i32_44, %c2_i32 : i32
    %162 = tpu.concatenate %124, %150 in 1 : vector<8x128xf32>, vector<8x128xf32> -> vector<8x256xf32>
    %163 = arith.truncf %162 : vector<8x256xf32> to vector<8x256xbf16>
    %cst_45 = arith.constant dense<0.000000e+00> : vector<8x768xf32>
    %164 = tpu.matmul %163, %10, %cst_45 {dimension_numbers = #tpu.dot_dimension_numbers<[1], [0], [0], [1], [0, 0, 1, 1], [], []>} : vector<8x256xbf16>, vector<256x768xbf16>, vector<8x768xf32> -> vector<8x768xf32>
    %165 = arith.addf %164, %13 : vector<8x768xf32>
    %166 = arith.index_cast %c2_i32 : i32 to index
    %c0_46 = arith.constant 0 : index
    %c0_47 = arith.constant 0 : index
    %167 = vector.load %arg6[%166, %c0_46, %c0_47] : memref<8x8x768xf32, #tpu.memory_space<vmem>>, vector<1x8x768xf32>
    %168 = vector.shape_cast %167 : vector<1x8x768xf32> to vector<8x768xf32>
    %169 = arith.index_cast %161 : i32 to index
    %c0_48 = arith.constant 0 : index
    %c0_49 = arith.constant 0 : index
    %170 = vector.load %arg6[%169, %c0_48, %c0_49] : memref<8x8x768xf32, #tpu.memory_space<vmem>>, vector<1x8x768xf32>
    %171 = vector.shape_cast %170 : vector<1x8x768xf32> to vector<8x768xf32>
    %172 = vector.extract_strided_slice %168 {offsets = [0, 0], sizes = [8, 128], strides = [1, 1]} : vector<8x768xf32> to vector<8x128xf32>
    %173 = vector.extract_strided_slice %165 {offsets = [0, 0], sizes = [8, 128], strides = [1, 1]} : vector<8x768xf32> to vector<8x128xf32>
    %174 = arith.addf %172, %173 : vector<8x128xf32>
    %175 = arith.negf %174 : vector<8x128xf32>
    %176 = math.exp %175 : vector<8x128xf32>
    %cst_50 = arith.constant 1.000000e+00 : f32
    %177 = vector.broadcast %cst_50 : f32 to vector<8x128xf32>
    %178 = arith.addf %177, %176 : vector<8x128xf32>
    %179 = arith.divf %177, %178 : vector<8x128xf32>
    %180 = vector.extract_strided_slice %168 {offsets = [0, 128], sizes = [8, 128], strides = [1, 1]} : vector<8x768xf32> to vector<8x128xf32>
    %181 = vector.extract_strided_slice %165 {offsets = [0, 128], sizes = [8, 128], strides = [1, 1]} : vector<8x768xf32> to vector<8x128xf32>
    %182 = arith.addf %180, %181 : vector<8x128xf32>
    %183 = arith.negf %182 : vector<8x128xf32>
    %184 = math.exp %183 : vector<8x128xf32>
    %cst_51 = arith.constant 1.000000e+00 : f32
    %185 = vector.broadcast %cst_51 : f32 to vector<8x128xf32>
    %186 = arith.addf %185, %184 : vector<8x128xf32>
    %187 = arith.divf %185, %186 : vector<8x128xf32>
    %188 = vector.extract_strided_slice %168 {offsets = [0, 256], sizes = [8, 128], strides = [1, 1]} : vector<8x768xf32> to vector<8x128xf32>
    %189 = vector.extract_strided_slice %165 {offsets = [0, 256], sizes = [8, 128], strides = [1, 1]} : vector<8x768xf32> to vector<8x128xf32>
    %190 = arith.mulf %179, %189 : vector<8x128xf32>
    %191 = arith.addf %188, %190 : vector<8x128xf32>
    %192 = math.tanh %191 : vector<8x128xf32>
    %cst_52 = arith.constant 1.000000e+00 : f32
    %193 = vector.broadcast %cst_52 : f32 to vector<8x128xf32>
    %194 = arith.subf %193, %187 : vector<8x128xf32>
    %195 = arith.mulf %194, %192 : vector<8x128xf32>
    %196 = arith.mulf %187, %124 : vector<8x128xf32>
    %197 = arith.addf %195, %196 : vector<8x128xf32>
    %198 = vector.extract_strided_slice %171 {offsets = [0, 384], sizes = [8, 128], strides = [1, 1]} : vector<8x768xf32> to vector<8x128xf32>
    %199 = vector.extract_strided_slice %165 {offsets = [0, 384], sizes = [8, 128], strides = [1, 1]} : vector<8x768xf32> to vector<8x128xf32>
    %200 = arith.addf %198, %199 : vector<8x128xf32>
    %201 = arith.negf %200 : vector<8x128xf32>
    %202 = math.exp %201 : vector<8x128xf32>
    %cst_53 = arith.constant 1.000000e+00 : f32
    %203 = vector.broadcast %cst_53 : f32 to vector<8x128xf32>
    %204 = arith.addf %203, %202 : vector<8x128xf32>
    %205 = arith.divf %203, %204 : vector<8x128xf32>
    %206 = vector.extract_strided_slice %171 {offsets = [0, 512], sizes = [8, 128], strides = [1, 1]} : vector<8x768xf32> to vector<8x128xf32>
    %207 = vector.extract_strided_slice %165 {offsets = [0, 512], sizes = [8, 128], strides = [1, 1]} : vector<8x768xf32> to vector<8x128xf32>
    %208 = arith.addf %206, %207 : vector<8x128xf32>
    %209 = arith.negf %208 : vector<8x128xf32>
    %210 = math.exp %209 : vector<8x128xf32>
    %cst_54 = arith.constant 1.000000e+00 : f32
    %211 = vector.broadcast %cst_54 : f32 to vector<8x128xf32>
    %212 = arith.addf %211, %210 : vector<8x128xf32>
    %213 = arith.divf %211, %212 : vector<8x128xf32>
    %214 = vector.extract_strided_slice %171 {offsets = [0, 640], sizes = [8, 128], strides = [1, 1]} : vector<8x768xf32> to vector<8x128xf32>
    %215 = vector.extract_strided_slice %165 {offsets = [0, 640], sizes = [8, 128], strides = [1, 1]} : vector<8x768xf32> to vector<8x128xf32>
    %216 = arith.mulf %205, %215 : vector<8x128xf32>
    %217 = arith.addf %214, %216 : vector<8x128xf32>
    %218 = math.tanh %217 : vector<8x128xf32>
    %cst_55 = arith.constant 1.000000e+00 : f32
    %219 = vector.broadcast %cst_55 : f32 to vector<8x128xf32>
    %220 = arith.subf %219, %213 : vector<8x128xf32>
    %221 = arith.mulf %220, %218 : vector<8x128xf32>
    %222 = arith.mulf %213, %150 : vector<8x128xf32>
    %223 = arith.addf %221, %222 : vector<8x128xf32>
    %224 = arith.truncf %197 : vector<8x128xf32> to vector<8x128xbf16>
    %225 = arith.index_cast %c2_i32 : i32 to index
    %c0_56 = arith.constant 0 : index
    %c0_57 = arith.constant 0 : index
    %226 = vector.load %arg5[%225, %c0_56, %c0_57] : memref<8x8x256xbf16, #tpu.memory_space<vmem>>, vector<1x8x128xbf16>
    %227 = vector.shape_cast %226 : vector<1x8x128xbf16> to vector<8x128xbf16>
    %228 = vector.shape_cast %224 : vector<8x128xbf16> to vector<1x8x128xbf16>
    tpu.vector_store %arg5[%225, %c0_56, %c0_57], %228 {strides = array<i32>} : memref<8x8x256xbf16, #tpu.memory_space<vmem>>, vector<1x8x128xbf16>,
    %229 = arith.truncf %223 : vector<8x128xf32> to vector<8x128xbf16>
    %230 = arith.index_cast %161 : i32 to index
    %c0_58 = arith.constant 0 : index
    %c128_59 = arith.constant 128 : index
    %231 = vector.load %arg5[%230, %c0_58, %c128_59] : memref<8x8x256xbf16, #tpu.memory_space<vmem>>, vector<1x8x128xbf16>
    %232 = vector.shape_cast %231 : vector<1x8x128xbf16> to vector<8x128xbf16>
    %233 = vector.shape_cast %229 : vector<8x128xbf16> to vector<1x8x128xbf16>
    tpu.vector_store %arg5[%230, %c0_58, %c128_59], %233 {strides = array<i32>} : memref<8x8x256xbf16, #tpu.memory_space<vmem>>, vector<1x8x128xbf16>,
    %c3_i32 = arith.constant 3 : i32
    %c7_i32_60 = arith.constant 7 : i32
    %234 = arith.subi %c7_i32_60, %c3_i32 : i32
    %235 = tpu.concatenate %197, %223 in 1 : vector<8x128xf32>, vector<8x128xf32> -> vector<8x256xf32>
    %236 = arith.truncf %235 : vector<8x256xf32> to vector<8x256xbf16>
    %cst_61 = arith.constant dense<0.000000e+00> : vector<8x768xf32>
    %237 = tpu.matmul %236, %10, %cst_61 {dimension_numbers = #tpu.dot_dimension_numbers<[1], [0], [0], [1], [0, 0, 1, 1], [], []>} : vector<8x256xbf16>, vector<256x768xbf16>, vector<8x768xf32> -> vector<8x768xf32>
    %238 = arith.addf %237, %13 : vector<8x768xf32>
    %239 = arith.index_cast %c3_i32 : i32 to index
    %c0_62 = arith.constant 0 : index
    %c0_63 = arith.constant 0 : index
    %240 = vector.load %arg6[%239, %c0_62, %c0_63] : memref<8x8x768xf32, #tpu.memory_space<vmem>>, vector<1x8x768xf32>
    %241 = vector.shape_cast %240 : vector<1x8x768xf32> to vector<8x768xf32>
    %242 = arith.index_cast %234 : i32 to index
    %c0_64 = arith.constant 0 : index
    %c0_65 = arith.constant 0 : index
    %243 = vector.load %arg6[%242, %c0_64, %c0_65] : memref<8x8x768xf32, #tpu.memory_space<vmem>>, vector<1x8x768xf32>
    %244 = vector.shape_cast %243 : vector<1x8x768xf32> to vector<8x768xf32>
    %245 = vector.extract_strided_slice %241 {offsets = [0, 0], sizes = [8, 128], strides = [1, 1]} : vector<8x768xf32> to vector<8x128xf32>
    %246 = vector.extract_strided_slice %238 {offsets = [0, 0], sizes = [8, 128], strides = [1, 1]} : vector<8x768xf32> to vector<8x128xf32>
    %247 = arith.addf %245, %246 : vector<8x128xf32>
    %248 = arith.negf %247 : vector<8x128xf32>
    %249 = math.exp %248 : vector<8x128xf32>
    %cst_66 = arith.constant 1.000000e+00 : f32
    %250 = vector.broadcast %cst_66 : f32 to vector<8x128xf32>
    %251 = arith.addf %250, %249 : vector<8x128xf32>
    %252 = arith.divf %250, %251 : vector<8x128xf32>
    %253 = vector.extract_strided_slice %241 {offsets = [0, 128], sizes = [8, 128], strides = [1, 1]} : vector<8x768xf32> to vector<8x128xf32>
    %254 = vector.extract_strided_slice %238 {offsets = [0, 128], sizes = [8, 128], strides = [1, 1]} : vector<8x768xf32> to vector<8x128xf32>
    %255 = arith.addf %253, %254 : vector<8x128xf32>
    %256 = arith.negf %255 : vector<8x128xf32>
    %257 = math.exp %256 : vector<8x128xf32>
    %cst_67 = arith.constant 1.000000e+00 : f32
    %258 = vector.broadcast %cst_67 : f32 to vector<8x128xf32>
    %259 = arith.addf %258, %257 : vector<8x128xf32>
    %260 = arith.divf %258, %259 : vector<8x128xf32>
    %261 = vector.extract_strided_slice %241 {offsets = [0, 256], sizes = [8, 128], strides = [1, 1]} : vector<8x768xf32> to vector<8x128xf32>
    %262 = vector.extract_strided_slice %238 {offsets = [0, 256], sizes = [8, 128], strides = [1, 1]} : vector<8x768xf32> to vector<8x128xf32>
    %263 = arith.mulf %252, %262 : vector<8x128xf32>
    %264 = arith.addf %261, %263 : vector<8x128xf32>
    %265 = math.tanh %264 : vector<8x128xf32>
    %cst_68 = arith.constant 1.000000e+00 : f32
    %266 = vector.broadcast %cst_68 : f32 to vector<8x128xf32>
    %267 = arith.subf %266, %260 : vector<8x128xf32>
    %268 = arith.mulf %267, %265 : vector<8x128xf32>
    %269 = arith.mulf %260, %197 : vector<8x128xf32>
    %270 = arith.addf %268, %269 : vector<8x128xf32>
    %271 = vector.extract_strided_slice %244 {offsets = [0, 384], sizes = [8, 128], strides = [1, 1]} : vector<8x768xf32> to vector<8x128xf32>
    %272 = vector.extract_strided_slice %238 {offsets = [0, 384], sizes = [8, 128], strides = [1, 1]} : vector<8x768xf32> to vector<8x128xf32>
    %273 = arith.addf %271, %272 : vector<8x128xf32>
    %274 = arith.negf %273 : vector<8x128xf32>
    %275 = math.exp %274 : vector<8x128xf32>
    %cst_69 = arith.constant 1.000000e+00 : f32
    %276 = vector.broadcast %cst_69 : f32 to vector<8x128xf32>
    %277 = arith.addf %276, %275 : vector<8x128xf32>
    %278 = arith.divf %276, %277 : vector<8x128xf32>
    %279 = vector.extract_strided_slice %244 {offsets = [0, 512], sizes = [8, 128], strides = [1, 1]} : vector<8x768xf32> to vector<8x128xf32>
    %280 = vector.extract_strided_slice %238 {offsets = [0, 512], sizes = [8, 128], strides = [1, 1]} : vector<8x768xf32> to vector<8x128xf32>
    %281 = arith.addf %279, %280 : vector<8x128xf32>
    %282 = arith.negf %281 : vector<8x128xf32>
    %283 = math.exp %282 : vector<8x128xf32>
    %cst_70 = arith.constant 1.000000e+00 : f32
    %284 = vector.broadcast %cst_70 : f32 to vector<8x128xf32>
    %285 = arith.addf %284, %283 : vector<8x128xf32>
    %286 = arith.divf %284, %285 : vector<8x128xf32>
    %287 = vector.extract_strided_slice %244 {offsets = [0, 640], sizes = [8, 128], strides = [1, 1]} : vector<8x768xf32> to vector<8x128xf32>
    %288 = vector.extract_strided_slice %238 {offsets = [0, 640], sizes = [8, 128], strides = [1, 1]} : vector<8x768xf32> to vector<8x128xf32>
    %289 = arith.mulf %278, %288 : vector<8x128xf32>
    %290 = arith.addf %287, %289 : vector<8x128xf32>
    %291 = math.tanh %290 : vector<8x128xf32>
    %cst_71 = arith.constant 1.000000e+00 : f32
    %292 = vector.broadcast %cst_71 : f32 to vector<8x128xf32>
    %293 = arith.subf %292, %286 : vector<8x128xf32>
    %294 = arith.mulf %293, %291 : vector<8x128xf32>
    %295 = arith.mulf %286, %223 : vector<8x128xf32>
    %296 = arith.addf %294, %295 : vector<8x128xf32>
    %297 = arith.truncf %270 : vector<8x128xf32> to vector<8x128xbf16>
    %298 = arith.index_cast %c3_i32 : i32 to index
    %c0_72 = arith.constant 0 : index
    %c0_73 = arith.constant 0 : index
    %299 = vector.load %arg5[%298, %c0_72, %c0_73] : memref<8x8x256xbf16, #tpu.memory_space<vmem>>, vector<1x8x128xbf16>
    %300 = vector.shape_cast %299 : vector<1x8x128xbf16> to vector<8x128xbf16>
    %301 = vector.shape_cast %297 : vector<8x128xbf16> to vector<1x8x128xbf16>
    tpu.vector_store %arg5[%298, %c0_72, %c0_73], %301 {strides = array<i32>} : memref<8x8x256xbf16, #tpu.memory_space<vmem>>, vector<1x8x128xbf16>,
    %302 = arith.truncf %296 : vector<8x128xf32> to vector<8x128xbf16>
    %303 = arith.index_cast %234 : i32 to index
    %c0_74 = arith.constant 0 : index
    %c128_75 = arith.constant 128 : index
    %304 = vector.load %arg5[%303, %c0_74, %c128_75] : memref<8x8x256xbf16, #tpu.memory_space<vmem>>, vector<1x8x128xbf16>
    %305 = vector.shape_cast %304 : vector<1x8x128xbf16> to vector<8x128xbf16>
    %306 = vector.shape_cast %302 : vector<8x128xbf16> to vector<1x8x128xbf16>
    tpu.vector_store %arg5[%303, %c0_74, %c128_75], %306 {strides = array<i32>} : memref<8x8x256xbf16, #tpu.memory_space<vmem>>, vector<1x8x128xbf16>,
    %c4_i32 = arith.constant 4 : i32
    %c7_i32_76 = arith.constant 7 : i32
    %307 = arith.subi %c7_i32_76, %c4_i32 : i32
    %308 = tpu.concatenate %270, %296 in 1 : vector<8x128xf32>, vector<8x128xf32> -> vector<8x256xf32>
    %309 = arith.truncf %308 : vector<8x256xf32> to vector<8x256xbf16>
    %cst_77 = arith.constant dense<0.000000e+00> : vector<8x768xf32>
    %310 = tpu.matmul %309, %10, %cst_77 {dimension_numbers = #tpu.dot_dimension_numbers<[1], [0], [0], [1], [0, 0, 1, 1], [], []>} : vector<8x256xbf16>, vector<256x768xbf16>, vector<8x768xf32> -> vector<8x768xf32>
    %311 = arith.addf %310, %13 : vector<8x768xf32>
    %312 = arith.index_cast %c4_i32 : i32 to index
    %c0_78 = arith.constant 0 : index
    %c0_79 = arith.constant 0 : index
    %313 = vector.load %arg6[%312, %c0_78, %c0_79] : memref<8x8x768xf32, #tpu.memory_space<vmem>>, vector<1x8x768xf32>
    %314 = vector.shape_cast %313 : vector<1x8x768xf32> to vector<8x768xf32>
    %315 = arith.index_cast %307 : i32 to index
    %c0_80 = arith.constant 0 : index
    %c0_81 = arith.constant 0 : index
    %316 = vector.load %arg6[%315, %c0_80, %c0_81] : memref<8x8x768xf32, #tpu.memory_space<vmem>>, vector<1x8x768xf32>
    %317 = vector.shape_cast %316 : vector<1x8x768xf32> to vector<8x768xf32>
    %318 = vector.extract_strided_slice %314 {offsets = [0, 0], sizes = [8, 128], strides = [1, 1]} : vector<8x768xf32> to vector<8x128xf32>
    %319 = vector.extract_strided_slice %311 {offsets = [0, 0], sizes = [8, 128], strides = [1, 1]} : vector<8x768xf32> to vector<8x128xf32>
    %320 = arith.addf %318, %319 : vector<8x128xf32>
    %321 = arith.negf %320 : vector<8x128xf32>
    %322 = math.exp %321 : vector<8x128xf32>
    %cst_82 = arith.constant 1.000000e+00 : f32
    %323 = vector.broadcast %cst_82 : f32 to vector<8x128xf32>
    %324 = arith.addf %323, %322 : vector<8x128xf32>
    %325 = arith.divf %323, %324 : vector<8x128xf32>
    %326 = vector.extract_strided_slice %314 {offsets = [0, 128], sizes = [8, 128], strides = [1, 1]} : vector<8x768xf32> to vector<8x128xf32>
    %327 = vector.extract_strided_slice %311 {offsets = [0, 128], sizes = [8, 128], strides = [1, 1]} : vector<8x768xf32> to vector<8x128xf32>
    %328 = arith.addf %326, %327 : vector<8x128xf32>
    %329 = arith.negf %328 : vector<8x128xf32>
    %330 = math.exp %329 : vector<8x128xf32>
    %cst_83 = arith.constant 1.000000e+00 : f32
    %331 = vector.broadcast %cst_83 : f32 to vector<8x128xf32>
    %332 = arith.addf %331, %330 : vector<8x128xf32>
    %333 = arith.divf %331, %332 : vector<8x128xf32>
    %334 = vector.extract_strided_slice %314 {offsets = [0, 256], sizes = [8, 128], strides = [1, 1]} : vector<8x768xf32> to vector<8x128xf32>
    %335 = vector.extract_strided_slice %311 {offsets = [0, 256], sizes = [8, 128], strides = [1, 1]} : vector<8x768xf32> to vector<8x128xf32>
    %336 = arith.mulf %325, %335 : vector<8x128xf32>
    %337 = arith.addf %334, %336 : vector<8x128xf32>
    %338 = math.tanh %337 : vector<8x128xf32>
    %cst_84 = arith.constant 1.000000e+00 : f32
    %339 = vector.broadcast %cst_84 : f32 to vector<8x128xf32>
    %340 = arith.subf %339, %333 : vector<8x128xf32>
    %341 = arith.mulf %340, %338 : vector<8x128xf32>
    %342 = arith.mulf %333, %270 : vector<8x128xf32>
    %343 = arith.addf %341, %342 : vector<8x128xf32>
    %344 = vector.extract_strided_slice %317 {offsets = [0, 384], sizes = [8, 128], strides = [1, 1]} : vector<8x768xf32> to vector<8x128xf32>
    %345 = vector.extract_strided_slice %311 {offsets = [0, 384], sizes = [8, 128], strides = [1, 1]} : vector<8x768xf32> to vector<8x128xf32>
    %346 = arith.addf %344, %345 : vector<8x128xf32>
    %347 = arith.negf %346 : vector<8x128xf32>
    %348 = math.exp %347 : vector<8x128xf32>
    %cst_85 = arith.constant 1.000000e+00 : f32
    %349 = vector.broadcast %cst_85 : f32 to vector<8x128xf32>
    %350 = arith.addf %349, %348 : vector<8x128xf32>
    %351 = arith.divf %349, %350 : vector<8x128xf32>
    %352 = vector.extract_strided_slice %317 {offsets = [0, 512], sizes = [8, 128], strides = [1, 1]} : vector<8x768xf32> to vector<8x128xf32>
    %353 = vector.extract_strided_slice %311 {offsets = [0, 512], sizes = [8, 128], strides = [1, 1]} : vector<8x768xf32> to vector<8x128xf32>
    %354 = arith.addf %352, %353 : vector<8x128xf32>
    %355 = arith.negf %354 : vector<8x128xf32>
    %356 = math.exp %355 : vector<8x128xf32>
    %cst_86 = arith.constant 1.000000e+00 : f32
    %357 = vector.broadcast %cst_86 : f32 to vector<8x128xf32>
    %358 = arith.addf %357, %356 : vector<8x128xf32>
    %359 = arith.divf %357, %358 : vector<8x128xf32>
    %360 = vector.extract_strided_slice %317 {offsets = [0, 640], sizes = [8, 128], strides = [1, 1]} : vector<8x768xf32> to vector<8x128xf32>
    %361 = vector.extract_strided_slice %311 {offsets = [0, 640], sizes = [8, 128], strides = [1, 1]} : vector<8x768xf32> to vector<8x128xf32>
    %362 = arith.mulf %351, %361 : vector<8x128xf32>
    %363 = arith.addf %360, %362 : vector<8x128xf32>
    %364 = math.tanh %363 : vector<8x128xf32>
    %cst_87 = arith.constant 1.000000e+00 : f32
    %365 = vector.broadcast %cst_87 : f32 to vector<8x128xf32>
    %366 = arith.subf %365, %359 : vector<8x128xf32>
    %367 = arith.mulf %366, %364 : vector<8x128xf32>
    %368 = arith.mulf %359, %296 : vector<8x128xf32>
    %369 = arith.addf %367, %368 : vector<8x128xf32>
    %370 = arith.truncf %343 : vector<8x128xf32> to vector<8x128xbf16>
    %371 = arith.index_cast %c4_i32 : i32 to index
    %c0_88 = arith.constant 0 : index
    %c0_89 = arith.constant 0 : index
    %372 = vector.load %arg5[%371, %c0_88, %c0_89] : memref<8x8x256xbf16, #tpu.memory_space<vmem>>, vector<1x8x128xbf16>
    %373 = vector.shape_cast %372 : vector<1x8x128xbf16> to vector<8x128xbf16>
    %374 = vector.shape_cast %370 : vector<8x128xbf16> to vector<1x8x128xbf16>
    tpu.vector_store %arg5[%371, %c0_88, %c0_89], %374 {strides = array<i32>} : memref<8x8x256xbf16, #tpu.memory_space<vmem>>, vector<1x8x128xbf16>,
    %375 = arith.truncf %369 : vector<8x128xf32> to vector<8x128xbf16>
    %376 = arith.index_cast %307 : i32 to index
    %c0_90 = arith.constant 0 : index
    %c128_91 = arith.constant 128 : index
    %377 = vector.load %arg5[%376, %c0_90, %c128_91] : memref<8x8x256xbf16, #tpu.memory_space<vmem>>, vector<1x8x128xbf16>
    %378 = vector.shape_cast %377 : vector<1x8x128xbf16> to vector<8x128xbf16>
    %379 = vector.shape_cast %375 : vector<8x128xbf16> to vector<1x8x128xbf16>
    tpu.vector_store %arg5[%376, %c0_90, %c128_91], %379 {strides = array<i32>} : memref<8x8x256xbf16, #tpu.memory_space<vmem>>, vector<1x8x128xbf16>,
    %c5_i32 = arith.constant 5 : i32
    %c7_i32_92 = arith.constant 7 : i32
    %380 = arith.subi %c7_i32_92, %c5_i32 : i32
    %381 = tpu.concatenate %343, %369 in 1 : vector<8x128xf32>, vector<8x128xf32> -> vector<8x256xf32>
    %382 = arith.truncf %381 : vector<8x256xf32> to vector<8x256xbf16>
    %cst_93 = arith.constant dense<0.000000e+00> : vector<8x768xf32>
    %383 = tpu.matmul %382, %10, %cst_93 {dimension_numbers = #tpu.dot_dimension_numbers<[1], [0], [0], [1], [0, 0, 1, 1], [], []>} : vector<8x256xbf16>, vector<256x768xbf16>, vector<8x768xf32> -> vector<8x768xf32>
    %384 = arith.addf %383, %13 : vector<8x768xf32>
    %385 = arith.index_cast %c5_i32 : i32 to index
    %c0_94 = arith.constant 0 : index
    %c0_95 = arith.constant 0 : index
    %386 = vector.load %arg6[%385, %c0_94, %c0_95] : memref<8x8x768xf32, #tpu.memory_space<vmem>>, vector<1x8x768xf32>
    %387 = vector.shape_cast %386 : vector<1x8x768xf32> to vector<8x768xf32>
    %388 = arith.index_cast %380 : i32 to index
    %c0_96 = arith.constant 0 : index
    %c0_97 = arith.constant 0 : index
    %389 = vector.load %arg6[%388, %c0_96, %c0_97] : memref<8x8x768xf32, #tpu.memory_space<vmem>>, vector<1x8x768xf32>
    %390 = vector.shape_cast %389 : vector<1x8x768xf32> to vector<8x768xf32>
    %391 = vector.extract_strided_slice %387 {offsets = [0, 0], sizes = [8, 128], strides = [1, 1]} : vector<8x768xf32> to vector<8x128xf32>
    %392 = vector.extract_strided_slice %384 {offsets = [0, 0], sizes = [8, 128], strides = [1, 1]} : vector<8x768xf32> to vector<8x128xf32>
    %393 = arith.addf %391, %392 : vector<8x128xf32>
    %394 = arith.negf %393 : vector<8x128xf32>
    %395 = math.exp %394 : vector<8x128xf32>
    %cst_98 = arith.constant 1.000000e+00 : f32
    %396 = vector.broadcast %cst_98 : f32 to vector<8x128xf32>
    %397 = arith.addf %396, %395 : vector<8x128xf32>
    %398 = arith.divf %396, %397 : vector<8x128xf32>
    %399 = vector.extract_strided_slice %387 {offsets = [0, 128], sizes = [8, 128], strides = [1, 1]} : vector<8x768xf32> to vector<8x128xf32>
    %400 = vector.extract_strided_slice %384 {offsets = [0, 128], sizes = [8, 128], strides = [1, 1]} : vector<8x768xf32> to vector<8x128xf32>
    %401 = arith.addf %399, %400 : vector<8x128xf32>
    %402 = arith.negf %401 : vector<8x128xf32>
    %403 = math.exp %402 : vector<8x128xf32>
    %cst_99 = arith.constant 1.000000e+00 : f32
    %404 = vector.broadcast %cst_99 : f32 to vector<8x128xf32>
    %405 = arith.addf %404, %403 : vector<8x128xf32>
    %406 = arith.divf %404, %405 : vector<8x128xf32>
    %407 = vector.extract_strided_slice %387 {offsets = [0, 256], sizes = [8, 128], strides = [1, 1]} : vector<8x768xf32> to vector<8x128xf32>
    %408 = vector.extract_strided_slice %384 {offsets = [0, 256], sizes = [8, 128], strides = [1, 1]} : vector<8x768xf32> to vector<8x128xf32>
    %409 = arith.mulf %398, %408 : vector<8x128xf32>
    %410 = arith.addf %407, %409 : vector<8x128xf32>
    %411 = math.tanh %410 : vector<8x128xf32>
    %cst_100 = arith.constant 1.000000e+00 : f32
    %412 = vector.broadcast %cst_100 : f32 to vector<8x128xf32>
    %413 = arith.subf %412, %406 : vector<8x128xf32>
    %414 = arith.mulf %413, %411 : vector<8x128xf32>
    %415 = arith.mulf %406, %343 : vector<8x128xf32>
    %416 = arith.addf %414, %415 : vector<8x128xf32>
    %417 = vector.extract_strided_slice %390 {offsets = [0, 384], sizes = [8, 128], strides = [1, 1]} : vector<8x768xf32> to vector<8x128xf32>
    %418 = vector.extract_strided_slice %384 {offsets = [0, 384], sizes = [8, 128], strides = [1, 1]} : vector<8x768xf32> to vector<8x128xf32>
    %419 = arith.addf %417, %418 : vector<8x128xf32>
    %420 = arith.negf %419 : vector<8x128xf32>
    %421 = math.exp %420 : vector<8x128xf32>
    %cst_101 = arith.constant 1.000000e+00 : f32
    %422 = vector.broadcast %cst_101 : f32 to vector<8x128xf32>
    %423 = arith.addf %422, %421 : vector<8x128xf32>
    %424 = arith.divf %422, %423 : vector<8x128xf32>
    %425 = vector.extract_strided_slice %390 {offsets = [0, 512], sizes = [8, 128], strides = [1, 1]} : vector<8x768xf32> to vector<8x128xf32>
    %426 = vector.extract_strided_slice %384 {offsets = [0, 512], sizes = [8, 128], strides = [1, 1]} : vector<8x768xf32> to vector<8x128xf32>
    %427 = arith.addf %425, %426 : vector<8x128xf32>
    %428 = arith.negf %427 : vector<8x128xf32>
    %429 = math.exp %428 : vector<8x128xf32>
    %cst_102 = arith.constant 1.000000e+00 : f32
    %430 = vector.broadcast %cst_102 : f32 to vector<8x128xf32>
    %431 = arith.addf %430, %429 : vector<8x128xf32>
    %432 = arith.divf %430, %431 : vector<8x128xf32>
    %433 = vector.extract_strided_slice %390 {offsets = [0, 640], sizes = [8, 128], strides = [1, 1]} : vector<8x768xf32> to vector<8x128xf32>
    %434 = vector.extract_strided_slice %384 {offsets = [0, 640], sizes = [8, 128], strides = [1, 1]} : vector<8x768xf32> to vector<8x128xf32>
    %435 = arith.mulf %424, %434 : vector<8x128xf32>
    %436 = arith.addf %433, %435 : vector<8x128xf32>
    %437 = math.tanh %436 : vector<8x128xf32>
    %cst_103 = arith.constant 1.000000e+00 : f32
    %438 = vector.broadcast %cst_103 : f32 to vector<8x128xf32>
    %439 = arith.subf %438, %432 : vector<8x128xf32>
    %440 = arith.mulf %439, %437 : vector<8x128xf32>
    %441 = arith.mulf %432, %369 : vector<8x128xf32>
    %442 = arith.addf %440, %441 : vector<8x128xf32>
    %443 = arith.truncf %416 : vector<8x128xf32> to vector<8x128xbf16>
    %444 = arith.index_cast %c5_i32 : i32 to index
    %c0_104 = arith.constant 0 : index
    %c0_105 = arith.constant 0 : index
    %445 = vector.load %arg5[%444, %c0_104, %c0_105] : memref<8x8x256xbf16, #tpu.memory_space<vmem>>, vector<1x8x128xbf16>
    %446 = vector.shape_cast %445 : vector<1x8x128xbf16> to vector<8x128xbf16>
    %447 = vector.shape_cast %443 : vector<8x128xbf16> to vector<1x8x128xbf16>
    tpu.vector_store %arg5[%444, %c0_104, %c0_105], %447 {strides = array<i32>} : memref<8x8x256xbf16, #tpu.memory_space<vmem>>, vector<1x8x128xbf16>,
    %448 = arith.truncf %442 : vector<8x128xf32> to vector<8x128xbf16>
    %449 = arith.index_cast %380 : i32 to index
    %c0_106 = arith.constant 0 : index
    %c128_107 = arith.constant 128 : index
    %450 = vector.load %arg5[%449, %c0_106, %c128_107] : memref<8x8x256xbf16, #tpu.memory_space<vmem>>, vector<1x8x128xbf16>
    %451 = vector.shape_cast %450 : vector<1x8x128xbf16> to vector<8x128xbf16>
    %452 = vector.shape_cast %448 : vector<8x128xbf16> to vector<1x8x128xbf16>
    tpu.vector_store %arg5[%449, %c0_106, %c128_107], %452 {strides = array<i32>} : memref<8x8x256xbf16, #tpu.memory_space<vmem>>, vector<1x8x128xbf16>,
    %c6_i32 = arith.constant 6 : i32
    %c7_i32_108 = arith.constant 7 : i32
    %453 = arith.subi %c7_i32_108, %c6_i32 : i32
    %454 = tpu.concatenate %416, %442 in 1 : vector<8x128xf32>, vector<8x128xf32> -> vector<8x256xf32>
    %455 = arith.truncf %454 : vector<8x256xf32> to vector<8x256xbf16>
    %cst_109 = arith.constant dense<0.000000e+00> : vector<8x768xf32>
    %456 = tpu.matmul %455, %10, %cst_109 {dimension_numbers = #tpu.dot_dimension_numbers<[1], [0], [0], [1], [0, 0, 1, 1], [], []>} : vector<8x256xbf16>, vector<256x768xbf16>, vector<8x768xf32> -> vector<8x768xf32>
    %457 = arith.addf %456, %13 : vector<8x768xf32>
    %458 = arith.index_cast %c6_i32 : i32 to index
    %c0_110 = arith.constant 0 : index
    %c0_111 = arith.constant 0 : index
    %459 = vector.load %arg6[%458, %c0_110, %c0_111] : memref<8x8x768xf32, #tpu.memory_space<vmem>>, vector<1x8x768xf32>
    %460 = vector.shape_cast %459 : vector<1x8x768xf32> to vector<8x768xf32>
    %461 = arith.index_cast %453 : i32 to index
    %c0_112 = arith.constant 0 : index
    %c0_113 = arith.constant 0 : index
    %462 = vector.load %arg6[%461, %c0_112, %c0_113] : memref<8x8x768xf32, #tpu.memory_space<vmem>>, vector<1x8x768xf32>
    %463 = vector.shape_cast %462 : vector<1x8x768xf32> to vector<8x768xf32>
    %464 = vector.extract_strided_slice %460 {offsets = [0, 0], sizes = [8, 128], strides = [1, 1]} : vector<8x768xf32> to vector<8x128xf32>
    %465 = vector.extract_strided_slice %457 {offsets = [0, 0], sizes = [8, 128], strides = [1, 1]} : vector<8x768xf32> to vector<8x128xf32>
    %466 = arith.addf %464, %465 : vector<8x128xf32>
    %467 = arith.negf %466 : vector<8x128xf32>
    %468 = math.exp %467 : vector<8x128xf32>
    %cst_114 = arith.constant 1.000000e+00 : f32
    %469 = vector.broadcast %cst_114 : f32 to vector<8x128xf32>
    %470 = arith.addf %469, %468 : vector<8x128xf32>
    %471 = arith.divf %469, %470 : vector<8x128xf32>
    %472 = vector.extract_strided_slice %460 {offsets = [0, 128], sizes = [8, 128], strides = [1, 1]} : vector<8x768xf32> to vector<8x128xf32>
    %473 = vector.extract_strided_slice %457 {offsets = [0, 128], sizes = [8, 128], strides = [1, 1]} : vector<8x768xf32> to vector<8x128xf32>
    %474 = arith.addf %472, %473 : vector<8x128xf32>
    %475 = arith.negf %474 : vector<8x128xf32>
    %476 = math.exp %475 : vector<8x128xf32>
    %cst_115 = arith.constant 1.000000e+00 : f32
    %477 = vector.broadcast %cst_115 : f32 to vector<8x128xf32>
    %478 = arith.addf %477, %476 : vector<8x128xf32>
    %479 = arith.divf %477, %478 : vector<8x128xf32>
    %480 = vector.extract_strided_slice %460 {offsets = [0, 256], sizes = [8, 128], strides = [1, 1]} : vector<8x768xf32> to vector<8x128xf32>
    %481 = vector.extract_strided_slice %457 {offsets = [0, 256], sizes = [8, 128], strides = [1, 1]} : vector<8x768xf32> to vector<8x128xf32>
    %482 = arith.mulf %471, %481 : vector<8x128xf32>
    %483 = arith.addf %480, %482 : vector<8x128xf32>
    %484 = math.tanh %483 : vector<8x128xf32>
    %cst_116 = arith.constant 1.000000e+00 : f32
    %485 = vector.broadcast %cst_116 : f32 to vector<8x128xf32>
    %486 = arith.subf %485, %479 : vector<8x128xf32>
    %487 = arith.mulf %486, %484 : vector<8x128xf32>
    %488 = arith.mulf %479, %416 : vector<8x128xf32>
    %489 = arith.addf %487, %488 : vector<8x128xf32>
    %490 = vector.extract_strided_slice %463 {offsets = [0, 384], sizes = [8, 128], strides = [1, 1]} : vector<8x768xf32> to vector<8x128xf32>
    %491 = vector.extract_strided_slice %457 {offsets = [0, 384], sizes = [8, 128], strides = [1, 1]} : vector<8x768xf32> to vector<8x128xf32>
    %492 = arith.addf %490, %491 : vector<8x128xf32>
    %493 = arith.negf %492 : vector<8x128xf32>
    %494 = math.exp %493 : vector<8x128xf32>
    %cst_117 = arith.constant 1.000000e+00 : f32
    %495 = vector.broadcast %cst_117 : f32 to vector<8x128xf32>
    %496 = arith.addf %495, %494 : vector<8x128xf32>
    %497 = arith.divf %495, %496 : vector<8x128xf32>
    %498 = vector.extract_strided_slice %463 {offsets = [0, 512], sizes = [8, 128], strides = [1, 1]} : vector<8x768xf32> to vector<8x128xf32>
    %499 = vector.extract_strided_slice %457 {offsets = [0, 512], sizes = [8, 128], strides = [1, 1]} : vector<8x768xf32> to vector<8x128xf32>
    %500 = arith.addf %498, %499 : vector<8x128xf32>
    %501 = arith.negf %500 : vector<8x128xf32>
    %502 = math.exp %501 : vector<8x128xf32>
    %cst_118 = arith.constant 1.000000e+00 : f32
    %503 = vector.broadcast %cst_118 : f32 to vector<8x128xf32>
    %504 = arith.addf %503, %502 : vector<8x128xf32>
    %505 = arith.divf %503, %504 : vector<8x128xf32>
    %506 = vector.extract_strided_slice %463 {offsets = [0, 640], sizes = [8, 128], strides = [1, 1]} : vector<8x768xf32> to vector<8x128xf32>
    %507 = vector.extract_strided_slice %457 {offsets = [0, 640], sizes = [8, 128], strides = [1, 1]} : vector<8x768xf32> to vector<8x128xf32>
    %508 = arith.mulf %497, %507 : vector<8x128xf32>
    %509 = arith.addf %506, %508 : vector<8x128xf32>
    %510 = math.tanh %509 : vector<8x128xf32>
    %cst_119 = arith.constant 1.000000e+00 : f32
    %511 = vector.broadcast %cst_119 : f32 to vector<8x128xf32>
    %512 = arith.subf %511, %505 : vector<8x128xf32>
    %513 = arith.mulf %512, %510 : vector<8x128xf32>
    %514 = arith.mulf %505, %442 : vector<8x128xf32>
    %515 = arith.addf %513, %514 : vector<8x128xf32>
    %516 = arith.truncf %489 : vector<8x128xf32> to vector<8x128xbf16>
    %517 = arith.index_cast %c6_i32 : i32 to index
    %c0_120 = arith.constant 0 : index
    %c0_121 = arith.constant 0 : index
    %518 = vector.load %arg5[%517, %c0_120, %c0_121] : memref<8x8x256xbf16, #tpu.memory_space<vmem>>, vector<1x8x128xbf16>
    %519 = vector.shape_cast %518 : vector<1x8x128xbf16> to vector<8x128xbf16>
    %520 = vector.shape_cast %516 : vector<8x128xbf16> to vector<1x8x128xbf16>
    tpu.vector_store %arg5[%517, %c0_120, %c0_121], %520 {strides = array<i32>} : memref<8x8x256xbf16, #tpu.memory_space<vmem>>, vector<1x8x128xbf16>,
    %521 = arith.truncf %515 : vector<8x128xf32> to vector<8x128xbf16>
    %522 = arith.index_cast %453 : i32 to index
    %c0_122 = arith.constant 0 : index
    %c128_123 = arith.constant 128 : index
    %523 = vector.load %arg5[%522, %c0_122, %c128_123] : memref<8x8x256xbf16, #tpu.memory_space<vmem>>, vector<1x8x128xbf16>
    %524 = vector.shape_cast %523 : vector<1x8x128xbf16> to vector<8x128xbf16>
    %525 = vector.shape_cast %521 : vector<8x128xbf16> to vector<1x8x128xbf16>
    tpu.vector_store %arg5[%522, %c0_122, %c128_123], %525 {strides = array<i32>} : memref<8x8x256xbf16, #tpu.memory_space<vmem>>, vector<1x8x128xbf16>,
    %c7_i32_124 = arith.constant 7 : i32
    %c7_i32_125 = arith.constant 7 : i32
    %526 = arith.subi %c7_i32_125, %c7_i32_124 : i32
    %527 = tpu.concatenate %489, %515 in 1 : vector<8x128xf32>, vector<8x128xf32> -> vector<8x256xf32>
    %528 = arith.truncf %527 : vector<8x256xf32> to vector<8x256xbf16>
    %cst_126 = arith.constant dense<0.000000e+00> : vector<8x768xf32>
    %529 = tpu.matmul %528, %10, %cst_126 {dimension_numbers = #tpu.dot_dimension_numbers<[1], [0], [0], [1], [0, 0, 1, 1], [], []>} : vector<8x256xbf16>, vector<256x768xbf16>, vector<8x768xf32> -> vector<8x768xf32>
    %530 = arith.addf %529, %13 : vector<8x768xf32>
    %531 = arith.index_cast %c7_i32_124 : i32 to index
    %c0_127 = arith.constant 0 : index
    %c0_128 = arith.constant 0 : index
    %532 = vector.load %arg6[%531, %c0_127, %c0_128] : memref<8x8x768xf32, #tpu.memory_space<vmem>>, vector<1x8x768xf32>
    %533 = vector.shape_cast %532 : vector<1x8x768xf32> to vector<8x768xf32>
    %534 = arith.index_cast %526 : i32 to index
    %c0_129 = arith.constant 0 : index
    %c0_130 = arith.constant 0 : index
    %535 = vector.load %arg6[%534, %c0_129, %c0_130] : memref<8x8x768xf32, #tpu.memory_space<vmem>>, vector<1x8x768xf32>
    %536 = vector.shape_cast %535 : vector<1x8x768xf32> to vector<8x768xf32>
    %537 = vector.extract_strided_slice %533 {offsets = [0, 0], sizes = [8, 128], strides = [1, 1]} : vector<8x768xf32> to vector<8x128xf32>
    %538 = vector.extract_strided_slice %530 {offsets = [0, 0], sizes = [8, 128], strides = [1, 1]} : vector<8x768xf32> to vector<8x128xf32>
    %539 = arith.addf %537, %538 : vector<8x128xf32>
    %540 = arith.negf %539 : vector<8x128xf32>
    %541 = math.exp %540 : vector<8x128xf32>
    %cst_131 = arith.constant 1.000000e+00 : f32
    %542 = vector.broadcast %cst_131 : f32 to vector<8x128xf32>
    %543 = arith.addf %542, %541 : vector<8x128xf32>
    %544 = arith.divf %542, %543 : vector<8x128xf32>
    %545 = vector.extract_strided_slice %533 {offsets = [0, 128], sizes = [8, 128], strides = [1, 1]} : vector<8x768xf32> to vector<8x128xf32>
    %546 = vector.extract_strided_slice %530 {offsets = [0, 128], sizes = [8, 128], strides = [1, 1]} : vector<8x768xf32> to vector<8x128xf32>
    %547 = arith.addf %545, %546 : vector<8x128xf32>
    %548 = arith.negf %547 : vector<8x128xf32>
    %549 = math.exp %548 : vector<8x128xf32>
    %cst_132 = arith.constant 1.000000e+00 : f32
    %550 = vector.broadcast %cst_132 : f32 to vector<8x128xf32>
    %551 = arith.addf %550, %549 : vector<8x128xf32>
    %552 = arith.divf %550, %551 : vector<8x128xf32>
    %553 = vector.extract_strided_slice %533 {offsets = [0, 256], sizes = [8, 128], strides = [1, 1]} : vector<8x768xf32> to vector<8x128xf32>
    %554 = vector.extract_strided_slice %530 {offsets = [0, 256], sizes = [8, 128], strides = [1, 1]} : vector<8x768xf32> to vector<8x128xf32>
    %555 = arith.mulf %544, %554 : vector<8x128xf32>
    %556 = arith.addf %553, %555 : vector<8x128xf32>
    %557 = math.tanh %556 : vector<8x128xf32>
    %cst_133 = arith.constant 1.000000e+00 : f32
    %558 = vector.broadcast %cst_133 : f32 to vector<8x128xf32>
    %559 = arith.subf %558, %552 : vector<8x128xf32>
    %560 = arith.mulf %559, %557 : vector<8x128xf32>
    %561 = arith.mulf %552, %489 : vector<8x128xf32>
    %562 = arith.addf %560, %561 : vector<8x128xf32>
    %563 = vector.extract_strided_slice %536 {offsets = [0, 384], sizes = [8, 128], strides = [1, 1]} : vector<8x768xf32> to vector<8x128xf32>
    %564 = vector.extract_strided_slice %530 {offsets = [0, 384], sizes = [8, 128], strides = [1, 1]} : vector<8x768xf32> to vector<8x128xf32>
    %565 = arith.addf %563, %564 : vector<8x128xf32>
    %566 = arith.negf %565 : vector<8x128xf32>
    %567 = math.exp %566 : vector<8x128xf32>
    %cst_134 = arith.constant 1.000000e+00 : f32
    %568 = vector.broadcast %cst_134 : f32 to vector<8x128xf32>
    %569 = arith.addf %568, %567 : vector<8x128xf32>
    %570 = arith.divf %568, %569 : vector<8x128xf32>
    %571 = vector.extract_strided_slice %536 {offsets = [0, 512], sizes = [8, 128], strides = [1, 1]} : vector<8x768xf32> to vector<8x128xf32>
    %572 = vector.extract_strided_slice %530 {offsets = [0, 512], sizes = [8, 128], strides = [1, 1]} : vector<8x768xf32> to vector<8x128xf32>
    %573 = arith.addf %571, %572 : vector<8x128xf32>
    %574 = arith.negf %573 : vector<8x128xf32>
    %575 = math.exp %574 : vector<8x128xf32>
    %cst_135 = arith.constant 1.000000e+00 : f32
    %576 = vector.broadcast %cst_135 : f32 to vector<8x128xf32>
    %577 = arith.addf %576, %575 : vector<8x128xf32>
    %578 = arith.divf %576, %577 : vector<8x128xf32>
    %579 = vector.extract_strided_slice %536 {offsets = [0, 640], sizes = [8, 128], strides = [1, 1]} : vector<8x768xf32> to vector<8x128xf32>
    %580 = vector.extract_strided_slice %530 {offsets = [0, 640], sizes = [8, 128], strides = [1, 1]} : vector<8x768xf32> to vector<8x128xf32>
    %581 = arith.mulf %570, %580 : vector<8x128xf32>
    %582 = arith.addf %579, %581 : vector<8x128xf32>
    %583 = math.tanh %582 : vector<8x128xf32>
    %cst_136 = arith.constant 1.000000e+00 : f32
    %584 = vector.broadcast %cst_136 : f32 to vector<8x128xf32>
    %585 = arith.subf %584, %578 : vector<8x128xf32>
    %586 = arith.mulf %585, %583 : vector<8x128xf32>
    %587 = arith.mulf %578, %515 : vector<8x128xf32>
    %588 = arith.addf %586, %587 : vector<8x128xf32>
    %589 = arith.truncf %562 : vector<8x128xf32> to vector<8x128xbf16>
    %590 = arith.index_cast %c7_i32_124 : i32 to index
    %c0_137 = arith.constant 0 : index
    %c0_138 = arith.constant 0 : index
    %591 = vector.load %arg5[%590, %c0_137, %c0_138] : memref<8x8x256xbf16, #tpu.memory_space<vmem>>, vector<1x8x128xbf16>
    %592 = vector.shape_cast %591 : vector<1x8x128xbf16> to vector<8x128xbf16>
    %593 = vector.shape_cast %589 : vector<8x128xbf16> to vector<1x8x128xbf16>
    tpu.vector_store %arg5[%590, %c0_137, %c0_138], %593 {strides = array<i32>} : memref<8x8x256xbf16, #tpu.memory_space<vmem>>, vector<1x8x128xbf16>,
    %594 = arith.truncf %588 : vector<8x128xf32> to vector<8x128xbf16>
    %595 = arith.index_cast %526 : i32 to index
    %c0_139 = arith.constant 0 : index
    %c128_140 = arith.constant 128 : index
    %596 = vector.load %arg5[%595, %c0_139, %c128_140] : memref<8x8x256xbf16, #tpu.memory_space<vmem>>, vector<1x8x128xbf16>
    %597 = vector.shape_cast %596 : vector<1x8x128xbf16> to vector<8x128xbf16>
    %598 = vector.shape_cast %594 : vector<8x128xbf16> to vector<1x8x128xbf16>
    tpu.vector_store %arg5[%595, %c0_139, %c128_140], %598 {strides = array<i32>} : memref<8x8x256xbf16, #tpu.memory_space<vmem>>, vector<1x8x128xbf16>,
    %c8_i32 = arith.constant 8 : i32
    return
  }
}

</mosaic_0001>

<llo_original>
// kernel: tpu_custom_call.1
$region0: #{tpu_custom_call.1}
  #allocation0 [shape = 'u32[]', space=smem, size = 0x4, offset = 0x4, fixed_abs, tag = 'smem constant byte address 0x4 - core index']
  #allocation1 [shape = 'u32[144,128]{1,0:T(1,128)}', space=vmem, size = 0x12000, scoped, tag = 'internal scratch']
  #allocation2 [shape = 'f32[8,8,768]{2,1,0:T(8,128)}', space=vmem, size = 0x30000, scoped, tag = 'scratch operand']
  %s0 = inlined_call_operand.hbm [shape: bf16[8,8,128], index: 0, kind: input, shape index: {}]
  %s1 = inlined_call_operand.hbm [shape: bf16[128,768], index: 1, kind: input, shape index: {}]
  %s2 = inlined_call_operand.hbm [shape: bf16[256,768], index: 2, kind: input, shape index: {}]
  %s3 = inlined_call_operand.hbm [shape: f32[1,768], index: 3, kind: input, shape index: {}]
  %s4 = inlined_call_operand.vmem [shape: f32[1,768], index: 4, kind: input, shape index: {}]
  %s5 = inlined_call_operand.hbm [shape: bf16[8,8,256], index: 5, kind: output, shape index: {}]
  %s6 = sld [smem:[#allocation0]]
  $region46: #{tpu_custom_call.1} parent=0
    _
  %s8 = ssub.s32 1, %s6
  %s9 = scalar_select 0, %s8, %s6
  $region1: #{tpu_custom_call.1} parent=0
    #allocation3 [shape = 'u8[16384]{0}', space=vmem, size = 0x4000, scoped, tag = 'input window, operand 0, single buffered']
    #allocation4 [shape = 's32[1]{0}', space=sflag, size = 0x4, scoped, tag = 'scoped memory for tpu_custom_call.1']
    #allocation5 [shape = 's32[1]{0}', space=sflag, size = 0x4, scoped, tag = 'scoped memory for tpu_custom_call.1']
    #allocation6 [shape = 'u8[196608]{0}', space=vmem, size = 0x30000, scoped, tag = 'input window, operand 1, single buffered']
    #allocation7 [shape = 's32[1]{0}', space=sflag, size = 0x4, scoped, tag = 'scoped memory for tpu_custom_call.1']
    #allocation8 [shape = 'u8[393216]{0}', space=vmem, size = 0x60000, scoped, tag = 'input window, operand 2, single buffered']
    #allocation9 [shape = 'u8[3072]{0}', space=vmem, size = 0xc00, scoped, tag = 'input window, operand 3, single buffered']
    #allocation10 [shape = 's32[1]{0}', space=sflag, size = 0x4, scoped, tag = 'scoped memory for tpu_custom_call.1']
    #allocation11 [shape = 'u8[32768]{0}', space=vmem, size = 0x8000, scoped, tag = 'output window, operand 0, single buffered']
    %10 = vsyncpa [#allocation4], 0
    %11 = vsyncpa [#allocation7], 0
    %12 = vsyncpa [#allocation10], 0
    %13 = vsyncpa [#allocation5], 0
    // Predicated region
    $region2: #{tpu_custom_call.1} parent=1 // pred_check
      _
    $region3: #{tpu_custom_call.1} parent=1 // pred_check_branch
      %15 = sbr.rel (0) target = $region5
    $region4: #{tpu_custom_call.1} parent=1 // pred_region
      %s17 = ssub.s32 512, 512
      %18 = vsyncadd [#allocation4], %s17
      %s19 = sshll.u32 [#allocation3], 4
      %s20 = int_to_ptr.vmem [resolvable:$true] %s19
      %25 = dma.hbm_to_vmem [thread:$0]  %s0, 512, %s20, [#allocation4], 64, 64, 4
    $region5: #{tpu_custom_call.1} parent=1 // pred_fallthru
      _
    // Predicated region
    $region6: #{tpu_custom_call.1} parent=1 // pred_check
      _
    $region7: #{tpu_custom_call.1} parent=1 // pred_check_branch
      %27 = sbr.rel (0) target = $region9
    $region8: #{tpu_custom_call.1} parent=1 // pred_region
      %s29 = ssub.s32 6144, 6144
      %30 = vsyncadd [#allocation7], %s29
      %s31 = sshll.u32 [#allocation6], 4
      %s32 = int_to_ptr.vmem [resolvable:$true] %s31
      %37 = dma.hbm_to_vmem [thread:$0]  %s1, 6144, %s32, [#allocation7], 384, 384, 24
    $region9: #{tpu_custom_call.1} parent=1 // pred_fallthru
      _
    // Predicated region
    $region10: #{tpu_custom_call.1} parent=1 // pred_check
      _
    $region11: #{tpu_custom_call.1} parent=1 // pred_check_branch
      %39 = sbr.rel (0) target = $region13
    $region12: #{tpu_custom_call.1} parent=1 // pred_region
      %s41 = ssub.s32 12288, 12288
      %42 = vsyncadd [#allocation7], %s41
      %s43 = sshll.u32 [#allocation8], 4
      %s44 = int_to_ptr.vmem [resolvable:$true] %s43
      %49 = dma.hbm_to_vmem [thread:$0]  %s2, 12288, %s44, [#allocation7], 384, 384, 24
    $region13: #{tpu_custom_call.1} parent=1 // pred_fallthru
      _
    // Predicated region
    $region14: #{tpu_custom_call.1} parent=1 // pred_check
      _
    $region15: #{tpu_custom_call.1} parent=1 // pred_check_branch
      %51 = sbr.rel (0) target = $region17
    $region16: #{tpu_custom_call.1} parent=1 // pred_region
      %s53 = ssub.s32 96, 96
      %54 = vsyncadd [#allocation10], %s53
      %s56 = sshll.u32 [#allocation9], 4
      %s57 = int_to_ptr.vmem [resolvable:$true] %s56
      %59 = dma.hbm_to_vmem [thread:$0]  %s3, 96, %s57, [#allocation10]
    $region17: #{tpu_custom_call.1} parent=1 // pred_fallthru
      _
    // Predicated region
    $region18: #{tpu_custom_call.1} parent=1 // pred_check
      _
    $region19: #{tpu_custom_call.1} parent=1 // pred_check_branch
      %61 = sbr.rel (0) target = $region21
    $region20: #{tpu_custom_call.1} parent=1 // pred_region
      _
    $region21: #{tpu_custom_call.1} parent=1 // pred_fallthru
      _
    // Predicated region
    $region22: #{tpu_custom_call.1} parent=1 // pred_check
      _
    $region23: #{tpu_custom_call.1} parent=1 // pred_check_branch
      %63 = sbr.rel (0) target = $region25
    $region24: #{tpu_custom_call.1} parent=1 // pred_region
      %64 = dma.done [#allocation4], 512
    $region25: #{tpu_custom_call.1} parent=1 // pred_fallthru
      _
    // Predicated region
    $region26: #{tpu_custom_call.1} parent=1 // pred_check
      _
    $region27: #{tpu_custom_call.1} parent=1 // pred_check_branch
      %66 = sbr.rel (0) target = $region29
    $region28: #{tpu_custom_call.1} parent=1 // pred_region
      %67 = dma.done [#allocation7], 6144
    $region29: #{tpu_custom_call.1} parent=1 // pred_fallthru
      _
    // Predicated region
    $region30: #{tpu_custom_call.1} parent=1 // pred_check
      _
    $region31: #{tpu_custom_call.1} parent=1 // pred_check_branch
      %69 = sbr.rel (0) target = $region33
    $region32: #{tpu_custom_call.1} parent=1 // pred_region
      %70 = dma.done [#allocation7], 12288
    $region33: #{tpu_custom_call.1} parent=1 // pred_fallthru
      _
    // Predicated region
    $region34: #{tpu_custom_call.1} parent=1 // pred_check
      _
    $region35: #{tpu_custom_call.1} parent=1 // pred_check_branch
      %72 = sbr.rel (0) target = $region37
    $region36: #{tpu_custom_call.1} parent=1 // pred_region
      %73 = dma.done [#allocation10], 96
    $region37: #{tpu_custom_call.1} parent=1 // pred_fallthru
      _
    %v75 = vld [vmem:[#allocation3] sm:$0xf]
    %v76 = vld [vmem:[#allocation3 + $0x4] sm:$0xf]
    %v77 = vld [vmem:[#allocation3 + $0x8] sm:$0xf]
    %v78 = vld [vmem:[#allocation3 + $0xc] sm:$0xf]
    %v79 = vld [vmem:[#allocation3 + $0x10] sm:$0xf]
    %v80 = vld [vmem:[#allocation3 + $0x14] sm:$0xf]
    %v81 = vld [vmem:[#allocation3 + $0x18] sm:$0xf]
    %v82 = vld [vmem:[#allocation3 + $0x1c] sm:$0xf]
    %v83 = vld [vmem:[#allocation6] sm:$0xff]
    %v84 = vld [vmem:[#allocation6 + $0x8] sm:$0xff]
    %v85 = vld [vmem:[#allocation6 + $0x10] sm:$0xff]
    %v86 = vld [vmem:[#allocation6 + $0x18] sm:$0xff]
    %v87 = vld [vmem:[#allocation6 + $0x20] sm:$0xff]
    %v88 = vld [vmem:[#allocation6 + $0x28] sm:$0xff]
    %v89 = vld [vmem:[#allocation6 + $0x30] sm:$0xff]
    %v90 = vld [vmem:[#allocation6 + $0x38] sm:$0xff]
    %v91 = vld [vmem:[#allocation6 + $0x40] sm:$0xff]
    %v92 = vld [vmem:[#allocation6 + $0x48] sm:$0xff]
    %v93 = vld [vmem:[#allocation6 + $0x50] sm:$0xff]
    %v94 = vld [vmem:[#allocation6 + $0x58] sm:$0xff]
    %v95 = vld [vmem:[#allocation6 + $0x60] sm:$0xff]
    %v96 = vld [vmem:[#allocation6 + $0x68] sm:$0xff]
    %v97 = vld [vmem:[#allocation6 + $0x70] sm:$0xff]
    %v98 = vld [vmem:[#allocation6 + $0x78] sm:$0xff]
    %v99 = vld [vmem:[#allocation6 + $0x80] sm:$0xff]
    %v100 = vld [vmem:[#allocation6 + $0x88] sm:$0xff]
    %v101 = vld [vmem:[#allocation6 + $0x90] sm:$0xff]
    %v102 = vld [vmem:[#allocation6 + $0x98] sm:$0xff]
    %v103 = vld [vmem:[#allocation6 + $0xa0] sm:$0xff]
    %v104 = vld [vmem:[#allocation6 + $0xa8] sm:$0xff]
    %v105 = vld [vmem:[#allocation6 + $0xb0] sm:$0xff]
    %v106 = vld [vmem:[#allocation6 + $0xb8] sm:$0xff]
    %v107 = vld [vmem:[#allocation6 + $0xc0] sm:$0xff]
    %v108 = vld [vmem:[#allocation6 + $0xc8] sm:$0xff]
    %v109 = vld [vmem:[#allocation6 + $0xd0] sm:$0xff]
    %v110 = vld [vmem:[#allocation6 + $0xd8] sm:$0xff]
    %v111 = vld [vmem:[#allocation6 + $0xe0] sm:$0xff]
    %v112 = vld [vmem:[#allocation6 + $0xe8] sm:$0xff]
    %v113 = vld [vmem:[#allocation6 + $0xf0] sm:$0xff]
    %v114 = vld [vmem:[#allocation6 + $0xf8] sm:$0xff]
    %v115 = vld [vmem:[#allocation6 + $0x100] sm:$0xff]
    %v116 = vld [vmem:[#allocation6 + $0x108] sm:$0xff]
    %v117 = vld [vmem:[#allocation6 + $0x110] sm:$0xff]
    %v118 = vld [vmem:[#allocation6 + $0x118] sm:$0xff]
    %v119 = vld [vmem:[#allocation6 + $0x120] sm:$0xff]
    %v120 = vld [vmem:[#allocation6 + $0x128] sm:$0xff]
    %v121 = vld [vmem:[#allocation6 + $0x130] sm:$0xff]
    %v122 = vld [vmem:[#allocation6 + $0x138] sm:$0xff]
    %v123 = vld [vmem:[#allocation6 + $0x140] sm:$0xff]
    %v124 = vld [vmem:[#allocation6 + $0x148] sm:$0xff]
    %v125 = vld [vmem:[#allocation6 + $0x150] sm:$0xff]
    %v126 = vld [vmem:[#allocation6 + $0x158] sm:$0xff]
    %v127 = vld [vmem:[#allocation6 + $0x160] sm:$0xff]
    %v128 = vld [vmem:[#allocation6 + $0x168] sm:$0xff]
    %v129 = vld [vmem:[#allocation6 + $0x170] sm:$0xff]
    %v130 = vld [vmem:[#allocation6 + $0x178] sm:$0xff]
    %v139 = vunpack.c.l.b16 %v75
    %v140 = vunpack.c.l.b16 %v76
    %v141 = vunpack.c.l.b16 %v77
    %v142 = vunpack.c.l.b16 %v78
    %v143 = vunpack.c.l.b16 %v79
    %v144 = vunpack.c.l.b16 %v80
    %v145 = vunpack.c.l.b16 %v81
    %v146 = vunpack.c.l.b16 %v82
    %v147 = vpack.c.b16 %v140, %v139
    %v148 = vpack.c.b16 %v142, %v141
    %v149 = vpack.c.b16 %v144, %v143
    %v150 = vpack.c.b16 %v146, %v145
    %v203 = vunpack.c.l.b16 %v83
    %v204 = vunpack.c.h.b16 %v83
    %v205 = vunpack.c.l.b16 %v84
    %v206 = vunpack.c.h.b16 %v84
    %v207 = vunpack.c.l.b16 %v85
    %v208 = vunpack.c.h.b16 %v85
    %v209 = vunpack.c.l.b16 %v86
    %v210 = vunpack.c.h.b16 %v86
    %v211 = vunpack.c.l.b16 %v87
    %v212 = vunpack.c.h.b16 %v87
    %v213 = vunpack.c.l.b16 %v88
    %v214 = vunpack.c.h.b16 %v88
    %v215 = vunpack.c.l.b16 %v89
    %v216 = vunpack.c.h.b16 %v89
    %v217 = vunpack.c.l.b16 %v90
    %v218 = vunpack.c.h.b16 %v90
    %v219 = vunpack.c.l.b16 %v91
    %v220 = vunpack.c.h.b16 %v91
    %v221 = vunpack.c.l.b16 %v92
    %v222 = vunpack.c.h.b16 %v92
    %v223 = vunpack.c.l.b16 %v93
    %v224 = vunpack.c.h.b16 %v93
    %v225 = vunpack.c.l.b16 %v94
    %v226 = vunpack.c.h.b16 %v94
    %v227 = vunpack.c.l.b16 %v95
    %v228 = vunpack.c.h.b16 %v95
    %v229 = vunpack.c.l.b16 %v96
    %v230 = vunpack.c.h.b16 %v96
    %v231 = vunpack.c.l.b16 %v97
    %v232 = vunpack.c.h.b16 %v97
    %v233 = vunpack.c.l.b16 %v98
    %v234 = vunpack.c.h.b16 %v98
    %v235 = vunpack.c.l.b16 %v99
    %v236 = vunpack.c.h.b16 %v99
    %v237 = vunpack.c.l.b16 %v100
    %v238 = vunpack.c.h.b16 %v100
    %v239 = vunpack.c.l.b16 %v101
    %v240 = vunpack.c.h.b16 %v101
    %v241 = vunpack.c.l.b16 %v102
    %v242 = vunpack.c.h.b16 %v102
    %v243 = vunpack.c.l.b16 %v103
    %v244 = vunpack.c.h.b16 %v103
    %v245 = vunpack.c.l.b16 %v104
    %v246 = vunpack.c.h.b16 %v104
    %v247 = vunpack.c.l.b16 %v105
    %v248 = vunpack.c.h.b16 %v105
    %v249 = vunpack.c.l.b16 %v106
    %v250 = vunpack.c.h.b16 %v106
    %v251 = vunpack.c.l.b16 %v107
    %v252 = vunpack.c.h.b16 %v107
    %v253 = vunpack.c.l.b16 %v108
    %v254 = vunpack.c.h.b16 %v108
    %v255 = vunpack.c.l.b16 %v109
    %v256 = vunpack.c.h.b16 %v109
    %v257 = vunpack.c.l.b16 %v110
    %v258 = vunpack.c.h.b16 %v110
    %v259 = vunpack.c.l.b16 %v111
    %v260 = vunpack.c.h.b16 %v111
    %v261 = vunpack.c.l.b16 %v112
    %v262 = vunpack.c.h.b16 %v112
    %v263 = vunpack.c.l.b16 %v113
    %v264 = vunpack.c.h.b16 %v113
    %v265 = vunpack.c.l.b16 %v114
    %v266 = vunpack.c.h.b16 %v114
    %v267 = vunpack.c.l.b16 %v115
    %v268 = vunpack.c.h.b16 %v115
    %v269 = vunpack.c.l.b16 %v116
    %v270 = vunpack.c.h.b16 %v116
    %v271 = vunpack.c.l.b16 %v117
    %v272 = vunpack.c.h.b16 %v117
    %v273 = vunpack.c.l.b16 %v118
    %v274 = vunpack.c.h.b16 %v118
    %v275 = vunpack.c.l.b16 %v119
    %v276 = vunpack.c.h.b16 %v119
    %v277 = vunpack.c.l.b16 %v120
    %v278 = vunpack.c.h.b16 %v120
    %v279 = vunpack.c.l.b16 %v121
    %v280 = vunpack.c.h.b16 %v121
    %v281 = vunpack.c.l.b16 %v122
    %v282 = vunpack.c.h.b16 %v122
    %v283 = vunpack.c.l.b16 %v123
    %v284 = vunpack.c.h.b16 %v123
    %v285 = vunpack.c.l.b16 %v124
    %v286 = vunpack.c.h.b16 %v124
    %v287 = vunpack.c.l.b16 %v125
    %v288 = vunpack.c.h.b16 %v125
    %v289 = vunpack.c.l.b16 %v126
    %v290 = vunpack.c.h.b16 %v126
    %v291 = vunpack.c.l.b16 %v127
    %v292 = vunpack.c.h.b16 %v127
    %v293 = vunpack.c.l.b16 %v128
    %v294 = vunpack.c.h.b16 %v128
    %v295 = vunpack.c.l.b16 %v129
    %v296 = vunpack.c.h.b16 %v129
    %v297 = vunpack.c.l.b16 %v130
    %v298 = vunpack.c.h.b16 %v130
    %v299 = vpack.c.b16 %v209, %v203
    %v300 = vpack.c.b16 %v210, %v204
    %v301 = vpack.c.b16 %v211, %v205
    %v302 = vpack.c.b16 %v212, %v206
    %v303 = vpack.c.b16 %v213, %v207
    %v304 = vpack.c.b16 %v214, %v208
    %v305 = vpack.c.b16 %v221, %v215
    %v306 = vpack.c.b16 %v222, %v216
    %v307 = vpack.c.b16 %v223, %v217
    %v308 = vpack.c.b16 %v224, %v218
    %v309 = vpack.c.b16 %v225, %v219
    %v310 = vpack.c.b16 %v226, %v220
    %v311 = vpack.c.b16 %v233, %v227
    %v312 = vpack.c.b16 %v234, %v228
    %v313 = vpack.c.b16 %v235, %v229
    %v314 = vpack.c.b16 %v236, %v230
    %v315 = vpack.c.b16 %v237, %v231
    %v316 = vpack.c.b16 %v238, %v232
    %v317 = vpack.c.b16 %v245, %v239
    %v318 = vpack.c.b16 %v246, %v240
    %v319 = vpack.c.b16 %v247, %v241
    %v320 = vpack.c.b16 %v248, %v242
    %v321 = vpack.c.b16 %v249, %v243
    %v322 = vpack.c.b16 %v250, %v244
    %v323 = vpack.c.b16 %v257, %v251
    %v324 = vpack.c.b16 %v258, %v252
    %v325 = vpack.c.b16 %v259, %v253
    %v326 = vpack.c.b16 %v260, %v254
    %v327 = vpack.c.b16 %v261, %v255
    %v328 = vpack.c.b16 %v262, %v256
    %v329 = vpack.c.b16 %v269, %v263
    %v330 = vpack.c.b16 %v270, %v264
    %v331 = vpack.c.b16 %v271, %v265
    %v332 = vpack.c.b16 %v272, %v266
    %v333 = vpack.c.b16 %v273, %v267
    %v334 = vpack.c.b16 %v274, %v268
    %v335 = vpack.c.b16 %v281, %v275
    %v336 = vpack.c.b16 %v282, %v276
    %v337 = vpack.c.b16 %v283, %v277
    %v338 = vpack.c.b16 %v284, %v278
    %v339 = vpack.c.b16 %v285, %v279
    %v340 = vpack.c.b16 %v286, %v280
    %v341 = vpack.c.b16 %v293, %v287
    %v342 = vpack.c.b16 %v294, %v288
    %v343 = vpack.c.b16 %v295, %v289
    %v344 = vpack.c.b16 %v296, %v290
    %v345 = vpack.c.b16 %v297, %v291
    %v346 = vpack.c.b16 %v298, %v292
    %395 = vmatprep.subr.bf16.mxu0 %v342
    %396 = vmatpush1.bf16.msra.mxu0 %v341
    %397 = vmatprep.subr.bf16.mxu0 %v336
    %398 = vmatpush1.bf16.msra.mxu0 %v335
    %399 = vmatprep.subr.bf16.mxu0 %v330
    %400 = vmatpush1.bf16.msra.mxu0 %v329
    %401 = vmatprep.subr.bf16.mxu0 %v324
    %402 = vmatpush1.bf16.msra.mxu0 %v323
    %403 = vmatprep.subr.bf16.mxu0 %v318
    %404 = vmatpush1.bf16.msra.mxu0 %v317
    %405 = vmatprep.subr.bf16.mxu0 %v312
    %406 = vmatpush1.bf16.msra.mxu0 %v311
    %407 = vmatprep.subr.bf16.mxu0 %v306
    %408 = vmatpush1.bf16.msra.mxu0 %v305
    %409 = vmatprep.subr.bf16.mxu0 %v300
    %410 = vmatpush1.bf16.msra.mxu0 %v299
    %411 = vmatprep.subr.bf16.mxu0 0
    %412 = vmatpush2.bf16.msra.mxu0 0
    %413 = vmatprep.subr.bf16.mxu0 0
    %414 = vmatpush2.bf16.msra.mxu0 0
    %415 = vmatprep.subr.bf16.mxu0 0
    %416 = vmatpush2.bf16.msra.mxu0 0
    %417 = vmatprep.subr.bf16.mxu0 0
    %418 = vmatpush2.bf16.msra.mxu0 0
    %419 = vmatprep.subr.bf16.mxu0 0
    %420 = vmatpush2.bf16.msra.mxu0 0
    %421 = vmatprep.subr.bf16.mxu0 0
    %422 = vmatpush2.bf16.msra.mxu0 0
    %423 = vmatprep.subr.bf16.mxu0 0
    %424 = vmatpush2.bf16.msra.mxu0 0
    %425 = vmatprep.subr.bf16.mxu0 0
    %426 = vmatpush2.bf16.msra.mxu0 0
    %427 = vmatprep.mubr.bf16.mxu0 0
    %428 = vmatmul.mubr.bf16.gmra.mxu0 %v147
    %v429 = vpop.f32.mrf.mxu0
    %v430 = vadd.f32 0.0, %v429
    %v431 = vpop.f32.mrf.mxu0
    %v432 = vadd.f32 0.0, %v431
    %v433 = vpop.f32.mrf.mxu0
    %v434 = vadd.f32 0.0, %v433
    %v435 = vpop.f32.mrf.mxu0
    %v436 = vadd.f32 0.0, %v435
    %437 = vmatprep.mubr.bf16.mxu0 0
    %438 = vmatmul.mubr.bf16.gmra.mxu0 %v148
    %v439 = vpop.f32.mrf.mxu0
    %v440 = vadd.f32 0.0, %v439
    %v441 = vpop.f32.mrf.mxu0
    %v442 = vadd.f32 0.0, %v441
    %v443 = vpop.f32.mrf.mxu0
    %v444 = vadd.f32 0.0, %v443
    %v445 = vpop.f32.mrf.mxu0
    %v446 = vadd.f32 0.0, %v445
    %447 = vmatprep.mubr.bf16.mxu0 0
    %448 = vmatmul.mubr.bf16.gmra.mxu0 %v149
    %v449 = vpop.f32.mrf.mxu0
    %v450 = vadd.f32 0.0, %v449
    %v451 = vpop.f32.mrf.mxu0
    %v452 = vadd.f32 0.0, %v451
    %v453 = vpop.f32.mrf.mxu0
    %v454 = vadd.f32 0.0, %v453
    %v455 = vpop.f32.mrf.mxu0
    %v456 = vadd.f32 0.0, %v455
    %457 = vmatprep.mubr.bf16.mxu0 0
    %458 = vmatmul.mubr.bf16.gmra.mxu0 %v150
    %v459 = vpop.f32.mrf.mxu0
    %v460 = vadd.f32 0.0, %v459
    %v461 = vpop.f32.mrf.mxu0
    %v462 = vadd.f32 0.0, %v461
    %v463 = vpop.f32.mrf.mxu0
    %v464 = vadd.f32 0.0, %v463
    %v465 = vpop.f32.mrf.mxu0
    %v466 = vadd.f32 0.0, %v465
    %467 = vdwg.mxu0
    %468 = vmatprep.subr.bf16.mxu0 %v344
    %469 = vmatpush1.bf16.msra.mxu0 %v343
    %470 = vmatprep.subr.bf16.mxu0 %v338
    %471 = vmatpush1.bf16.msra.mxu0 %v337
    %472 = vmatprep.subr.bf16.mxu0 %v332
    %473 = vmatpush1.bf16.msra.mxu0 %v331
    %474 = vmatprep.subr.bf16.mxu0 %v326
    %475 = vmatpush1.bf16.msra.mxu0 %v325
    %476 = vmatprep.subr.bf16.mxu0 %v320
    %477 = vmatpush1.bf16.msra.mxu0 %v319
    %478 = vmatprep.subr.bf16.mxu0 %v314
    %479 = vmatpush1.bf16.msra.mxu0 %v313
    %480 = vmatprep.subr.bf16.mxu0 %v308
    %481 = vmatpush1.bf16.msra.mxu0 %v307
    %482 = vmatprep.subr.bf16.mxu0 %v302
    %483 = vmatpush1.bf16.msra.mxu0 %v301
    %484 = vmatprep.subr.bf16.mxu0 0
    %485 = vmatpush2.bf16.msra.mxu0 0
    %486 = vmatprep.subr.bf16.mxu0 0
    %487 = vmatpush2.bf16.msra.mxu0 0
    %488 = vmatprep.subr.bf16.mxu0 0
    %489 = vmatpush2.bf16.msra.mxu0 0
    %490 = vmatprep.subr.bf16.mxu0 0
    %491 = vmatpush2.bf16.msra.mxu0 0
    %492 = vmatprep.subr.bf16.mxu0 0
    %493 = vmatpush2.bf16.msra.mxu0 0
    %494 = vmatprep.subr.bf16.mxu0 0
    %495 = vmatpush2.bf16.msra.mxu0 0
    %496 = vmatprep.subr.bf16.mxu0 0
    %497 = vmatpush2.bf16.msra.mxu0 0
    %498 = vmatprep.subr.bf16.mxu0 0
    %499 = vmatpush2.bf16.msra.mxu0 0
    %500 = vmatprep.mubr.bf16.mxu0 0
    %501 = vmatmul.mubr.bf16.gmra.mxu0 %v147
    %v502 = vpop.f32.mrf.mxu0
    %v503 = vadd.f32 0.0, %v502
    %v504 = vpop.f32.mrf.mxu0
    %v505 = vadd.f32 0.0, %v504
    %v506 = vpop.f32.mrf.mxu0
    %v507 = vadd.f32 0.0, %v506
    %v508 = vpop.f32.mrf.mxu0
    %v509 = vadd.f32 0.0, %v508
    %510 = vmatprep.mubr.bf16.mxu0 0
    %511 = vmatmul.mubr.bf16.gmra.mxu0 %v148
    %v512 = vpop.f32.mrf.mxu0
    %v513 = vadd.f32 0.0, %v512
    %v514 = vpop.f32.mrf.mxu0
    %v515 = vadd.f32 0.0, %v514
    %v516 = vpop.f32.mrf.mxu0
    %v517 = vadd.f32 0.0, %v516
    %v518 = vpop.f32.mrf.mxu0
    %v519 = vadd.f32 0.0, %v518
    %520 = vmatprep.mubr.bf16.mxu0 0
    %521 = vmatmul.mubr.bf16.gmra.mxu0 %v149
    %v522 = vpop.f32.mrf.mxu0
    %v523 = vadd.f32 0.0, %v522
    %v524 = vpop.f32.mrf.mxu0
    %v525 = vadd.f32 0.0, %v524
    %v526 = vpop.f32.mrf.mxu0
    %v527 = vadd.f32 0.0, %v526
    %v528 = vpop.f32.mrf.mxu0
    %v529 = vadd.f32 0.0, %v528
    %530 = vmatprep.mubr.bf16.mxu0 0
    %531 = vmatmul.mubr.bf16.gmra.mxu0 %v150
    %v532 = vpop.f32.mrf.mxu0
    %v533 = vadd.f32 0.0, %v532
    %v534 = vpop.f32.mrf.mxu0
    %v535 = vadd.f32 0.0, %v534
    %v536 = vpop.f32.mrf.mxu0
    %v537 = vadd.f32 0.0, %v536
    %v538 = vpop.f32.mrf.mxu0
    %v539 = vadd.f32 0.0, %v538
    %540 = vdwg.mxu0
    %541 = vmatprep.subr.bf16.mxu0 %v346
    %542 = vmatpush1.bf16.msra.mxu0 %v345
    %543 = vmatprep.subr.bf16.mxu0 %v340
    %544 = vmatpush1.bf16.msra.mxu0 %v339
    %545 = vmatprep.subr.bf16.mxu0 %v334
    %546 = vmatpush1.bf16.msra.mxu0 %v333
    %547 = vmatprep.subr.bf16.mxu0 %v328
    %548 = vmatpush1.bf16.msra.mxu0 %v327
    %549 = vmatprep.subr.bf16.mxu0 %v322
    %550 = vmatpush1.bf16.msra.mxu0 %v321
    %551 = vmatprep.subr.bf16.mxu0 %v316
    %552 = vmatpush1.bf16.msra.mxu0 %v315
    %553 = vmatprep.subr.bf16.mxu0 %v310
    %554 = vmatpush1.bf16.msra.mxu0 %v309
    %555 = vmatprep.subr.bf16.mxu0 %v304
    %556 = vmatpush1.bf16.msra.mxu0 %v303
    %557 = vmatprep.subr.bf16.mxu0 0
    %558 = vmatpush2.bf16.msra.mxu0 0
    %559 = vmatprep.subr.bf16.mxu0 0
    %560 = vmatpush2.bf16.msra.mxu0 0
    %561 = vmatprep.subr.bf16.mxu0 0
    %562 = vmatpush2.bf16.msra.mxu0 0
    %563 = vmatprep.subr.bf16.mxu0 0
    %564 = vmatpush2.bf16.msra.mxu0 0
    %565 = vmatprep.subr.bf16.mxu0 0
    %566 = vmatpush2.bf16.msra.mxu0 0
    %567 = vmatprep.subr.bf16.mxu0 0
    %568 = vmatpush2.bf16.msra.mxu0 0
    %569 = vmatprep.subr.bf16.mxu0 0
    %570 = vmatpush2.bf16.msra.mxu0 0
    %571 = vmatprep.subr.bf16.mxu0 0
    %572 = vmatpush2.bf16.msra.mxu0 0
    %573 = vmatprep.mubr.bf16.mxu0 0
    %574 = vmatmul.mubr.bf16.gmra.mxu0 %v147
    %v575 = vpop.f32.mrf.mxu0
    %v576 = vadd.f32 0.0, %v575
    %v577 = vpop.f32.mrf.mxu0
    %v578 = vadd.f32 0.0, %v577
    %v579 = vpop.f32.mrf.mxu0
    %v580 = vadd.f32 0.0, %v579
    %v581 = vpop.f32.mrf.mxu0
    %v582 = vadd.f32 0.0, %v581
    %583 = vmatprep.mubr.bf16.mxu0 0
    %584 = vmatmul.mubr.bf16.gmra.mxu0 %v148
    %v585 = vpop.f32.mrf.mxu0
    %v586 = vadd.f32 0.0, %v585
    %v587 = vpop.f32.mrf.mxu0
    %v588 = vadd.f32 0.0, %v587
    %v589 = vpop.f32.mrf.mxu0
    %v590 = vadd.f32 0.0, %v589
    %v591 = vpop.f32.mrf.mxu0
    %v592 = vadd.f32 0.0, %v591
    %593 = vmatprep.mubr.bf16.mxu0 0
    %594 = vmatmul.mubr.bf16.gmra.mxu0 %v149
    %v595 = vpop.f32.mrf.mxu0
    %v596 = vadd.f32 0.0, %v595
    %v597 = vpop.f32.mrf.mxu0
    %v598 = vadd.f32 0.0, %v597
    %v599 = vpop.f32.mrf.mxu0
    %v600 = vadd.f32 0.0, %v599
    %v601 = vpop.f32.mrf.mxu0
    %v602 = vadd.f32 0.0, %v601
    %603 = vmatprep.mubr.bf16.mxu0 0
    %604 = vmatmul.mubr.bf16.gmra.mxu0 %v150
    %v605 = vpop.f32.mrf.mxu0
    %v606 = vadd.f32 0.0, %v605
    %v607 = vpop.f32.mrf.mxu0
    %v608 = vadd.f32 0.0, %v607
    %v609 = vpop.f32.mrf.mxu0
    %v610 = vadd.f32 0.0, %v609
    %v611 = vpop.f32.mrf.mxu0
    %v612 = vadd.f32 0.0, %v611
    %613 = vdwg.mxu0
    %v614 = vld [vmem:[#allocation9] sm:$0x3f]
    %v616 = vlaneseq
    %v617 = vshrl.u32 %v616, 7
    %v618 = vsub.s32 0, %v617
    %v619 = vrot.slane %v614, %v618
    %v620 = vlaneseq
    %v621 = vshrl.u32 %v620, 7
    %v622 = vsub.s32 1, %v621
    %v623 = vrot.slane %v614, %v622
    %v624 = vlaneseq
    %v625 = vshrl.u32 %v624, 7
    %v626 = vsub.s32 2, %v625
    %v627 = vrot.slane %v614, %v626
    %v628 = vlaneseq
    %v629 = vshrl.u32 %v628, 7
    %v630 = vsub.s32 3, %v629
    %v631 = vrot.slane %v614, %v630
    %v632 = vlaneseq
    %v633 = vshrl.u32 %v632, 7
    %v634 = vsub.s32 4, %v633
    %v635 = vrot.slane %v614, %v634
    %v636 = vlaneseq
    %v637 = vshrl.u32 %v636, 7
    %v638 = vsub.s32 5, %v637
    %v639 = vrot.slane %v614, %v638
    %v646 = vadd.f32 %v430, %v619
    %v647 = vadd.f32 %v432, %v623
    %v648 = vadd.f32 %v503, %v627
    %v649 = vadd.f32 %v505, %v631
    %v650 = vadd.f32 %v576, %v635
    %v651 = vadd.f32 %v578, %v639
    %v652 = vadd.f32 %v434, %v619
    %v653 = vadd.f32 %v436, %v623
    %v654 = vadd.f32 %v507, %v627
    %v655 = vadd.f32 %v509, %v631
    %v656 = vadd.f32 %v580, %v635
    %v657 = vadd.f32 %v582, %v639
    %v658 = vadd.f32 %v440, %v619
    %v659 = vadd.f32 %v442, %v623
    %v660 = vadd.f32 %v513, %v627
    %v661 = vadd.f32 %v515, %v631
    %v662 = vadd.f32 %v586, %v635
    %v663 = vadd.f32 %v588, %v639
    %v664 = vadd.f32 %v444, %v619
    %v665 = vadd.f32 %v446, %v623
    %v666 = vadd.f32 %v517, %v627
    %v667 = vadd.f32 %v519, %v631
    %v668 = vadd.f32 %v590, %v635
    %v669 = vadd.f32 %v592, %v639
    %v670 = vadd.f32 %v450, %v619
    %v671 = vadd.f32 %v452, %v623
    %v672 = vadd.f32 %v523, %v627
    %v673 = vadd.f32 %v525, %v631
    %v674 = vadd.f32 %v596, %v635
    %v675 = vadd.f32 %v598, %v639
    %v676 = vadd.f32 %v454, %v619
    %v677 = vadd.f32 %v456, %v623
    %v678 = vadd.f32 %v527, %v627
    %v679 = vadd.f32 %v529, %v631
    %v680 = vadd.f32 %v600, %v635
    %v681 = vadd.f32 %v602, %v639
    %v682 = vadd.f32 %v460, %v619
    %v683 = vadd.f32 %v462, %v623
    %v684 = vadd.f32 %v533, %v627
    %v685 = vadd.f32 %v535, %v631
    %v686 = vadd.f32 %v606, %v635
    %v687 = vadd.f32 %v608, %v639
    %v688 = vadd.f32 %v464, %v619
    %v689 = vadd.f32 %v466, %v623
    %v690 = vadd.f32 %v537, %v627
    %v691 = vadd.f32 %v539, %v631
    %v692 = vadd.f32 %v610, %v635
    %v693 = vadd.f32 %v612, %v639
    %694 = vst [vmem:[#allocation2] sm:$0xff] %v646
    %695 = vst [vmem:[#allocation2 + $0x8] sm:$0xff] %v647
    %696 = vst [vmem:[#allocation2 + $0x10] sm:$0xff] %v648
    %697 = vst [vmem:[#allocation2 + $0x18] sm:$0xff] %v649
    %698 = vst [vmem:[#allocation2 + $0x20] sm:$0xff] %v650
    %699 = vst [vmem:[#allocation2 + $0x28] sm:$0xff] %v651
    %700 = vst [vmem:[#allocation2 + $0x30] sm:$0xff] %v652
    %701 = vst [vmem:[#allocation2 + $0x38] sm:$0xff] %v653
    %702 = vst [vmem:[#allocation2 + $0x40] sm:$0xff] %v654
    %703 = vst [vmem:[#allocation2 + $0x48] sm:$0xff] %v655
    %704 = vst [vmem:[#allocation2 + $0x50] sm:$0xff] %v656
    %705 = vst [vmem:[#allocation2 + $0x58] sm:$0xff] %v657
    %706 = vst [vmem:[#allocation2 + $0x60] sm:$0xff] %v658
    %707 = vst [vmem:[#allocation2 + $0x68] sm:$0xff] %v659
    %708 = vst [vmem:[#allocation2 + $0x70] sm:$0xff] %v660
    %709 = vst [vmem:[#allocation2 + $0x78] sm:$0xff] %v661
    %710 = vst [vmem:[#allocation2 + $0x80] sm:$0xff] %v662
    %711 = vst [vmem:[#allocation2 + $0x88] sm:$0xff] %v663
    %712 = vst [vmem:[#allocation2 + $0x90] sm:$0xff] %v664
    %713 = vst [vmem:[#allocation2 + $0x98] sm:$0xff] %v665
    %714 = vst [vmem:[#allocation2 + $0xa0] sm:$0xff] %v666
    %715 = vst [vmem:[#allocation2 + $0xa8] sm:$0xff] %v667
    %716 = vst [vmem:[#allocation2 + $0xb0] sm:$0xff] %v668
    %717 = vst [vmem:[#allocation2 + $0xb8] sm:$0xff] %v669
    %718 = vst [vmem:[#allocation2 + $0xc0] sm:$0xff] %v670
    %719 = vst [vmem:[#allocation2 + $0xc8] sm:$0xff] %v671
    %720 = vst [vmem:[#allocation2 + $0xd0] sm:$0xff] %v672
    %721 = vst [vmem:[#allocation2 + $0xd8] sm:$0xff] %v673
    %722 = vst [vmem:[#allocation2 + $0xe0] sm:$0xff] %v674
    %723 = vst [vmem:[#allocation2 + $0xe8] sm:$0xff] %v675
    %724 = vst [vmem:[#allocation2 + $0xf0] sm:$0xff] %v676
    %725 = vst [vmem:[#allocation2 + $0xf8] sm:$0xff] %v677
    %726 = vst [vmem:[#allocation2 + $0x100] sm:$0xff] %v678
    %727 = vst [vmem:[#allocation2 + $0x108] sm:$0xff] %v679
    %728 = vst [vmem:[#allocation2 + $0x110] sm:$0xff] %v680
    %729 = vst [vmem:[#allocation2 + $0x118] sm:$0xff] %v681
    %730 = vst [vmem:[#allocation2 + $0x120] sm:$0xff] %v682
    %731 = vst [vmem:[#allocation2 + $0x128] sm:$0xff] %v683
    %732 = vst [vmem:[#allocation2 + $0x130] sm:$0xff] %v684
    %733 = vst [vmem:[#allocation2 + $0x138] sm:$0xff] %v685
    %734 = vst [vmem:[#allocation2 + $0x140] sm:$0xff] %v686
    %735 = vst [vmem:[#allocation2 + $0x148] sm:$0xff] %v687
    %736 = vst [vmem:[#allocation2 + $0x150] sm:$0xff] %v688
    %737 = vst [vmem:[#allocation2 + $0x158] sm:$0xff] %v689
    %738 = vst [vmem:[#allocation2 + $0x160] sm:$0xff] %v690
    %739 = vst [vmem:[#allocation2 + $0x168] sm:$0xff] %v691
    %740 = vst [vmem:[#allocation2 + $0x170] sm:$0xff] %v692
    %741 = vst [vmem:[#allocation2 + $0x178] sm:$0xff] %v693
    %v742 = vld [vmem:[#allocation8] sm:$0xff]
    %v743 = vld [vmem:[#allocation8 + $0x8] sm:$0xff]
    %v744 = vld [vmem:[#allocation8 + $0x10] sm:$0xff]
    %v745 = vld [vmem:[#allocation8 + $0x18] sm:$0xff]
    %v746 = vld [vmem:[#allocation8 + $0x20] sm:$0xff]
    %v747 = vld [vmem:[#allocation8 + $0x28] sm:$0xff]
    %v748 = vld [vmem:[#allocation8 + $0x30] sm:$0xff]
    %v749 = vld [vmem:[#allocation8 + $0x38] sm:$0xff]
    %v750 = vld [vmem:[#allocation8 + $0x40] sm:$0xff]
    %v751 = vld [vmem:[#allocation8 + $0x48] sm:$0xff]
    %v752 = vld [vmem:[#allocation8 + $0x50] sm:$0xff]
    %v753 = vld [vmem:[#allocation8 + $0x58] sm:$0xff]
    %v754 = vld [vmem:[#allocation8 + $0x60] sm:$0xff]
    %v755 = vld [vmem:[#allocation8 + $0x68] sm:$0xff]
    %v756 = vld [vmem:[#allocation8 + $0x70] sm:$0xff]
    %v757 = vld [vmem:[#allocation8 + $0x78] sm:$0xff]
    %v758 = vld [vmem:[#allocation8 + $0x80] sm:$0xff]
    %v759 = vld [vmem:[#allocation8 + $0x88] sm:$0xff]
    %v760 = vld [vmem:[#allocation8 + $0x90] sm:$0xff]
    %v761 = vld [vmem:[#allocation8 + $0x98] sm:$0xff]
    %v762 = vld [vmem:[#allocation8 + $0xa0] sm:$0xff]
    %v763 = vld [vmem:[#allocation8 + $0xa8] sm:$0xff]
    %v764 = vld [vmem:[#allocation8 + $0xb0] sm:$0xff]
    %v765 = vld [vmem:[#allocation8 + $0xb8] sm:$0xff]
    %v766 = vld [vmem:[#allocation8 + $0xc0] sm:$0xff]
    %v767 = vld [vmem:[#allocation8 + $0xc8] sm:$0xff]
    %v768 = vld [vmem:[#allocation8 + $0xd0] sm:$0xff]
    %v769 = vld [vmem:[#allocation8 + $0xd8] sm:$0xff]
    %v770 = vld [vmem:[#allocation8 + $0xe0] sm:$0xff]
    %v771 = vld [vmem:[#allocation8 + $0xe8] sm:$0xff]
    %v772 = vld [vmem:[#allocation8 + $0xf0] sm:$0xff]
    %v773 = vld [vmem:[#allocation8 + $0xf8] sm:$0xff]
    %v774 = vld [vmem:[#allocation8 + $0x100] sm:$0xff]
    %v775 = vld [vmem:[#allocation8 + $0x108] sm:$0xff]
    %v776 = vld [vmem:[#allocation8 + $0x110] sm:$0xff]
    %v777 = vld [vmem:[#allocation8 + $0x118] sm:$0xff]
    %v778 = vld [vmem:[#allocation8 + $0x120] sm:$0xff]
    %v779 = vld [vmem:[#allocation8 + $0x128] sm:$0xff]
    %v780 = vld [vmem:[#allocation8 + $0x130] sm:$0xff]
    %v781 = vld [vmem:[#allocation8 + $0x138] sm:$0xff]
    %v782 = vld [vmem:[#allocation8 + $0x140] sm:$0xff]
    %v783 = vld [vmem:[#allocation8 + $0x148] sm:$0xff]
    %v784 = vld [vmem:[#allocation8 + $0x150] sm:$0xff]
    %v785 = vld [vmem:[#allocation8 + $0x158] sm:$0xff]
    %v786 = vld [vmem:[#allocation8 + $0x160] sm:$0xff]
    %v787 = vld [vmem:[#allocation8 + $0x168] sm:$0xff]
    %v788 = vld [vmem:[#allocation8 + $0x170] sm:$0xff]
    %v789 = vld [vmem:[#allocation8 + $0x178] sm:$0xff]
    %v790 = vld [vmem:[#allocation8 + $0x180] sm:$0xff]
    %v791 = vld [vmem:[#allocation8 + $0x188] sm:$0xff]
    %v792 = vld [vmem:[#allocation8 + $0x190] sm:$0xff]
    %v793 = vld [vmem:[#allocation8 + $0x198] sm:$0xff]
    %v794 = vld [vmem:[#allocation8 + $0x1a0] sm:$0xff]
    %v795 = vld [vmem:[#allocation8 + $0x1a8] sm:$0xff]
    %v796 = vld [vmem:[#allocation8 + $0x1b0] sm:$0xff]
    %v797 = vld [vmem:[#allocation8 + $0x1b8] sm:$0xff]
    %v798 = vld [vmem:[#allocation8 + $0x1c0] sm:$0xff]
    %v799 = vld [vmem:[#allocation8 + $0x1c8] sm:$0xff]
    %v800 = vld [vmem:[#allocation8 + $0x1d0] sm:$0xff]
    %v801 = vld [vmem:[#allocation8 + $0x1d8] sm:$0xff]
    %v802 = vld [vmem:[#allocation8 + $0x1e0] sm:$0xff]
    %v803 = vld [vmem:[#allocation8 + $0x1e8] sm:$0xff]
    %v804 = vld [vmem:[#allocation8 + $0x1f0] sm:$0xff]
    %v805 = vld [vmem:[#allocation8 + $0x1f8] sm:$0xff]
    %v806 = vld [vmem:[#allocation8 + $0x200] sm:$0xff]
    %v807 = vld [vmem:[#allocation8 + $0x208] sm:$0xff]
    %v808 = vld [vmem:[#allocation8 + $0x210] sm:$0xff]
    %v809 = vld [vmem:[#allocation8 + $0x218] sm:$0xff]
    %v810 = vld [vmem:[#allocation8 + $0x220] sm:$0xff]
    %v811 = vld [vmem:[#allocation8 + $0x228] sm:$0xff]
    %v812 = vld [vmem:[#allocation8 + $0x230] sm:$0xff]
    %v813 = vld [vmem:[#allocation8 + $0x238] sm:$0xff]
    %v814 = vld [vmem:[#allocation8 + $0x240] sm:$0xff]
    %v815 = vld [vmem:[#allocation8 + $0x248] sm:$0xff]
    %v816 = vld [vmem:[#allocation8 + $0x250] sm:$0xff]
    %v817 = vld [vmem:[#allocation8 + $0x258] sm:$0xff]
    %v818 = vld [vmem:[#allocation8 + $0x260] sm:$0xff]
    %v819 = vld [vmem:[#allocation8 + $0x268] sm:$0xff]
    %v820 = vld [vmem:[#allocation8 + $0x270] sm:$0xff]
    %v821 = vld [vmem:[#allocation8 + $0x278] sm:$0xff]
    %v822 = vld [vmem:[#allocation8 + $0x280] sm:$0xff]
    %v823 = vld [vmem:[#allocation8 + $0x288] sm:$0xff]
    %v824 = vld [vmem:[#allocation8 + $0x290] sm:$0xff]
    %v825 = vld [vmem:[#allocation8 + $0x298] sm:$0xff]
    %v826 = vld [vmem:[#allocation8 + $0x2a0] sm:$0xff]
    %v827 = vld [vmem:[#allocation8 + $0x2a8] sm:$0xff]
    %v828 = vld [vmem:[#allocation8 + $0x2b0] sm:$0xff]
    %v829 = vld [vmem:[#allocation8 + $0x2b8] sm:$0xff]
    %v830 = vld [vmem:[#allocation8 + $0x2c0] sm:$0xff]
    %v831 = vld [vmem:[#allocation8 + $0x2c8] sm:$0xff]
    %v832 = vld [vmem:[#allocation8 + $0x2d0] sm:$0xff]
    %v833 = vld [vmem:[#allocation8 + $0x2d8] sm:$0xff]
    %v834 = vld [vmem:[#allocation8 + $0x2e0] sm:$0xff]
    %v835 = vld [vmem:[#allocation8 + $0x2e8] sm:$0xff]
    %v836 = vld [vmem:[#allocation8 + $0x2f0] sm:$0xff]
    %v837 = vld [vmem:[#allocation8 + $0x2f8] sm:$0xff]
    %v838 = vld [vmem:[%s4] sm:$0x3f]
    %v840 = vlaneseq
    %v841 = vshrl.u32 %v840, 7
    %v842 = vsub.s32 0, %v841
    %v843 = vrot.slane %v838, %v842
    %v844 = vlaneseq
    %v845 = vshrl.u32 %v844, 7
    %v846 = vsub.s32 1, %v845
    %v847 = vrot.slane %v838, %v846
    %v848 = vlaneseq
    %v849 = vshrl.u32 %v848, 7
    %v850 = vsub.s32 2, %v849
    %v851 = vrot.slane %v838, %v850
    %v852 = vlaneseq
    %v853 = vshrl.u32 %v852, 7
    %v854 = vsub.s32 3, %v853
    %v855 = vrot.slane %v838, %v854
    %v856 = vlaneseq
    %v857 = vshrl.u32 %v856, 7
    %v858 = vsub.s32 4, %v857
    %v859 = vrot.slane %v838, %v858
    %v860 = vlaneseq
    %v861 = vshrl.u32 %v860, 7
    %v862 = vsub.s32 5, %v861
    %v863 = vrot.slane %v838, %v862
    %v870 = vpack.c.bf16 0.0, 0.0
    %v967 = vunpack.c.l.b16 %v742
    %v968 = vunpack.c.h.b16 %v742
    %v969 = vunpack.c.l.b16 %v743
    %v970 = vunpack.c.h.b16 %v743
    %v971 = vunpack.c.l.b16 %v744
    %v972 = vunpack.c.h.b16 %v744
    %v973 = vunpack.c.l.b16 %v745
    %v974 = vunpack.c.h.b16 %v745
    %v975 = vunpack.c.l.b16 %v746
    %v976 = vunpack.c.h.b16 %v746
    %v977 = vunpack.c.l.b16 %v747
    %v978 = vunpack.c.h.b16 %v747
    %v979 = vunpack.c.l.b16 %v748
    %v980 = vunpack.c.h.b16 %v748
    %v981 = vunpack.c.l.b16 %v749
    %v982 = vunpack.c.h.b16 %v749
    %v983 = vunpack.c.l.b16 %v750
    %v984 = vunpack.c.h.b16 %v750
    %v985 = vunpack.c.l.b16 %v751
    %v986 = vunpack.c.h.b16 %v751
    %v987 = vunpack.c.l.b16 %v752
    %v988 = vunpack.c.h.b16 %v752
    %v989 = vunpack.c.l.b16 %v753
    %v990 = vunpack.c.h.b16 %v753
    %v991 = vunpack.c.l.b16 %v754
    %v992 = vunpack.c.h.b16 %v754
    %v993 = vunpack.c.l.b16 %v755
    %v994 = vunpack.c.h.b16 %v755
    %v995 = vunpack.c.l.b16 %v756
    %v996 = vunpack.c.h.b16 %v756
    %v997 = vunpack.c.l.b16 %v757
    %v998 = vunpack.c.h.b16 %v757
    %v999 = vunpack.c.l.b16 %v758
    %v1000 = vunpack.c.h.b16 %v758
    %v1001 = vunpack.c.l.b16 %v759
    %v1002 = vunpack.c.h.b16 %v759
    %v1003 = vunpack.c.l.b16 %v760
    %v1004 = vunpack.c.h.b16 %v760
    %v1005 = vunpack.c.l.b16 %v761
    %v1006 = vunpack.c.h.b16 %v761
    %v1007 = vunpack.c.l.b16 %v762
    %v1008 = vunpack.c.h.b16 %v762
    %v1009 = vunpack.c.l.b16 %v763
    %v1010 = vunpack.c.h.b16 %v763
    %v1011 = vunpack.c.l.b16 %v764
    %v1012 = vunpack.c.h.b16 %v764
    %v1013 = vunpack.c.l.b16 %v765
    %v1014 = vunpack.c.h.b16 %v765
    %v1015 = vunpack.c.l.b16 %v766
    %v1016 = vunpack.c.h.b16 %v766
    %v1017 = vunpack.c.l.b16 %v767
    %v1018 = vunpack.c.h.b16 %v767
    %v1019 = vunpack.c.l.b16 %v768
    %v1020 = vunpack.c.h.b16 %v768
    %v1021 = vunpack.c.l.b16 %v769
    %v1022 = vunpack.c.h.b16 %v769
    %v1023 = vunpack.c.l.b16 %v770
    %v1024 = vunpack.c.h.b16 %v770
    %v1025 = vunpack.c.l.b16 %v771
    %v1026 = vunpack.c.h.b16 %v771
    %v1027 = vunpack.c.l.b16 %v772
    %v1028 = vunpack.c.h.b16 %v772
    %v1029 = vunpack.c.l.b16 %v773
    %v1030 = vunpack.c.h.b16 %v773
    %v1031 = vunpack.c.l.b16 %v774
    %v1032 = vunpack.c.h.b16 %v774
    %v1033 = vunpack.c.l.b16 %v775
    %v1034 = vunpack.c.h.b16 %v775
    %v1035 = vunpack.c.l.b16 %v776
    %v1036 = vunpack.c.h.b16 %v776
    %v1037 = vunpack.c.l.b16 %v777
    %v1038 = vunpack.c.h.b16 %v777
    %v1039 = vunpack.c.l.b16 %v778
    %v1040 = vunpack.c.h.b16 %v778
    %v1041 = vunpack.c.l.b16 %v779
    %v1042 = vunpack.c.h.b16 %v779
    %v1043 = vunpack.c.l.b16 %v780
    %v1044 = vunpack.c.h.b16 %v780
    %v1045 = vunpack.c.l.b16 %v781
    %v1046 = vunpack.c.h.b16 %v781
    %v1047 = vunpack.c.l.b16 %v782
    %v1048 = vunpack.c.h.b16 %v782
    %v1049 = vunpack.c.l.b16 %v783
    %v1050 = vunpack.c.h.b16 %v783
    %v1051 = vunpack.c.l.b16 %v784
    %v1052 = vunpack.c.h.b16 %v784
    %v1053 = vunpack.c.l.b16 %v785
    %v1054 = vunpack.c.h.b16 %v785
    %v1055 = vunpack.c.l.b16 %v786
    %v1056 = vunpack.c.h.b16 %v786
    %v1057 = vunpack.c.l.b16 %v787
    %v1058 = vunpack.c.h.b16 %v787
    %v1059 = vunpack.c.l.b16 %v788
    %v1060 = vunpack.c.h.b16 %v788
    %v1061 = vunpack.c.l.b16 %v789
    %v1062 = vunpack.c.h.b16 %v789
    %v1063 = vunpack.c.l.b16 %v790
    %v1064 = vunpack.c.h.b16 %v790
    %v1065 = vunpack.c.l.b16 %v791
    %v1066 = vunpack.c.h.b16 %v791
    %v1067 = vunpack.c.l.b16 %v792
    %v1068 = vunpack.c.h.b16 %v792
    %v1069 = vunpack.c.l.b16 %v793
    %v1070 = vunpack.c.h.b16 %v793
    %v1071 = vunpack.c.l.b16 %v794
    %v1072 = vunpack.c.h.b16 %v794
    %v1073 = vunpack.c.l.b16 %v795
    %v1074 = vunpack.c.h.b16 %v795
    %v1075 = vunpack.c.l.b16 %v796
    %v1076 = vunpack.c.h.b16 %v796
    %v1077 = vunpack.c.l.b16 %v797
    %v1078 = vunpack.c.h.b16 %v797
    %v1079 = vunpack.c.l.b16 %v798
    %v1080 = vunpack.c.h.b16 %v798
    %v1081 = vunpack.c.l.b16 %v799
    %v1082 = vunpack.c.h.b16 %v799
    %v1083 = vunpack.c.l.b16 %v800
    %v1084 = vunpack.c.h.b16 %v800
    %v1085 = vunpack.c.l.b16 %v801
    %v1086 = vunpack.c.h.b16 %v801
    %v1087 = vunpack.c.l.b16 %v802
    %v1088 = vunpack.c.h.b16 %v802
    %v1089 = vunpack.c.l.b16 %v803
    %v1090 = vunpack.c.h.b16 %v803
    %v1091 = vunpack.c.l.b16 %v804
    %v1092 = vunpack.c.h.b16 %v804
    %v1093 = vunpack.c.l.b16 %v805
    %v1094 = vunpack.c.h.b16 %v805
    %v1095 = vunpack.c.l.b16 %v806
    %v1096 = vunpack.c.h.b16 %v806
    %v1097 = vunpack.c.l.b16 %v807
    %v1098 = vunpack.c.h.b16 %v807
    %v1099 = vunpack.c.l.b16 %v808
    %v1100 = vunpack.c.h.b16 %v808
    %v1101 = vunpack.c.l.b16 %v809
    %v1102 = vunpack.c.h.b16 %v809
    %v1103 = vunpack.c.l.b16 %v810
    %v1104 = vunpack.c.h.b16 %v810
    %v1105 = vunpack.c.l.b16 %v811
    %v1106 = vunpack.c.h.b16 %v811
    %v1107 = vunpack.c.l.b16 %v812
    %v1108 = vunpack.c.h.b16 %v812
    %v1109 = vunpack.c.l.b16 %v813
    %v1110 = vunpack.c.h.b16 %v813
    %v1111 = vunpack.c.l.b16 %v814
    %v1112 = vunpack.c.h.b16 %v814
    %v1113 = vunpack.c.l.b16 %v815
    %v1114 = vunpack.c.h.b16 %v815
    %v1115 = vunpack.c.l.b16 %v816
    %v1116 = vunpack.c.h.b16 %v816
    %v1117 = vunpack.c.l.b16 %v817
    %v1118 = vunpack.c.h.b16 %v817
    %v1119 = vunpack.c.l.b16 %v818
    %v1120 = vunpack.c.h.b16 %v818
    %v1121 = vunpack.c.l.b16 %v819
    %v1122 = vunpack.c.h.b16 %v819
    %v1123 = vunpack.c.l.b16 %v820
    %v1124 = vunpack.c.h.b16 %v820
    %v1125 = vunpack.c.l.b16 %v821
    %v1126 = vunpack.c.h.b16 %v821
    %v1127 = vunpack.c.l.b16 %v822
    %v1128 = vunpack.c.h.b16 %v822
    %v1129 = vunpack.c.l.b16 %v823
    %v1130 = vunpack.c.h.b16 %v823
    %v1131 = vunpack.c.l.b16 %v824
    %v1132 = vunpack.c.h.b16 %v824
    %v1133 = vunpack.c.l.b16 %v825
    %v1134 = vunpack.c.h.b16 %v825
    %v1135 = vunpack.c.l.b16 %v826
    %v1136 = vunpack.c.h.b16 %v826
    %v1137 = vunpack.c.l.b16 %v827
    %v1138 = vunpack.c.h.b16 %v827
    %v1139 = vunpack.c.l.b16 %v828
    %v1140 = vunpack.c.h.b16 %v828
    %v1141 = vunpack.c.l.b16 %v829
    %v1142 = vunpack.c.h.b16 %v829
    %v1143 = vunpack.c.l.b16 %v830
    %v1144 = vunpack.c.h.b16 %v830
    %v1145 = vunpack.c.l.b16 %v831
    %v1146 = vunpack.c.h.b16 %v831
    %v1147 = vunpack.c.l.b16 %v832
    %v1148 = vunpack.c.h.b16 %v832
    %v1149 = vunpack.c.l.b16 %v833
    %v1150 = vunpack.c.h.b16 %v833
    %v1151 = vunpack.c.l.b16 %v834
    %v1152 = vunpack.c.h.b16 %v834
    %v1153 = vunpack.c.l.b16 %v835
    %v1154 = vunpack.c.h.b16 %v835
    %v1155 = vunpack.c.l.b16 %v836
    %v1156 = vunpack.c.h.b16 %v836
    %v1157 = vunpack.c.l.b16 %v837
    %v1158 = vunpack.c.h.b16 %v837
    %v1159 = vpack.c.b16 %v973, %v967
    %v1160 = vpack.c.b16 %v974, %v968
    %v1161 = vpack.c.b16 %v975, %v969
    %v1162 = vpack.c.b16 %v976, %v970
    %v1163 = vpack.c.b16 %v977, %v971
    %v1164 = vpack.c.b16 %v978, %v972
    %v1165 = vpack.c.b16 %v985, %v979
    %v1166 = vpack.c.b16 %v986, %v980
    %v1167 = vpack.c.b16 %v987, %v981
    %v1168 = vpack.c.b16 %v988, %v982
    %v1169 = vpack.c.b16 %v989, %v983
    %v1170 = vpack.c.b16 %v990, %v984
    %v1171 = vpack.c.b16 %v997, %v991
    %v1172 = vpack.c.b16 %v998, %v992
    %v1173 = vpack.c.b16 %v999, %v993
    %v1174 = vpack.c.b16 %v1000, %v994
    %v1175 = vpack.c.b16 %v1001, %v995
    %v1176 = vpack.c.b16 %v1002, %v996
    %v1177 = vpack.c.b16 %v1009, %v1003
    %v1178 = vpack.c.b16 %v1010, %v1004
    %v1179 = vpack.c.b16 %v1011, %v1005
    %v1180 = vpack.c.b16 %v1012, %v1006
    %v1181 = vpack.c.b16 %v1013, %v1007
    %v1182 = vpack.c.b16 %v1014, %v1008
    %v1183 = vpack.c.b16 %v1021, %v1015
    %v1184 = vpack.c.b16 %v1022, %v1016
    %v1185 = vpack.c.b16 %v1023, %v1017
    %v1186 = vpack.c.b16 %v1024, %v1018
    %v1187 = vpack.c.b16 %v1025, %v1019
    %v1188 = vpack.c.b16 %v1026, %v1020
    %v1189 = vpack.c.b16 %v1033, %v1027
    %v1190 = vpack.c.b16 %v1034, %v1028
    %v1191 = vpack.c.b16 %v1035, %v1029
    %v1192 = vpack.c.b16 %v1036, %v1030
    %v1193 = vpack.c.b16 %v1037, %v1031
    %v1194 = vpack.c.b16 %v1038, %v1032
    %v1195 = vpack.c.b16 %v1045, %v1039
    %v1196 = vpack.c.b16 %v1046, %v1040
    %v1197 = vpack.c.b16 %v1047, %v1041
    %v1198 = vpack.c.b16 %v1048, %v1042
    %v1199 = vpack.c.b16 %v1049, %v1043
    %v1200 = vpack.c.b16 %v1050, %v1044
    %v1201 = vpack.c.b16 %v1057, %v1051
    %v1202 = vpack.c.b16 %v1058, %v1052
    %v1203 = vpack.c.b16 %v1059, %v1053
    %v1204 = vpack.c.b16 %v1060, %v1054
    %v1205 = vpack.c.b16 %v1061, %v1055
    %v1206 = vpack.c.b16 %v1062, %v1056
    %v1207 = vpack.c.b16 %v1069, %v1063
    %v1208 = vpack.c.b16 %v1070, %v1064
    %v1209 = vpack.c.b16 %v1071, %v1065
    %v1210 = vpack.c.b16 %v1072, %v1066
    %v1211 = vpack.c.b16 %v1073, %v1067
    %v1212 = vpack.c.b16 %v1074, %v1068
    %v1213 = vpack.c.b16 %v1081, %v1075
    %v1214 = vpack.c.b16 %v1082, %v1076
    %v1215 = vpack.c.b16 %v1083, %v1077
    %v1216 = vpack.c.b16 %v1084, %v1078
    %v1217 = vpack.c.b16 %v1085, %v1079
    %v1218 = vpack.c.b16 %v1086, %v1080
    %v1219 = vpack.c.b16 %v1093, %v1087
    %v1220 = vpack.c.b16 %v1094, %v1088
    %v1221 = vpack.c.b16 %v1095, %v1089
    %v1222 = vpack.c.b16 %v1096, %v1090
    %v1223 = vpack.c.b16 %v1097, %v1091
    %v1224 = vpack.c.b16 %v1098, %v1092
    %v1225 = vpack.c.b16 %v1105, %v1099
    %v1226 = vpack.c.b16 %v1106, %v1100
    %v1227 = vpack.c.b16 %v1107, %v1101
    %v1228 = vpack.c.b16 %v1108, %v1102
    %v1229 = vpack.c.b16 %v1109, %v1103
    %v1230 = vpack.c.b16 %v1110, %v1104
    %v1231 = vpack.c.b16 %v1117, %v1111
    %v1232 = vpack.c.b16 %v1118, %v1112
    %v1233 = vpack.c.b16 %v1119, %v1113
    %v1234 = vpack.c.b16 %v1120, %v1114
    %v1235 = vpack.c.b16 %v1121, %v1115
    %v1236 = vpack.c.b16 %v1122, %v1116
    %v1237 = vpack.c.b16 %v1129, %v1123
    %v1238 = vpack.c.b16 %v1130, %v1124
    %v1239 = vpack.c.b16 %v1131, %v1125
    %v1240 = vpack.c.b16 %v1132, %v1126
    %v1241 = vpack.c.b16 %v1133, %v1127
    %v1242 = vpack.c.b16 %v1134, %v1128
    %v1243 = vpack.c.b16 %v1141, %v1135
    %v1244 = vpack.c.b16 %v1142, %v1136
    %v1245 = vpack.c.b16 %v1143, %v1137
    %v1246 = vpack.c.b16 %v1144, %v1138
    %v1247 = vpack.c.b16 %v1145, %v1139
    %v1248 = vpack.c.b16 %v1146, %v1140
    %v1249 = vpack.c.b16 %v1153, %v1147
    %v1250 = vpack.c.b16 %v1154, %v1148
    %v1251 = vpack.c.b16 %v1155, %v1149
    %v1252 = vpack.c.b16 %v1156, %v1150
    %v1253 = vpack.c.b16 %v1157, %v1151
    %v1254 = vpack.c.b16 %v1158, %v1152
    %1351 = vmatprep.subr.bf16.mxu0 %v1202
    %1352 = vmatpush1.bf16.msra.mxu0 %v1201
    %1353 = vmatprep.subr.bf16.mxu0 %v1196
    %1354 = vmatpush1.bf16.msra.mxu0 %v1195
    %1355 = vmatprep.subr.bf16.mxu0 %v1190
    %1356 = vmatpush1.bf16.msra.mxu0 %v1189
    %1357 = vmatprep.subr.bf16.mxu0 %v1184
    %1358 = vmatpush1.bf16.msra.mxu0 %v1183
    %1359 = vmatprep.subr.bf16.mxu0 %v1178
    %1360 = vmatpush1.bf16.msra.mxu0 %v1177
    %1361 = vmatprep.subr.bf16.mxu0 %v1172
    %1362 = vmatpush1.bf16.msra.mxu0 %v1171
    %1363 = vmatprep.subr.bf16.mxu0 %v1166
    %1364 = vmatpush1.bf16.msra.mxu0 %v1165
    %1365 = vmatprep.subr.bf16.mxu0 %v1160
    %1366 = vmatpush1.bf16.msra.mxu0 %v1159
    %1367 = vmatprep.subr.bf16.mxu0 %v1250
    %1368 = vmatpush2.bf16.msra.mxu0 %v1249
    %1369 = vmatprep.subr.bf16.mxu0 %v1244
    %1370 = vmatpush2.bf16.msra.mxu0 %v1243
    %1371 = vmatprep.subr.bf16.mxu0 %v1238
    %1372 = vmatpush2.bf16.msra.mxu0 %v1237
    %1373 = vmatprep.subr.bf16.mxu0 %v1232
    %1374 = vmatpush2.bf16.msra.mxu0 %v1231
    %1375 = vmatprep.subr.bf16.mxu0 %v1226
    %1376 = vmatpush2.bf16.msra.mxu0 %v1225
    %1377 = vmatprep.subr.bf16.mxu0 %v1220
    %1378 = vmatpush2.bf16.msra.mxu0 %v1219
    %1379 = vmatprep.subr.bf16.mxu0 %v1214
    %1380 = vmatpush2.bf16.msra.mxu0 %v1213
    %1381 = vmatprep.subr.bf16.mxu0 %v1208
    %1382 = vmatpush2.bf16.msra.mxu0 %v1207
    %1383 = vmatprep.mubr.bf16.mxu0 %v870
    %1384 = vmatmul.mubr.bf16.gmra.mxu0 %v870
    %v1385 = vpop.f32.mrf.mxu0
    %v1386 = vadd.f32 %v843, %v1385
    %v1387 = vpop.f32.mrf.mxu0
    %v1388 = vadd.f32 %v847, %v1387
    %v1389 = vpop.f32.mrf.mxu0
    %v1390 = vpop.f32.mrf.mxu0
    %1391 = vdwg.mxu0
    %1392 = vmatprep.subr.bf16.mxu0 %v1204
    %1393 = vmatpush1.bf16.msra.mxu0 %v1203
    %1394 = vmatprep.subr.bf16.mxu0 %v1198
    %1395 = vmatpush1.bf16.msra.mxu0 %v1197
    %1396 = vmatprep.subr.bf16.mxu0 %v1192
    %1397 = vmatpush1.bf16.msra.mxu0 %v1191
    %1398 = vmatprep.subr.bf16.mxu0 %v1186
    %1399 = vmatpush1.bf16.msra.mxu0 %v1185
    %1400 = vmatprep.subr.bf16.mxu0 %v1180
    %1401 = vmatpush1.bf16.msra.mxu0 %v1179
    %1402 = vmatprep.subr.bf16.mxu0 %v1174
    %1403 = vmatpush1.bf16.msra.mxu0 %v1173
    %1404 = vmatprep.subr.bf16.mxu0 %v1168
    %1405 = vmatpush1.bf16.msra.mxu0 %v1167
    %1406 = vmatprep.subr.bf16.mxu0 %v1162
    %1407 = vmatpush1.bf16.msra.mxu0 %v1161
    %1408 = vmatprep.subr.bf16.mxu0 %v1252
    %1409 = vmatpush2.bf16.msra.mxu0 %v1251
    %1410 = vmatprep.subr.bf16.mxu0 %v1246
    %1411 = vmatpush2.bf16.msra.mxu0 %v1245
    %1412 = vmatprep.subr.bf16.mxu0 %v1240
    %1413 = vmatpush2.bf16.msra.mxu0 %v1239
    %1414 = vmatprep.subr.bf16.mxu0 %v1234
    %1415 = vmatpush2.bf16.msra.mxu0 %v1233
    %1416 = vmatprep.subr.bf16.mxu0 %v1228
    %1417 = vmatpush2.bf16.msra.mxu0 %v1227
    %1418 = vmatprep.subr.bf16.mxu0 %v1222
    %1419 = vmatpush2.bf16.msra.mxu0 %v1221
    %1420 = vmatprep.subr.bf16.mxu0 %v1216
    %1421 = vmatpush2.bf16.msra.mxu0 %v1215
    %1422 = vmatprep.subr.bf16.mxu0 %v1210
    %1423 = vmatpush2.bf16.msra.mxu0 %v1209
    %1424 = vmatprep.mubr.bf16.mxu0 %v870
    %1425 = vmatmul.mubr.bf16.gmra.mxu0 %v870
    %v1426 = vpop.f32.mrf.mxu0
    %v1427 = vadd.f32 %v851, %v1426
    %v1428 = vpop.f32.mrf.mxu0
    %v1429 = vadd.f32 %v855, %v1428
    %v1430 = vpop.f32.mrf.mxu0
    %v1431 = vpop.f32.mrf.mxu0
    %1432 = vdwg.mxu0
    %1433 = vmatprep.subr.bf16.mxu0 %v1206
    %1434 = vmatpush1.bf16.msra.mxu0 %v1205
    %1435 = vmatprep.subr.bf16.mxu0 %v1200
    %1436 = vmatpush1.bf16.msra.mxu0 %v1199
    %1437 = vmatprep.subr.bf16.mxu0 %v1194
    %1438 = vmatpush1.bf16.msra.mxu0 %v1193
    %1439 = vmatprep.subr.bf16.mxu0 %v1188
    %1440 = vmatpush1.bf16.msra.mxu0 %v1187
    %1441 = vmatprep.subr.bf16.mxu0 %v1182
    %1442 = vmatpush1.bf16.msra.mxu0 %v1181
    %1443 = vmatprep.subr.bf16.mxu0 %v1176
    %1444 = vmatpush1.bf16.msra.mxu0 %v1175
    %1445 = vmatprep.subr.bf16.mxu0 %v1170
    %1446 = vmatpush1.bf16.msra.mxu0 %v1169
    %1447 = vmatprep.subr.bf16.mxu0 %v1164
    %1448 = vmatpush1.bf16.msra.mxu0 %v1163
    %1449 = vmatprep.subr.bf16.mxu0 %v1254
    %1450 = vmatpush2.bf16.msra.mxu0 %v1253
    %1451 = vmatprep.subr.bf16.mxu0 %v1248
    %1452 = vmatpush2.bf16.msra.mxu0 %v1247
    %1453 = vmatprep.subr.bf16.mxu0 %v1242
    %1454 = vmatpush2.bf16.msra.mxu0 %v1241
    %1455 = vmatprep.subr.bf16.mxu0 %v1236
    %1456 = vmatpush2.bf16.msra.mxu0 %v1235
    %1457 = vmatprep.subr.bf16.mxu0 %v1230
    %1458 = vmatpush2.bf16.msra.mxu0 %v1229
    %1459 = vmatprep.subr.bf16.mxu0 %v1224
    %1460 = vmatpush2.bf16.msra.mxu0 %v1223
    %1461 = vmatprep.subr.bf16.mxu0 %v1218
    %1462 = vmatpush2.bf16.msra.mxu0 %v1217
    %1463 = vmatprep.subr.bf16.mxu0 %v1212
    %1464 = vmatpush2.bf16.msra.mxu0 %v1211
    %1465 = vmatprep.mubr.bf16.mxu0 %v870
    %1466 = vmatmul.mubr.bf16.gmra.mxu0 %v870
    %v1467 = vpop.f32.mrf.mxu0
    %v1468 = vadd.f32 %v859, %v1467
    %v1469 = vpop.f32.mrf.mxu0
    %v1470 = vadd.f32 %v863, %v1469
    %v1471 = vpop.f32.mrf.mxu0
    %v1472 = vpop.f32.mrf.mxu0
    %1473 = vdwg.mxu0
    %v1474 = vld [vmem:[#allocation2] sm:$0xff]
    %v1475 = vld [vmem:[#allocation2 + $0x8] sm:$0xff]
    %v1476 = vld [vmem:[#allocation2 + $0x10] sm:$0xff]
    %s1477 = scalar_lea.vmem [#allocation2], 336
    %v1478 = vld [vmem:[%s1477 + $0x18] sm:$0xff]
    %v1479 = vld [vmem:[%s1477 + $0x20] sm:$0xff]
    %v1480 = vld [vmem:[%s1477 + $0x28] sm:$0xff]
    %v1481 = vadd.f32 %v1474, %v1386
    %v1482 = vxor.u32 %v1481, 2147483648
    %v1483 = vmul.f32 %v1482, 1.442695
    %v1484 = vpow.pop %v1483
    %v1485 = vadd.f32 %v1484, 1.0
    %v1486 = vrcp.pop %v1485
    %v1487 = vmul.f32 1.0, %v1486
    %v1488 = vadd.f32 %v1475, %v1388
    %v1489 = vxor.u32 %v1488, 2147483648
    %v1490 = vmul.f32 %v1489, 1.442695
    %v1491 = vpow.pop %v1490
    %v1492 = vadd.f32 %v1491, 1.0
    %v1493 = vrcp.pop %v1492
    %v1494 = vmul.f32 1.0, %v1493
    %v1495 = vmul.f32 %v1487, %v1427
    %v1496 = vadd.f32 %v1476, %v1495
    %v1497 = vtanh.pop %v1496
    %v1498 = vsub.f32 1.0, %v1494
    %v1499 = vmul.f32 %v1498, %v1497
    %v1500 = vmul.f32 %v1494, 0.0
    %v1501 = vadd.f32 %v1499, %v1500
    %v1502 = vadd.f32 %v1478, %v1429
    %v1503 = vxor.u32 %v1502, 2147483648
    %v1504 = vmul.f32 %v1503, 1.442695
    %v1505 = vpow.pop %v1504
    %v1506 = vadd.f32 %v1505, 1.0
    %v1507 = vrcp.pop %v1506
    %v1508 = vmul.f32 1.0, %v1507
    %v1509 = vadd.f32 %v1479, %v1468
    %v1510 = vxor.u32 %v1509, 2147483648
    %v1511 = vmul.f32 %v1510, 1.442695
    %v1512 = vpow.pop %v1511
    %v1513 = vadd.f32 %v1512, 1.0
    %v1514 = vrcp.pop %v1513
    %v1515 = vmul.f32 1.0, %v1514
    %v1516 = vmul.f32 %v1508, %v1470
    %v1517 = vadd.f32 %v1480, %v1516
    %v1518 = vtanh.pop %v1517
    %v1519 = vsub.f32 1.0, %v1515
    %v1520 = vmul.f32 %v1519, %v1518
    %v1521 = vmul.f32 %v1515, 0.0
    %v1522 = vadd.f32 %v1520, %v1521
    %v1523 = vpack.c.bf16 %v1501, %v1501
    %1524 = vst [vmem:[#allocation11] sm:$0xf] %v1523
    %v1525 = vpack.c.bf16 %v1522, %v1522
    %s1526 = scalar_lea.vmem [#allocation11], 56
    %1527 = vst [vmem:[%s1526 + $0x4] sm:$0xf] %v1525
    %1528 = vmatprep.subr.bf16.mxu0 %v1202
    %1529 = vmatpush1.bf16.msra.mxu0 %v1201
    %1530 = vmatprep.subr.bf16.mxu0 %v1196
    %1531 = vmatpush1.bf16.msra.mxu0 %v1195
    %1532 = vmatprep.subr.bf16.mxu0 %v1190
    %1533 = vmatpush1.bf16.msra.mxu0 %v1189
    %1534 = vmatprep.subr.bf16.mxu0 %v1184
    %1535 = vmatpush1.bf16.msra.mxu0 %v1183
    %1536 = vmatprep.subr.bf16.mxu0 %v1178
    %1537 = vmatpush1.bf16.msra.mxu0 %v1177
    %1538 = vmatprep.subr.bf16.mxu0 %v1172
    %1539 = vmatpush1.bf16.msra.mxu0 %v1171
    %1540 = vmatprep.subr.bf16.mxu0 %v1166
    %1541 = vmatpush1.bf16.msra.mxu0 %v1165
    %1542 = vmatprep.subr.bf16.mxu0 %v1160
    %1543 = vmatpush1.bf16.msra.mxu0 %v1159
    %1544 = vmatprep.subr.bf16.mxu0 %v1250
    %1545 = vmatpush2.bf16.msra.mxu0 %v1249
    %1546 = vmatprep.subr.bf16.mxu0 %v1244
    %1547 = vmatpush2.bf16.msra.mxu0 %v1243
    %1548 = vmatprep.subr.bf16.mxu0 %v1238
    %1549 = vmatpush2.bf16.msra.mxu0 %v1237
    %1550 = vmatprep.subr.bf16.mxu0 %v1232
    %1551 = vmatpush2.bf16.msra.mxu0 %v1231
    %1552 = vmatprep.subr.bf16.mxu0 %v1226
    %1553 = vmatpush2.bf16.msra.mxu0 %v1225
    %1554 = vmatprep.subr.bf16.mxu0 %v1220
    %1555 = vmatpush2.bf16.msra.mxu0 %v1219
    %1556 = vmatprep.subr.bf16.mxu0 %v1214
    %1557 = vmatpush2.bf16.msra.mxu0 %v1213
    %1558 = vmatprep.subr.bf16.mxu0 %v1208
    %1559 = vmatpush2.bf16.msra.mxu0 %v1207
    %1560 = vmatprep.mubr.bf16.mxu0 %v1525
    %1561 = vmatmul.mubr.bf16.gmra.mxu0 %v1523
    %v1562 = vpop.f32.mrf.mxu0
    %v1563 = vadd.f32 %v843, %v1562
    %v1564 = vpop.f32.mrf.mxu0
    %v1565 = vadd.f32 %v847, %v1564
    %v1566 = vpop.f32.mrf.mxu0
    %v1567 = vpop.f32.mrf.mxu0
    %1568 = vdwg.mxu0
    %1569 = vmatprep.subr.bf16.mxu0 %v1204
    %1570 = vmatpush1.bf16.msra.mxu0 %v1203
    %1571 = vmatprep.subr.bf16.mxu0 %v1198
    %1572 = vmatpush1.bf16.msra.mxu0 %v1197
    %1573 = vmatprep.subr.bf16.mxu0 %v1192
    %1574 = vmatpush1.bf16.msra.mxu0 %v1191
    %1575 = vmatprep.subr.bf16.mxu0 %v1186
    %1576 = vmatpush1.bf16.msra.mxu0 %v1185
    %1577 = vmatprep.subr.bf16.mxu0 %v1180
    %1578 = vmatpush1.bf16.msra.mxu0 %v1179
    %1579 = vmatprep.subr.bf16.mxu0 %v1174
    %1580 = vmatpush1.bf16.msra.mxu0 %v1173
    %1581 = vmatprep.subr.bf16.mxu0 %v1168
    %1582 = vmatpush1.bf16.msra.mxu0 %v1167
    %1583 = vmatprep.subr.bf16.mxu0 %v1162
    %1584 = vmatpush1.bf16.msra.mxu0 %v1161
    %1585 = vmatprep.subr.bf16.mxu0 %v1252
    %1586 = vmatpush2.bf16.msra.mxu0 %v1251
    %1587 = vmatprep.subr.bf16.mxu0 %v1246
    %1588 = vmatpush2.bf16.msra.mxu0 %v1245
    %1589 = vmatprep.subr.bf16.mxu0 %v1240
    %1590 = vmatpush2.bf16.msra.mxu0 %v1239
    %1591 = vmatprep.subr.bf16.mxu0 %v1234
    %1592 = vmatpush2.bf16.msra.mxu0 %v1233
    %1593 = vmatprep.subr.bf16.mxu0 %v1228
    %1594 = vmatpush2.bf16.msra.mxu0 %v1227
    %1595 = vmatprep.subr.bf16.mxu0 %v1222
    %1596 = vmatpush2.bf16.msra.mxu0 %v1221
    %1597 = vmatprep.subr.bf16.mxu0 %v1216
    %1598 = vmatpush2.bf16.msra.mxu0 %v1215
    %1599 = vmatprep.subr.bf16.mxu0 %v1210
    %1600 = vmatpush2.bf16.msra.mxu0 %v1209
    %1601 = vmatprep.mubr.bf16.mxu0 %v1525
    %1602 = vmatmul.mubr.bf16.gmra.mxu0 %v1523
    %v1603 = vpop.f32.mrf.mxu0
    %v1604 = vadd.f32 %v851, %v1603
    %v1605 = vpop.f32.mrf.mxu0
    %v1606 = vadd.f32 %v855, %v1605
    %v1607 = vpop.f32.mrf.mxu0
    %v1608 = vpop.f32.mrf.mxu0
    %1609 = vdwg.mxu0
    %1610 = vmatprep.subr.bf16.mxu0 %v1206
    %1611 = vmatpush1.bf16.msra.mxu0 %v1205
    %1612 = vmatprep.subr.bf16.mxu0 %v1200
    %1613 = vmatpush1.bf16.msra.mxu0 %v1199
    %1614 = vmatprep.subr.bf16.mxu0 %v1194
    %1615 = vmatpush1.bf16.msra.mxu0 %v1193
    %1616 = vmatprep.subr.bf16.mxu0 %v1188
    %1617 = vmatpush1.bf16.msra.mxu0 %v1187
    %1618 = vmatprep.subr.bf16.mxu0 %v1182
    %1619 = vmatpush1.bf16.msra.mxu0 %v1181
    %1620 = vmatprep.subr.bf16.mxu0 %v1176
    %1621 = vmatpush1.bf16.msra.mxu0 %v1175
    %1622 = vmatprep.subr.bf16.mxu0 %v1170
    %1623 = vmatpush1.bf16.msra.mxu0 %v1169
    %1624 = vmatprep.subr.bf16.mxu0 %v1164
    %1625 = vmatpush1.bf16.msra.mxu0 %v1163
    %1626 = vmatprep.subr.bf16.mxu0 %v1254
    %1627 = vmatpush2.bf16.msra.mxu0 %v1253
    %1628 = vmatprep.subr.bf16.mxu0 %v1248
    %1629 = vmatpush2.bf16.msra.mxu0 %v1247
    %1630 = vmatprep.subr.bf16.mxu0 %v1242
    %1631 = vmatpush2.bf16.msra.mxu0 %v1241
    %1632 = vmatprep.subr.bf16.mxu0 %v1236
    %1633 = vmatpush2.bf16.msra.mxu0 %v1235
    %1634 = vmatprep.subr.bf16.mxu0 %v1230
    %1635 = vmatpush2.bf16.msra.mxu0 %v1229
    %1636 = vmatprep.subr.bf16.mxu0 %v1224
    %1637 = vmatpush2.bf16.msra.mxu0 %v1223
    %1638 = vmatprep.subr.bf16.mxu0 %v1218
    %1639 = vmatpush2.bf16.msra.mxu0 %v1217
    %1640 = vmatprep.subr.bf16.mxu0 %v1212
    %1641 = vmatpush2.bf16.msra.mxu0 %v1211
    %1642 = vmatprep.mubr.bf16.mxu0 %v1525
    %1643 = vmatmul.mubr.bf16.gmra.mxu0 %v1523
    %v1644 = vpop.f32.mrf.mxu0
    %v1645 = vadd.f32 %v859, %v1644
    %v1646 = vpop.f32.mrf.mxu0
    %v1647 = vadd.f32 %v863, %v1646
    %v1648 = vpop.f32.mrf.mxu0
    %v1649 = vpop.f32.mrf.mxu0
    %1650 = vdwg.mxu0
    %s1651 = scalar_lea.vmem [#allocation2], 48
    %v1652 = vld [vmem:[%s1651] sm:$0xff]
    %v1653 = vld [vmem:[%s1651 + $0x8] sm:$0xff]
    %v1654 = vld [vmem:[%s1651 + $0x10] sm:$0xff]
    %s1655 = scalar_lea.vmem [#allocation2], 288
    %v1656 = vld [vmem:[%s1655 + $0x18] sm:$0xff]
    %v1657 = vld [vmem:[%s1655 + $0x20] sm:$0xff]
    %v1658 = vld [vmem:[%s1655 + $0x28] sm:$0xff]
    %v1659 = vadd.f32 %v1652, %v1563
    %v1660 = vxor.u32 %v1659, 2147483648
    %v1661 = vmul.f32 %v1660, 1.442695
    %v1662 = vpow.pop %v1661
    %v1663 = vadd.f32 %v1662, 1.0
    %v1664 = vrcp.pop %v1663
    %v1665 = vmul.f32 1.0, %v1664
    %v1666 = vadd.f32 %v1653, %v1565
    %v1667 = vxor.u32 %v1666, 2147483648
    %v1668 = vmul.f32 %v1667, 1.442695
    %v1669 = vpow.pop %v1668
    %v1670 = vadd.f32 %v1669, 1.0
    %v1671 = vrcp.pop %v1670
    %v1672 = vmul.f32 1.0, %v1671
    %v1673 = vmul.f32 %v1665, %v1604
    %v1674 = vadd.f32 %v1654, %v1673
    %v1675 = vtanh.pop %v1674
    %v1676 = vsub.f32 1.0, %v1672
    %v1677 = vmul.f32 %v1676, %v1675
    %v1678 = vmul.f32 %v1672, %v1501
    %v1679 = vadd.f32 %v1677, %v1678
    %v1680 = vadd.f32 %v1656, %v1606
    %v1681 = vxor.u32 %v1680, 2147483648
    %v1682 = vmul.f32 %v1681, 1.442695
    %v1683 = vpow.pop %v1682
    %v1684 = vadd.f32 %v1683, 1.0
    %v1685 = vrcp.pop %v1684
    %v1686 = vmul.f32 1.0, %v1685
    %v1687 = vadd.f32 %v1657, %v1645
    %v1688 = vxor.u32 %v1687, 2147483648
    %v1689 = vmul.f32 %v1688, 1.442695
    %v1690 = vpow.pop %v1689
    %v1691 = vadd.f32 %v1690, 1.0
    %v1692 = vrcp.pop %v1691
    %v1693 = vmul.f32 1.0, %v1692
    %v1694 = vmul.f32 %v1686, %v1647
    %v1695 = vadd.f32 %v1658, %v1694
    %v1696 = vtanh.pop %v1695
    %v1697 = vsub.f32 1.0, %v1693
    %v1698 = vmul.f32 %v1697, %v1696
    %v1699 = vmul.f32 %v1693, %v1522
    %v1700 = vadd.f32 %v1698, %v1699
    %v1701 = vpack.c.bf16 %v1679, %v1679
    %s1702 = scalar_lea.vmem [#allocation11], 8
    %1703 = vst [vmem:[%s1702] sm:$0xf] %v1701
    %v1704 = vpack.c.bf16 %v1700, %v1700
    %s1705 = scalar_lea.vmem [#allocation11], 48
    %1706 = vst [vmem:[%s1705 + $0x4] sm:$0xf] %v1704
    %1707 = vmatprep.subr.bf16.mxu0 %v1202
    %1708 = vmatpush1.bf16.msra.mxu0 %v1201
    %1709 = vmatprep.subr.bf16.mxu0 %v1196
    %1710 = vmatpush1.bf16.msra.mxu0 %v1195
    %1711 = vmatprep.subr.bf16.mxu0 %v1190
    %1712 = vmatpush1.bf16.msra.mxu0 %v1189
    %1713 = vmatprep.subr.bf16.mxu0 %v1184
    %1714 = vmatpush1.bf16.msra.mxu0 %v1183
    %1715 = vmatprep.subr.bf16.mxu0 %v1178
    %1716 = vmatpush1.bf16.msra.mxu0 %v1177
    %1717 = vmatprep.subr.bf16.mxu0 %v1172
    %1718 = vmatpush1.bf16.msra.mxu0 %v1171
    %1719 = vmatprep.subr.bf16.mxu0 %v1166
    %1720 = vmatpush1.bf16.msra.mxu0 %v1165
    %1721 = vmatprep.subr.bf16.mxu0 %v1160
    %1722 = vmatpush1.bf16.msra.mxu0 %v1159
    %1723 = vmatprep.subr.bf16.mxu0 %v1250
    %1724 = vmatpush2.bf16.msra.mxu0 %v1249
    %1725 = vmatprep.subr.bf16.mxu0 %v1244
    %1726 = vmatpush2.bf16.msra.mxu0 %v1243
    %1727 = vmatprep.subr.bf16.mxu0 %v1238
    %1728 = vmatpush2.bf16.msra.mxu0 %v1237
    %1729 = vmatprep.subr.bf16.mxu0 %v1232
    %1730 = vmatpush2.bf16.msra.mxu0 %v1231
    %1731 = vmatprep.subr.bf16.mxu0 %v1226
    %1732 = vmatpush2.bf16.msra.mxu0 %v1225
    %1733 = vmatprep.subr.bf16.mxu0 %v1220
    %1734 = vmatpush2.bf16.msra.mxu0 %v1219
    %1735 = vmatprep.subr.bf16.mxu0 %v1214
    %1736 = vmatpush2.bf16.msra.mxu0 %v1213
    %1737 = vmatprep.subr.bf16.mxu0 %v1208
    %1738 = vmatpush2.bf16.msra.mxu0 %v1207
    %1739 = vmatprep.mubr.bf16.mxu0 %v1704
    %1740 = vmatmul.mubr.bf16.gmra.mxu0 %v1701
    %v1741 = vpop.f32.mrf.mxu0
    %v1742 = vadd.f32 %v843, %v1741
    %v1743 = vpop.f32.mrf.mxu0
    %v1744 = vadd.f32 %v847, %v1743
    %v1745 = vpop.f32.mrf.mxu0
    %v1746 = vpop.f32.mrf.mxu0
    %1747 = vdwg.mxu0
    %1748 = vmatprep.subr.bf16.mxu0 %v1204
    %1749 = vmatpush1.bf16.msra.mxu0 %v1203
    %1750 = vmatprep.subr.bf16.mxu0 %v1198
    %1751 = vmatpush1.bf16.msra.mxu0 %v1197
    %1752 = vmatprep.subr.bf16.mxu0 %v1192
    %1753 = vmatpush1.bf16.msra.mxu0 %v1191
    %1754 = vmatprep.subr.bf16.mxu0 %v1186
    %1755 = vmatpush1.bf16.msra.mxu0 %v1185
    %1756 = vmatprep.subr.bf16.mxu0 %v1180
    %1757 = vmatpush1.bf16.msra.mxu0 %v1179
    %1758 = vmatprep.subr.bf16.mxu0 %v1174
    %1759 = vmatpush1.bf16.msra.mxu0 %v1173
    %1760 = vmatprep.subr.bf16.mxu0 %v1168
    %1761 = vmatpush1.bf16.msra.mxu0 %v1167
    %1762 = vmatprep.subr.bf16.mxu0 %v1162
    %1763 = vmatpush1.bf16.msra.mxu0 %v1161
    %1764 = vmatprep.subr.bf16.mxu0 %v1252
    %1765 = vmatpush2.bf16.msra.mxu0 %v1251
    %1766 = vmatprep.subr.bf16.mxu0 %v1246
    %1767 = vmatpush2.bf16.msra.mxu0 %v1245
    %1768 = vmatprep.subr.bf16.mxu0 %v1240
    %1769 = vmatpush2.bf16.msra.mxu0 %v1239
    %1770 = vmatprep.subr.bf16.mxu0 %v1234
    %1771 = vmatpush2.bf16.msra.mxu0 %v1233
    %1772 = vmatprep.subr.bf16.mxu0 %v1228
    %1773 = vmatpush2.bf16.msra.mxu0 %v1227
    %1774 = vmatprep.subr.bf16.mxu0 %v1222
    %1775 = vmatpush2.bf16.msra.mxu0 %v1221
    %1776 = vmatprep.subr.bf16.mxu0 %v1216
    %1777 = vmatpush2.bf16.msra.mxu0 %v1215
    %1778 = vmatprep.subr.bf16.mxu0 %v1210
    %1779 = vmatpush2.bf16.msra.mxu0 %v1209
    %1780 = vmatprep.mubr.bf16.mxu0 %v1704
    %1781 = vmatmul.mubr.bf16.gmra.mxu0 %v1701
    %v1782 = vpop.f32.mrf.mxu0
    %v1783 = vadd.f32 %v851, %v1782
    %v1784 = vpop.f32.mrf.mxu0
    %v1785 = vadd.f32 %v855, %v1784
    %v1786 = vpop.f32.mrf.mxu0
    %v1787 = vpop.f32.mrf.mxu0
    %1788 = vdwg.mxu0
    %1789 = vmatprep.subr.bf16.mxu0 %v1206
    %1790 = vmatpush1.bf16.msra.mxu0 %v1205
    %1791 = vmatprep.subr.bf16.mxu0 %v1200
    %1792 = vmatpush1.bf16.msra.mxu0 %v1199
    %1793 = vmatprep.subr.bf16.mxu0 %v1194
    %1794 = vmatpush1.bf16.msra.mxu0 %v1193
    %1795 = vmatprep.subr.bf16.mxu0 %v1188
    %1796 = vmatpush1.bf16.msra.mxu0 %v1187
    %1797 = vmatprep.subr.bf16.mxu0 %v1182
    %1798 = vmatpush1.bf16.msra.mxu0 %v1181
    %1799 = vmatprep.subr.bf16.mxu0 %v1176
    %1800 = vmatpush1.bf16.msra.mxu0 %v1175
    %1801 = vmatprep.subr.bf16.mxu0 %v1170
    %1802 = vmatpush1.bf16.msra.mxu0 %v1169
    %1803 = vmatprep.subr.bf16.mxu0 %v1164
    %1804 = vmatpush1.bf16.msra.mxu0 %v1163
    %1805 = vmatprep.subr.bf16.mxu0 %v1254
    %1806 = vmatpush2.bf16.msra.mxu0 %v1253
    %1807 = vmatprep.subr.bf16.mxu0 %v1248
    %1808 = vmatpush2.bf16.msra.mxu0 %v1247
    %1809 = vmatprep.subr.bf16.mxu0 %v1242
    %1810 = vmatpush2.bf16.msra.mxu0 %v1241
    %1811 = vmatprep.subr.bf16.mxu0 %v1236
    %1812 = vmatpush2.bf16.msra.mxu0 %v1235
    %1813 = vmatprep.subr.bf16.mxu0 %v1230
    %1814 = vmatpush2.bf16.msra.mxu0 %v1229
    %1815 = vmatprep.subr.bf16.mxu0 %v1224
    %1816 = vmatpush2.bf16.msra.mxu0 %v1223
    %1817 = vmatprep.subr.bf16.mxu0 %v1218
    %1818 = vmatpush2.bf16.msra.mxu0 %v1217
    %1819 = vmatprep.subr.bf16.mxu0 %v1212
    %1820 = vmatpush2.bf16.msra.mxu0 %v1211
    %1821 = vmatprep.mubr.bf16.mxu0 %v1704
    %1822 = vmatmul.mubr.bf16.gmra.mxu0 %v1701
    %v1823 = vpop.f32.mrf.mxu0
    %v1824 = vadd.f32 %v859, %v1823
    %v1825 = vpop.f32.mrf.mxu0
    %v1826 = vadd.f32 %v863, %v1825
    %v1827 = vpop.f32.mrf.mxu0
    %v1828 = vpop.f32.mrf.mxu0
    %1829 = vdwg.mxu0
    %s1830 = scalar_lea.vmem [#allocation2], 96
    %v1831 = vld [vmem:[%s1830] sm:$0xff]
    %v1832 = vld [vmem:[%s1830 + $0x8] sm:$0xff]
    %v1833 = vld [vmem:[%s1830 + $0x10] sm:$0xff]
    %s1834 = scalar_lea.vmem [#allocation2], 240
    %v1835 = vld [vmem:[%s1834 + $0x18] sm:$0xff]
    %v1836 = vld [vmem:[%s1834 + $0x20] sm:$0xff]
    %v1837 = vld [vmem:[%s1834 + $0x28] sm:$0xff]
    %v1838 = vadd.f32 %v1831, %v1742
    %v1839 = vxor.u32 %v1838, 2147483648
    %v1840 = vmul.f32 %v1839, 1.442695
    %v1841 = vpow.pop %v1840
    %v1842 = vadd.f32 %v1841, 1.0
    %v1843 = vrcp.pop %v1842
    %v1844 = vmul.f32 1.0, %v1843
    %v1845 = vadd.f32 %v1832, %v1744
    %v1846 = vxor.u32 %v1845, 2147483648
    %v1847 = vmul.f32 %v1846, 1.442695
    %v1848 = vpow.pop %v1847
    %v1849 = vadd.f32 %v1848, 1.0
    %v1850 = vrcp.pop %v1849
    %v1851 = vmul.f32 1.0, %v1850
    %v1852 = vmul.f32 %v1844, %v1783
    %v1853 = vadd.f32 %v1833, %v1852
    %v1854 = vtanh.pop %v1853
    %v1855 = vsub.f32 1.0, %v1851
    %v1856 = vmul.f32 %v1855, %v1854
    %v1857 = vmul.f32 %v1851, %v1679
    %v1858 = vadd.f32 %v1856, %v1857
    %v1859 = vadd.f32 %v1835, %v1785
    %v1860 = vxor.u32 %v1859, 2147483648
    %v1861 = vmul.f32 %v1860, 1.442695
    %v1862 = vpow.pop %v1861
    %v1863 = vadd.f32 %v1862, 1.0
    %v1864 = vrcp.pop %v1863
    %v1865 = vmul.f32 1.0, %v1864
    %v1866 = vadd.f32 %v1836, %v1824
    %v1867 = vxor.u32 %v1866, 2147483648
    %v1868 = vmul.f32 %v1867, 1.442695
    %v1869 = vpow.pop %v1868
    %v1870 = vadd.f32 %v1869, 1.0
    %v1871 = vrcp.pop %v1870
    %v1872 = vmul.f32 1.0, %v1871
    %v1873 = vmul.f32 %v1865, %v1826
    %v1874 = vadd.f32 %v1837, %v1873
    %v1875 = vtanh.pop %v1874
    %v1876 = vsub.f32 1.0, %v1872
    %v1877 = vmul.f32 %v1876, %v1875
    %v1878 = vmul.f32 %v1872, %v1700
    %v1879 = vadd.f32 %v1877, %v1878
    %v1880 = vpack.c.bf16 %v1858, %v1858
    %s1881 = scalar_lea.vmem [#allocation11], 16
    %1882 = vst [vmem:[%s1881] sm:$0xf] %v1880
    %v1883 = vpack.c.bf16 %v1879, %v1879
    %s1884 = scalar_lea.vmem [#allocation11], 40
    %1885 = vst [vmem:[%s1884 + $0x4] sm:$0xf] %v1883
    %1886 = vmatprep.subr.bf16.mxu0 %v1202
    %1887 = vmatpush1.bf16.msra.mxu0 %v1201
    %1888 = vmatprep.subr.bf16.mxu0 %v1196
    %1889 = vmatpush1.bf16.msra.mxu0 %v1195
    %1890 = vmatprep.subr.bf16.mxu0 %v1190
    %1891 = vmatpush1.bf16.msra.mxu0 %v1189
    %1892 = vmatprep.subr.bf16.mxu0 %v1184
    %1893 = vmatpush1.bf16.msra.mxu0 %v1183
    %1894 = vmatprep.subr.bf16.mxu0 %v1178
    %1895 = vmatpush1.bf16.msra.mxu0 %v1177
    %1896 = vmatprep.subr.bf16.mxu0 %v1172
    %1897 = vmatpush1.bf16.msra.mxu0 %v1171
    %1898 = vmatprep.subr.bf16.mxu0 %v1166
    %1899 = vmatpush1.bf16.msra.mxu0 %v1165
    %1900 = vmatprep.subr.bf16.mxu0 %v1160
    %1901 = vmatpush1.bf16.msra.mxu0 %v1159
    %1902 = vmatprep.subr.bf16.mxu0 %v1250
    %1903 = vmatpush2.bf16.msra.mxu0 %v1249
    %1904 = vmatprep.subr.bf16.mxu0 %v1244
    %1905 = vmatpush2.bf16.msra.mxu0 %v1243
    %1906 = vmatprep.subr.bf16.mxu0 %v1238
    %1907 = vmatpush2.bf16.msra.mxu0 %v1237
    %1908 = vmatprep.subr.bf16.mxu0 %v1232
    %1909 = vmatpush2.bf16.msra.mxu0 %v1231
    %1910 = vmatprep.subr.bf16.mxu0 %v1226
    %1911 = vmatpush2.bf16.msra.mxu0 %v1225
    %1912 = vmatprep.subr.bf16.mxu0 %v1220
    %1913 = vmatpush2.bf16.msra.mxu0 %v1219
    %1914 = vmatprep.subr.bf16.mxu0 %v1214
    %1915 = vmatpush2.bf16.msra.mxu0 %v1213
    %1916 = vmatprep.subr.bf16.mxu0 %v1208
    %1917 = vmatpush2.bf16.msra.mxu0 %v1207
    %1918 = vmatprep.mubr.bf16.mxu0 %v1883
    %1919 = vmatmul.mubr.bf16.gmra.mxu0 %v1880
    %v1920 = vpop.f32.mrf.mxu0
    %v1921 = vadd.f32 %v843, %v1920
    %v1922 = vpop.f32.mrf.mxu0
    %v1923 = vadd.f32 %v847, %v1922
    %v1924 = vpop.f32.mrf.mxu0
    %v1925 = vpop.f32.mrf.mxu0
    %1926 = vdwg.mxu0
    %1927 = vmatprep.subr.bf16.mxu0 %v1204
    %1928 = vmatpush1.bf16.msra.mxu0 %v1203
    %1929 = vmatprep.subr.bf16.mxu0 %v1198
    %1930 = vmatpush1.bf16.msra.mxu0 %v1197
    %1931 = vmatprep.subr.bf16.mxu0 %v1192
    %1932 = vmatpush1.bf16.msra.mxu0 %v1191
    %1933 = vmatprep.subr.bf16.mxu0 %v1186
    %1934 = vmatpush1.bf16.msra.mxu0 %v1185
    %1935 = vmatprep.subr.bf16.mxu0 %v1180
    %1936 = vmatpush1.bf16.msra.mxu0 %v1179
    %1937 = vmatprep.subr.bf16.mxu0 %v1174
    %1938 = vmatpush1.bf16.msra.mxu0 %v1173
    %1939 = vmatprep.subr.bf16.mxu0 %v1168
    %1940 = vmatpush1.bf16.msra.mxu0 %v1167
    %1941 = vmatprep.subr.bf16.mxu0 %v1162
    %1942 = vmatpush1.bf16.msra.mxu0 %v1161
    %1943 = vmatprep.subr.bf16.mxu0 %v1252
    %1944 = vmatpush2.bf16.msra.mxu0 %v1251
    %1945 = vmatprep.subr.bf16.mxu0 %v1246
    %1946 = vmatpush2.bf16.msra.mxu0 %v1245
    %1947 = vmatprep.subr.bf16.mxu0 %v1240
    %1948 = vmatpush2.bf16.msra.mxu0 %v1239
    %1949 = vmatprep.subr.bf16.mxu0 %v1234
    %1950 = vmatpush2.bf16.msra.mxu0 %v1233
    %1951 = vmatprep.subr.bf16.mxu0 %v1228
    %1952 = vmatpush2.bf16.msra.mxu0 %v1227
    %1953 = vmatprep.subr.bf16.mxu0 %v1222
    %1954 = vmatpush2.bf16.msra.mxu0 %v1221
    %1955 = vmatprep.subr.bf16.mxu0 %v1216
    %1956 = vmatpush2.bf16.msra.mxu0 %v1215
    %1957 = vmatprep.subr.bf16.mxu0 %v1210
    %1958 = vmatpush2.bf16.msra.mxu0 %v1209
    %1959 = vmatprep.mubr.bf16.mxu0 %v1883
    %1960 = vmatmul.mubr.bf16.gmra.mxu0 %v1880
    %v1961 = vpop.f32.mrf.mxu0
    %v1962 = vadd.f32 %v851, %v1961
    %v1963 = vpop.f32.mrf.mxu0
    %v1964 = vadd.f32 %v855, %v1963
    %v1965 = vpop.f32.mrf.mxu0
    %v1966 = vpop.f32.mrf.mxu0
    %1967 = vdwg.mxu0
    %1968 = vmatprep.subr.bf16.mxu0 %v1206
    %1969 = vmatpush1.bf16.msra.mxu0 %v1205
    %1970 = vmatprep.subr.bf16.mxu0 %v1200
    %1971 = vmatpush1.bf16.msra.mxu0 %v1199
    %1972 = vmatprep.subr.bf16.mxu0 %v1194
    %1973 = vmatpush1.bf16.msra.mxu0 %v1193
    %1974 = vmatprep.subr.bf16.mxu0 %v1188
    %1975 = vmatpush1.bf16.msra.mxu0 %v1187
    %1976 = vmatprep.subr.bf16.mxu0 %v1182
    %1977 = vmatpush1.bf16.msra.mxu0 %v1181
    %1978 = vmatprep.subr.bf16.mxu0 %v1176
    %1979 = vmatpush1.bf16.msra.mxu0 %v1175
    %1980 = vmatprep.subr.bf16.mxu0 %v1170
    %1981 = vmatpush1.bf16.msra.mxu0 %v1169
    %1982 = vmatprep.subr.bf16.mxu0 %v1164
    %1983 = vmatpush1.bf16.msra.mxu0 %v1163
    %1984 = vmatprep.subr.bf16.mxu0 %v1254
    %1985 = vmatpush2.bf16.msra.mxu0 %v1253
    %1986 = vmatprep.subr.bf16.mxu0 %v1248
    %1987 = vmatpush2.bf16.msra.mxu0 %v1247
    %1988 = vmatprep.subr.bf16.mxu0 %v1242
    %1989 = vmatpush2.bf16.msra.mxu0 %v1241
    %1990 = vmatprep.subr.bf16.mxu0 %v1236
    %1991 = vmatpush2.bf16.msra.mxu0 %v1235
    %1992 = vmatprep.subr.bf16.mxu0 %v1230
    %1993 = vmatpush2.bf16.msra.mxu0 %v1229
    %1994 = vmatprep.subr.bf16.mxu0 %v1224
    %1995 = vmatpush2.bf16.msra.mxu0 %v1223
    %1996 = vmatprep.subr.bf16.mxu0 %v1218
    %1997 = vmatpush2.bf16.msra.mxu0 %v1217
    %1998 = vmatprep.subr.bf16.mxu0 %v1212
    %1999 = vmatpush2.bf16.msra.mxu0 %v1211
    %2000 = vmatprep.mubr.bf16.mxu0 %v1883
    %2001 = vmatmul.mubr.bf16.gmra.mxu0 %v1880
    %v2002 = vpop.f32.mrf.mxu0
    %v2003 = vadd.f32 %v859, %v2002
    %v2004 = vpop.f32.mrf.mxu0
    %v2005 = vadd.f32 %v863, %v2004
    %v2006 = vpop.f32.mrf.mxu0
    %v2007 = vpop.f32.mrf.mxu0
    %2008 = vdwg.mxu0
    %s2009 = scalar_lea.vmem [#allocation2], 144
    %v2010 = vld [vmem:[%s2009] sm:$0xff]
    %v2011 = vld [vmem:[%s2009 + $0x8] sm:$0xff]
    %v2012 = vld [vmem:[%s2009 + $0x10] sm:$0xff]
    %s2013 = scalar_lea.vmem [#allocation2], 192
    %v2014 = vld [vmem:[%s2013 + $0x18] sm:$0xff]
    %v2015 = vld [vmem:[%s2013 + $0x20] sm:$0xff]
    %v2016 = vld [vmem:[%s2013 + $0x28] sm:$0xff]
    %v2017 = vadd.f32 %v2010, %v1921
    %v2018 = vxor.u32 %v2017, 2147483648
    %v2019 = vmul.f32 %v2018, 1.442695
    %v2020 = vpow.pop %v2019
    %v2021 = vadd.f32 %v2020, 1.0
    %v2022 = vrcp.pop %v2021
    %v2023 = vmul.f32 1.0, %v2022
    %v2024 = vadd.f32 %v2011, %v1923
    %v2025 = vxor.u32 %v2024, 2147483648
    %v2026 = vmul.f32 %v2025, 1.442695
    %v2027 = vpow.pop %v2026
    %v2028 = vadd.f32 %v2027, 1.0
    %v2029 = vrcp.pop %v2028
    %v2030 = vmul.f32 1.0, %v2029
    %v2031 = vmul.f32 %v2023, %v1962
    %v2032 = vadd.f32 %v2012, %v2031
    %v2033 = vtanh.pop %v2032
    %v2034 = vsub.f32 1.0, %v2030
    %v2035 = vmul.f32 %v2034, %v2033
    %v2036 = vmul.f32 %v2030, %v1858
    %v2037 = vadd.f32 %v2035, %v2036
    %v2038 = vadd.f32 %v2014, %v1964
    %v2039 = vxor.u32 %v2038, 2147483648
    %v2040 = vmul.f32 %v2039, 1.442695
    %v2041 = vpow.pop %v2040
    %v2042 = vadd.f32 %v2041, 1.0
    %v2043 = vrcp.pop %v2042
    %v2044 = vmul.f32 1.0, %v2043
    %v2045 = vadd.f32 %v2015, %v2003
    %v2046 = vxor.u32 %v2045, 2147483648
    %v2047 = vmul.f32 %v2046, 1.442695
    %v2048 = vpow.pop %v2047
    %v2049 = vadd.f32 %v2048, 1.0
    %v2050 = vrcp.pop %v2049
    %v2051 = vmul.f32 1.0, %v2050
    %v2052 = vmul.f32 %v2044, %v2005
    %v2053 = vadd.f32 %v2016, %v2052
    %v2054 = vtanh.pop %v2053
    %v2055 = vsub.f32 1.0, %v2051
    %v2056 = vmul.f32 %v2055, %v2054
    %v2057 = vmul.f32 %v2051, %v1879
    %v2058 = vadd.f32 %v2056, %v2057
    %v2059 = vpack.c.bf16 %v2037, %v2037
    %s2060 = scalar_lea.vmem [#allocation11], 24
    %2061 = vst [vmem:[%s2060] sm:$0xf] %v2059
    %v2062 = vpack.c.bf16 %v2058, %v2058
    %s2063 = scalar_lea.vmem [#allocation11], 32
    %2064 = vst [vmem:[%s2063 + $0x4] sm:$0xf] %v2062
    %2065 = vmatprep.subr.bf16.mxu0 %v1202
    %2066 = vmatpush1.bf16.msra.mxu0 %v1201
    %2067 = vmatprep.subr.bf16.mxu0 %v1196
    %2068 = vmatpush1.bf16.msra.mxu0 %v1195
    %2069 = vmatprep.subr.bf16.mxu0 %v1190
    %2070 = vmatpush1.bf16.msra.mxu0 %v1189
    %2071 = vmatprep.subr.bf16.mxu0 %v1184
    %2072 = vmatpush1.bf16.msra.mxu0 %v1183
    %2073 = vmatprep.subr.bf16.mxu0 %v1178
    %2074 = vmatpush1.bf16.msra.mxu0 %v1177
    %2075 = vmatprep.subr.bf16.mxu0 %v1172
    %2076 = vmatpush1.bf16.msra.mxu0 %v1171
    %2077 = vmatprep.subr.bf16.mxu0 %v1166
    %2078 = vmatpush1.bf16.msra.mxu0 %v1165
    %2079 = vmatprep.subr.bf16.mxu0 %v1160
    %2080 = vmatpush1.bf16.msra.mxu0 %v1159
    %2081 = vmatprep.subr.bf16.mxu0 %v1250
    %2082 = vmatpush2.bf16.msra.mxu0 %v1249
    %2083 = vmatprep.subr.bf16.mxu0 %v1244
    %2084 = vmatpush2.bf16.msra.mxu0 %v1243
    %2085 = vmatprep.subr.bf16.mxu0 %v1238
    %2086 = vmatpush2.bf16.msra.mxu0 %v1237
    %2087 = vmatprep.subr.bf16.mxu0 %v1232
    %2088 = vmatpush2.bf16.msra.mxu0 %v1231
    %2089 = vmatprep.subr.bf16.mxu0 %v1226
    %2090 = vmatpush2.bf16.msra.mxu0 %v1225
    %2091 = vmatprep.subr.bf16.mxu0 %v1220
    %2092 = vmatpush2.bf16.msra.mxu0 %v1219
    %2093 = vmatprep.subr.bf16.mxu0 %v1214
    %2094 = vmatpush2.bf16.msra.mxu0 %v1213
    %2095 = vmatprep.subr.bf16.mxu0 %v1208
    %2096 = vmatpush2.bf16.msra.mxu0 %v1207
    %2097 = vmatprep.mubr.bf16.mxu0 %v2062
    %2098 = vmatmul.mubr.bf16.gmra.mxu0 %v2059
    %v2099 = vpop.f32.mrf.mxu0
    %v2100 = vadd.f32 %v843, %v2099
    %v2101 = vpop.f32.mrf.mxu0
    %v2102 = vadd.f32 %v847, %v2101
    %v2103 = vpop.f32.mrf.mxu0
    %v2104 = vpop.f32.mrf.mxu0
    %2105 = vdwg.mxu0
    %2106 = vmatprep.subr.bf16.mxu0 %v1204
    %2107 = vmatpush1.bf16.msra.mxu0 %v1203
    %2108 = vmatprep.subr.bf16.mxu0 %v1198
    %2109 = vmatpush1.bf16.msra.mxu0 %v1197
    %2110 = vmatprep.subr.bf16.mxu0 %v1192
    %2111 = vmatpush1.bf16.msra.mxu0 %v1191
    %2112 = vmatprep.subr.bf16.mxu0 %v1186
    %2113 = vmatpush1.bf16.msra.mxu0 %v1185
    %2114 = vmatprep.subr.bf16.mxu0 %v1180
    %2115 = vmatpush1.bf16.msra.mxu0 %v1179
    %2116 = vmatprep.subr.bf16.mxu0 %v1174
    %2117 = vmatpush1.bf16.msra.mxu0 %v1173
    %2118 = vmatprep.subr.bf16.mxu0 %v1168
    %2119 = vmatpush1.bf16.msra.mxu0 %v1167
    %2120 = vmatprep.subr.bf16.mxu0 %v1162
    %2121 = vmatpush1.bf16.msra.mxu0 %v1161
    %2122 = vmatprep.subr.bf16.mxu0 %v1252
    %2123 = vmatpush2.bf16.msra.mxu0 %v1251
    %2124 = vmatprep.subr.bf16.mxu0 %v1246
    %2125 = vmatpush2.bf16.msra.mxu0 %v1245
    %2126 = vmatprep.subr.bf16.mxu0 %v1240
    %2127 = vmatpush2.bf16.msra.mxu0 %v1239
    %2128 = vmatprep.subr.bf16.mxu0 %v1234
    %2129 = vmatpush2.bf16.msra.mxu0 %v1233
    %2130 = vmatprep.subr.bf16.mxu0 %v1228
    %2131 = vmatpush2.bf16.msra.mxu0 %v1227
    %2132 = vmatprep.subr.bf16.mxu0 %v1222
    %2133 = vmatpush2.bf16.msra.mxu0 %v1221
    %2134 = vmatprep.subr.bf16.mxu0 %v1216
    %2135 = vmatpush2.bf16.msra.mxu0 %v1215
    %2136 = vmatprep.subr.bf16.mxu0 %v1210
    %2137 = vmatpush2.bf16.msra.mxu0 %v1209
    %2138 = vmatprep.mubr.bf16.mxu0 %v2062
    %2139 = vmatmul.mubr.bf16.gmra.mxu0 %v2059
    %v2140 = vpop.f32.mrf.mxu0
    %v2141 = vadd.f32 %v851, %v2140
    %v2142 = vpop.f32.mrf.mxu0
    %v2143 = vadd.f32 %v855, %v2142
    %v2144 = vpop.f32.mrf.mxu0
    %v2145 = vpop.f32.mrf.mxu0
    %2146 = vdwg.mxu0
    %2147 = vmatprep.subr.bf16.mxu0 %v1206
    %2148 = vmatpush1.bf16.msra.mxu0 %v1205
    %2149 = vmatprep.subr.bf16.mxu0 %v1200
    %2150 = vmatpush1.bf16.msra.mxu0 %v1199
    %2151 = vmatprep.subr.bf16.mxu0 %v1194
    %2152 = vmatpush1.bf16.msra.mxu0 %v1193
    %2153 = vmatprep.subr.bf16.mxu0 %v1188
    %2154 = vmatpush1.bf16.msra.mxu0 %v1187
    %2155 = vmatprep.subr.bf16.mxu0 %v1182
    %2156 = vmatpush1.bf16.msra.mxu0 %v1181
    %2157 = vmatprep.subr.bf16.mxu0 %v1176
    %2158 = vmatpush1.bf16.msra.mxu0 %v1175
    %2159 = vmatprep.subr.bf16.mxu0 %v1170
    %2160 = vmatpush1.bf16.msra.mxu0 %v1169
    %2161 = vmatprep.subr.bf16.mxu0 %v1164
    %2162 = vmatpush1.bf16.msra.mxu0 %v1163
    %2163 = vmatprep.subr.bf16.mxu0 %v1254
    %2164 = vmatpush2.bf16.msra.mxu0 %v1253
    %2165 = vmatprep.subr.bf16.mxu0 %v1248
    %2166 = vmatpush2.bf16.msra.mxu0 %v1247
    %2167 = vmatprep.subr.bf16.mxu0 %v1242
    %2168 = vmatpush2.bf16.msra.mxu0 %v1241
    %2169 = vmatprep.subr.bf16.mxu0 %v1236
    %2170 = vmatpush2.bf16.msra.mxu0 %v1235
    %2171 = vmatprep.subr.bf16.mxu0 %v1230
    %2172 = vmatpush2.bf16.msra.mxu0 %v1229
    %2173 = vmatprep.subr.bf16.mxu0 %v1224
    %2174 = vmatpush2.bf16.msra.mxu0 %v1223
    %2175 = vmatprep.subr.bf16.mxu0 %v1218
    %2176 = vmatpush2.bf16.msra.mxu0 %v1217
    %2177 = vmatprep.subr.bf16.mxu0 %v1212
    %2178 = vmatpush2.bf16.msra.mxu0 %v1211
    %2179 = vmatprep.mubr.bf16.mxu0 %v2062
    %2180 = vmatmul.mubr.bf16.gmra.mxu0 %v2059
    %v2181 = vpop.f32.mrf.mxu0
    %v2182 = vadd.f32 %v859, %v2181
    %v2183 = vpop.f32.mrf.mxu0
    %v2184 = vadd.f32 %v863, %v2183
    %v2185 = vpop.f32.mrf.mxu0
    %v2186 = vpop.f32.mrf.mxu0
    %2187 = vdwg.mxu0
    %v2188 = vld [vmem:[%s2013] sm:$0xff]
    %v2189 = vld [vmem:[%s2013 + $0x8] sm:$0xff]
    %v2190 = vld [vmem:[%s2013 + $0x10] sm:$0xff]
    %v2191 = vld [vmem:[%s2009 + $0x18] sm:$0xff]
    %v2192 = vld [vmem:[%s2009 + $0x20] sm:$0xff]
    %v2193 = vld [vmem:[%s2009 + $0x28] sm:$0xff]
    %v2194 = vadd.f32 %v2188, %v2100
    %v2195 = vxor.u32 %v2194, 2147483648
    %v2196 = vmul.f32 %v2195, 1.442695
    %v2197 = vpow.pop %v2196
    %v2198 = vadd.f32 %v2197, 1.0
    %v2199 = vrcp.pop %v2198
    %v2200 = vmul.f32 1.0, %v2199
    %v2201 = vadd.f32 %v2189, %v2102
    %v2202 = vxor.u32 %v2201, 2147483648
    %v2203 = vmul.f32 %v2202, 1.442695
    %v2204 = vpow.pop %v2203
    %v2205 = vadd.f32 %v2204, 1.0
    %v2206 = vrcp.pop %v2205
    %v2207 = vmul.f32 1.0, %v2206
    %v2208 = vmul.f32 %v2200, %v2141
    %v2209 = vadd.f32 %v2190, %v2208
    %v2210 = vtanh.pop %v2209
    %v2211 = vsub.f32 1.0, %v2207
    %v2212 = vmul.f32 %v2211, %v2210
    %v2213 = vmul.f32 %v2207, %v2037
    %v2214 = vadd.f32 %v2212, %v2213
    %v2215 = vadd.f32 %v2191, %v2143
    %v2216 = vxor.u32 %v2215, 2147483648
    %v2217 = vmul.f32 %v2216, 1.442695
    %v2218 = vpow.pop %v2217
    %v2219 = vadd.f32 %v2218, 1.0
    %v2220 = vrcp.pop %v2219
    %v2221 = vmul.f32 1.0, %v2220
    %v2222 = vadd.f32 %v2192, %v2182
    %v2223 = vxor.u32 %v2222, 2147483648
    %v2224 = vmul.f32 %v2223, 1.442695
    %v2225 = vpow.pop %v2224
    %v2226 = vadd.f32 %v2225, 1.0
    %v2227 = vrcp.pop %v2226
    %v2228 = vmul.f32 1.0, %v2227
    %v2229 = vmul.f32 %v2221, %v2184
    %v2230 = vadd.f32 %v2193, %v2229
    %v2231 = vtanh.pop %v2230
    %v2232 = vsub.f32 1.0, %v2228
    %v2233 = vmul.f32 %v2232, %v2231
    %v2234 = vmul.f32 %v2228, %v2058
    %v2235 = vadd.f32 %v2233, %v2234
    %v2236 = vpack.c.bf16 %v2214, %v2214
    %2237 = vst [vmem:[%s2063] sm:$0xf] %v2236
    %v2238 = vpack.c.bf16 %v2235, %v2235
    %2239 = vst [vmem:[%s2060 + $0x4] sm:$0xf] %v2238
    %2240 = vmatprep.subr.bf16.mxu0 %v1202
    %2241 = vmatpush1.bf16.msra.mxu0 %v1201
    %2242 = vmatprep.subr.bf16.mxu0 %v1196
    %2243 = vmatpush1.bf16.msra.mxu0 %v1195
    %2244 = vmatprep.subr.bf16.mxu0 %v1190
    %2245 = vmatpush1.bf16.msra.mxu0 %v1189
    %2246 = vmatprep.subr.bf16.mxu0 %v1184
    %2247 = vmatpush1.bf16.msra.mxu0 %v1183
    %2248 = vmatprep.subr.bf16.mxu0 %v1178
    %2249 = vmatpush1.bf16.msra.mxu0 %v1177
    %2250 = vmatprep.subr.bf16.mxu0 %v1172
    %2251 = vmatpush1.bf16.msra.mxu0 %v1171
    %2252 = vmatprep.subr.bf16.mxu0 %v1166
    %2253 = vmatpush1.bf16.msra.mxu0 %v1165
    %2254 = vmatprep.subr.bf16.mxu0 %v1160
    %2255 = vmatpush1.bf16.msra.mxu0 %v1159
    %2256 = vmatprep.subr.bf16.mxu0 %v1250
    %2257 = vmatpush2.bf16.msra.mxu0 %v1249
    %2258 = vmatprep.subr.bf16.mxu0 %v1244
    %2259 = vmatpush2.bf16.msra.mxu0 %v1243
    %2260 = vmatprep.subr.bf16.mxu0 %v1238
    %2261 = vmatpush2.bf16.msra.mxu0 %v1237
    %2262 = vmatprep.subr.bf16.mxu0 %v1232
    %2263 = vmatpush2.bf16.msra.mxu0 %v1231
    %2264 = vmatprep.subr.bf16.mxu0 %v1226
    %2265 = vmatpush2.bf16.msra.mxu0 %v1225
    %2266 = vmatprep.subr.bf16.mxu0 %v1220
    %2267 = vmatpush2.bf16.msra.mxu0 %v1219
    %2268 = vmatprep.subr.bf16.mxu0 %v1214
    %2269 = vmatpush2.bf16.msra.mxu0 %v1213
    %2270 = vmatprep.subr.bf16.mxu0 %v1208
    %2271 = vmatpush2.bf16.msra.mxu0 %v1207
    %2272 = vmatprep.mubr.bf16.mxu0 %v2238
    %2273 = vmatmul.mubr.bf16.gmra.mxu0 %v2236
    %v2274 = vpop.f32.mrf.mxu0
    %v2275 = vadd.f32 %v843, %v2274
    %v2276 = vpop.f32.mrf.mxu0
    %v2277 = vadd.f32 %v847, %v2276
    %v2278 = vpop.f32.mrf.mxu0
    %v2279 = vpop.f32.mrf.mxu0
    %2280 = vdwg.mxu0
    %2281 = vmatprep.subr.bf16.mxu0 %v1204
    %2282 = vmatpush1.bf16.msra.mxu0 %v1203
    %2283 = vmatprep.subr.bf16.mxu0 %v1198
    %2284 = vmatpush1.bf16.msra.mxu0 %v1197
    %2285 = vmatprep.subr.bf16.mxu0 %v1192
    %2286 = vmatpush1.bf16.msra.mxu0 %v1191
    %2287 = vmatprep.subr.bf16.mxu0 %v1186
    %2288 = vmatpush1.bf16.msra.mxu0 %v1185
    %2289 = vmatprep.subr.bf16.mxu0 %v1180
    %2290 = vmatpush1.bf16.msra.mxu0 %v1179
    %2291 = vmatprep.subr.bf16.mxu0 %v1174
    %2292 = vmatpush1.bf16.msra.mxu0 %v1173
    %2293 = vmatprep.subr.bf16.mxu0 %v1168
    %2294 = vmatpush1.bf16.msra.mxu0 %v1167
    %2295 = vmatprep.subr.bf16.mxu0 %v1162
    %2296 = vmatpush1.bf16.msra.mxu0 %v1161
    %2297 = vmatprep.subr.bf16.mxu0 %v1252
    %2298 = vmatpush2.bf16.msra.mxu0 %v1251
    %2299 = vmatprep.subr.bf16.mxu0 %v1246
    %2300 = vmatpush2.bf16.msra.mxu0 %v1245
    %2301 = vmatprep.subr.bf16.mxu0 %v1240
    %2302 = vmatpush2.bf16.msra.mxu0 %v1239
    %2303 = vmatprep.subr.bf16.mxu0 %v1234
    %2304 = vmatpush2.bf16.msra.mxu0 %v1233
    %2305 = vmatprep.subr.bf16.mxu0 %v1228
    %2306 = vmatpush2.bf16.msra.mxu0 %v1227
    %2307 = vmatprep.subr.bf16.mxu0 %v1222
    %2308 = vmatpush2.bf16.msra.mxu0 %v1221
    %2309 = vmatprep.subr.bf16.mxu0 %v1216
    %2310 = vmatpush2.bf16.msra.mxu0 %v1215
    %2311 = vmatprep.subr.bf16.mxu0 %v1210
    %2312 = vmatpush2.bf16.msra.mxu0 %v1209
    %2313 = vmatprep.mubr.bf16.mxu0 %v2238
    %2314 = vmatmul.mubr.bf16.gmra.mxu0 %v2236
    %v2315 = vpop.f32.mrf.mxu0
    %v2316 = vadd.f32 %v851, %v2315
    %v2317 = vpop.f32.mrf.mxu0
    %v2318 = vadd.f32 %v855, %v2317
    %v2319 = vpop.f32.mrf.mxu0
    %v2320 = vpop.f32.mrf.mxu0
    %2321 = vdwg.mxu0
    %2322 = vmatprep.subr.bf16.mxu0 %v1206
    %2323 = vmatpush1.bf16.msra.mxu0 %v1205
    %2324 = vmatprep.subr.bf16.mxu0 %v1200
    %2325 = vmatpush1.bf16.msra.mxu0 %v1199
    %2326 = vmatprep.subr.bf16.mxu0 %v1194
    %2327 = vmatpush1.bf16.msra.mxu0 %v1193
    %2328 = vmatprep.subr.bf16.mxu0 %v1188
    %2329 = vmatpush1.bf16.msra.mxu0 %v1187
    %2330 = vmatprep.subr.bf16.mxu0 %v1182
    %2331 = vmatpush1.bf16.msra.mxu0 %v1181
    %2332 = vmatprep.subr.bf16.mxu0 %v1176
    %2333 = vmatpush1.bf16.msra.mxu0 %v1175
    %2334 = vmatprep.subr.bf16.mxu0 %v1170
    %2335 = vmatpush1.bf16.msra.mxu0 %v1169
    %2336 = vmatprep.subr.bf16.mxu0 %v1164
    %2337 = vmatpush1.bf16.msra.mxu0 %v1163
    %2338 = vmatprep.subr.bf16.mxu0 %v1254
    %2339 = vmatpush2.bf16.msra.mxu0 %v1253
    %2340 = vmatprep.subr.bf16.mxu0 %v1248
    %2341 = vmatpush2.bf16.msra.mxu0 %v1247
    %2342 = vmatprep.subr.bf16.mxu0 %v1242
    %2343 = vmatpush2.bf16.msra.mxu0 %v1241
    %2344 = vmatprep.subr.bf16.mxu0 %v1236
    %2345 = vmatpush2.bf16.msra.mxu0 %v1235
    %2346 = vmatprep.subr.bf16.mxu0 %v1230
    %2347 = vmatpush2.bf16.msra.mxu0 %v1229
    %2348 = vmatprep.subr.bf16.mxu0 %v1224
    %2349 = vmatpush2.bf16.msra.mxu0 %v1223
    %2350 = vmatprep.subr.bf16.mxu0 %v1218
    %2351 = vmatpush2.bf16.msra.mxu0 %v1217
    %2352 = vmatprep.subr.bf16.mxu0 %v1212
    %2353 = vmatpush2.bf16.msra.mxu0 %v1211
    %2354 = vmatprep.mubr.bf16.mxu0 %v2238
    %2355 = vmatmul.mubr.bf16.gmra.mxu0 %v2236
    %v2356 = vpop.f32.mrf.mxu0
    %v2357 = vadd.f32 %v859, %v2356
    %v2358 = vpop.f32.mrf.mxu0
    %v2359 = vadd.f32 %v863, %v2358
    %v2360 = vpop.f32.mrf.mxu0
    %v2361 = vpop.f32.mrf.mxu0
    %2362 = vdwg.mxu0
    %v2363 = vld [vmem:[%s1834] sm:$0xff]
    %v2364 = vld [vmem:[%s1834 + $0x8] sm:$0xff]
    %v2365 = vld [vmem:[%s1834 + $0x10] sm:$0xff]
    %v2366 = vld [vmem:[%s1830 + $0x18] sm:$0xff]
    %v2367 = vld [vmem:[%s1830 + $0x20] sm:$0xff]
    %v2368 = vld [vmem:[%s1830 + $0x28] sm:$0xff]
    %v2369 = vadd.f32 %v2363, %v2275
    %v2370 = vxor.u32 %v2369, 2147483648
    %v2371 = vmul.f32 %v2370, 1.442695
    %v2372 = vpow.pop %v2371
    %v2373 = vadd.f32 %v2372, 1.0
    %v2374 = vrcp.pop %v2373
    %v2375 = vmul.f32 1.0, %v2374
    %v2376 = vadd.f32 %v2364, %v2277
    %v2377 = vxor.u32 %v2376, 2147483648
    %v2378 = vmul.f32 %v2377, 1.442695
    %v2379 = vpow.pop %v2378
    %v2380 = vadd.f32 %v2379, 1.0
    %v2381 = vrcp.pop %v2380
    %v2382 = vmul.f32 1.0, %v2381
    %v2383 = vmul.f32 %v2375, %v2316
    %v2384 = vadd.f32 %v2365, %v2383
    %v2385 = vtanh.pop %v2384
    %v2386 = vsub.f32 1.0, %v2382
    %v2387 = vmul.f32 %v2386, %v2385
    %v2388 = vmul.f32 %v2382, %v2214
    %v2389 = vadd.f32 %v2387, %v2388
    %v2390 = vadd.f32 %v2366, %v2318
    %v2391 = vxor.u32 %v2390, 2147483648
    %v2392 = vmul.f32 %v2391, 1.442695
    %v2393 = vpow.pop %v2392
    %v2394 = vadd.f32 %v2393, 1.0
    %v2395 = vrcp.pop %v2394
    %v2396 = vmul.f32 1.0, %v2395
    %v2397 = vadd.f32 %v2367, %v2357
    %v2398 = vxor.u32 %v2397, 2147483648
    %v2399 = vmul.f32 %v2398, 1.442695
    %v2400 = vpow.pop %v2399
    %v2401 = vadd.f32 %v2400, 1.0
    %v2402 = vrcp.pop %v2401
    %v2403 = vmul.f32 1.0, %v2402
    %v2404 = vmul.f32 %v2396, %v2359
    %v2405 = vadd.f32 %v2368, %v2404
    %v2406 = vtanh.pop %v2405
    %v2407 = vsub.f32 1.0, %v2403
    %v2408 = vmul.f32 %v2407, %v2406
    %v2409 = vmul.f32 %v2403, %v2235
    %v2410 = vadd.f32 %v2408, %v2409
    %v2411 = vpack.c.bf16 %v2389, %v2389
    %2412 = vst [vmem:[%s1884] sm:$0xf] %v2411
    %v2413 = vpack.c.bf16 %v2410, %v2410
    %2414 = vst [vmem:[%s1881 + $0x4] sm:$0xf] %v2413
    %2415 = vmatprep.subr.bf16.mxu0 %v1202
    %2416 = vmatpush1.bf16.msra.mxu0 %v1201
    %2417 = vmatprep.subr.bf16.mxu0 %v1196
    %2418 = vmatpush1.bf16.msra.mxu0 %v1195
    %2419 = vmatprep.subr.bf16.mxu0 %v1190
    %2420 = vmatpush1.bf16.msra.mxu0 %v1189
    %2421 = vmatprep.subr.bf16.mxu0 %v1184
    %2422 = vmatpush1.bf16.msra.mxu0 %v1183
    %2423 = vmatprep.subr.bf16.mxu0 %v1178
    %2424 = vmatpush1.bf16.msra.mxu0 %v1177
    %2425 = vmatprep.subr.bf16.mxu0 %v1172
    %2426 = vmatpush1.bf16.msra.mxu0 %v1171
    %2427 = vmatprep.subr.bf16.mxu0 %v1166
    %2428 = vmatpush1.bf16.msra.mxu0 %v1165
    %2429 = vmatprep.subr.bf16.mxu0 %v1160
    %2430 = vmatpush1.bf16.msra.mxu0 %v1159
    %2431 = vmatprep.subr.bf16.mxu0 %v1250
    %2432 = vmatpush2.bf16.msra.mxu0 %v1249
    %2433 = vmatprep.subr.bf16.mxu0 %v1244
    %2434 = vmatpush2.bf16.msra.mxu0 %v1243
    %2435 = vmatprep.subr.bf16.mxu0 %v1238
    %2436 = vmatpush2.bf16.msra.mxu0 %v1237
    %2437 = vmatprep.subr.bf16.mxu0 %v1232
    %2438 = vmatpush2.bf16.msra.mxu0 %v1231
    %2439 = vmatprep.subr.bf16.mxu0 %v1226
    %2440 = vmatpush2.bf16.msra.mxu0 %v1225
    %2441 = vmatprep.subr.bf16.mxu0 %v1220
    %2442 = vmatpush2.bf16.msra.mxu0 %v1219
    %2443 = vmatprep.subr.bf16.mxu0 %v1214
    %2444 = vmatpush2.bf16.msra.mxu0 %v1213
    %2445 = vmatprep.subr.bf16.mxu0 %v1208
    %2446 = vmatpush2.bf16.msra.mxu0 %v1207
    %2447 = vmatprep.mubr.bf16.mxu0 %v2413
    %2448 = vmatmul.mubr.bf16.gmra.mxu0 %v2411
    %v2449 = vpop.f32.mrf.mxu0
    %v2450 = vadd.f32 %v843, %v2449
    %v2451 = vpop.f32.mrf.mxu0
    %v2452 = vadd.f32 %v847, %v2451
    %v2453 = vpop.f32.mrf.mxu0
    %v2454 = vpop.f32.mrf.mxu0
    %2455 = vdwg.mxu0
    %2456 = vmatprep.subr.bf16.mxu0 %v1204
    %2457 = vmatpush1.bf16.msra.mxu0 %v1203
    %2458 = vmatprep.subr.bf16.mxu0 %v1198
    %2459 = vmatpush1.bf16.msra.mxu0 %v1197
    %2460 = vmatprep.subr.bf16.mxu0 %v1192
    %2461 = vmatpush1.bf16.msra.mxu0 %v1191
    %2462 = vmatprep.subr.bf16.mxu0 %v1186
    %2463 = vmatpush1.bf16.msra.mxu0 %v1185
    %2464 = vmatprep.subr.bf16.mxu0 %v1180
    %2465 = vmatpush1.bf16.msra.mxu0 %v1179
    %2466 = vmatprep.subr.bf16.mxu0 %v1174
    %2467 = vmatpush1.bf16.msra.mxu0 %v1173
    %2468 = vmatprep.subr.bf16.mxu0 %v1168
    %2469 = vmatpush1.bf16.msra.mxu0 %v1167
    %2470 = vmatprep.subr.bf16.mxu0 %v1162
    %2471 = vmatpush1.bf16.msra.mxu0 %v1161
    %2472 = vmatprep.subr.bf16.mxu0 %v1252
    %2473 = vmatpush2.bf16.msra.mxu0 %v1251
    %2474 = vmatprep.subr.bf16.mxu0 %v1246
    %2475 = vmatpush2.bf16.msra.mxu0 %v1245
    %2476 = vmatprep.subr.bf16.mxu0 %v1240
    %2477 = vmatpush2.bf16.msra.mxu0 %v1239
    %2478 = vmatprep.subr.bf16.mxu0 %v1234
    %2479 = vmatpush2.bf16.msra.mxu0 %v1233
    %2480 = vmatprep.subr.bf16.mxu0 %v1228
    %2481 = vmatpush2.bf16.msra.mxu0 %v1227
    %2482 = vmatprep.subr.bf16.mxu0 %v1222
    %2483 = vmatpush2.bf16.msra.mxu0 %v1221
    %2484 = vmatprep.subr.bf16.mxu0 %v1216
    %2485 = vmatpush2.bf16.msra.mxu0 %v1215
    %2486 = vmatprep.subr.bf16.mxu0 %v1210
    %2487 = vmatpush2.bf16.msra.mxu0 %v1209
    %2488 = vmatprep.mubr.bf16.mxu0 %v2413
    %2489 = vmatmul.mubr.bf16.gmra.mxu0 %v2411
    %v2490 = vpop.f32.mrf.mxu0
    %v2491 = vadd.f32 %v851, %v2490
    %v2492 = vpop.f32.mrf.mxu0
    %v2493 = vadd.f32 %v855, %v2492
    %v2494 = vpop.f32.mrf.mxu0
    %v2495 = vpop.f32.mrf.mxu0
    %2496 = vdwg.mxu0
    %2497 = vmatprep.subr.bf16.mxu0 %v1206
    %2498 = vmatpush1.bf16.msra.mxu0 %v1205
    %2499 = vmatprep.subr.bf16.mxu0 %v1200
    %2500 = vmatpush1.bf16.msra.mxu0 %v1199
    %2501 = vmatprep.subr.bf16.mxu0 %v1194
    %2502 = vmatpush1.bf16.msra.mxu0 %v1193
    %2503 = vmatprep.subr.bf16.mxu0 %v1188
    %2504 = vmatpush1.bf16.msra.mxu0 %v1187
    %2505 = vmatprep.subr.bf16.mxu0 %v1182
    %2506 = vmatpush1.bf16.msra.mxu0 %v1181
    %2507 = vmatprep.subr.bf16.mxu0 %v1176
    %2508 = vmatpush1.bf16.msra.mxu0 %v1175
    %2509 = vmatprep.subr.bf16.mxu0 %v1170
    %2510 = vmatpush1.bf16.msra.mxu0 %v1169
    %2511 = vmatprep.subr.bf16.mxu0 %v1164
    %2512 = vmatpush1.bf16.msra.mxu0 %v1163
    %2513 = vmatprep.subr.bf16.mxu0 %v1254
    %2514 = vmatpush2.bf16.msra.mxu0 %v1253
    %2515 = vmatprep.subr.bf16.mxu0 %v1248
    %2516 = vmatpush2.bf16.msra.mxu0 %v1247
    %2517 = vmatprep.subr.bf16.mxu0 %v1242
    %2518 = vmatpush2.bf16.msra.mxu0 %v1241
    %2519 = vmatprep.subr.bf16.mxu0 %v1236
    %2520 = vmatpush2.bf16.msra.mxu0 %v1235
    %2521 = vmatprep.subr.bf16.mxu0 %v1230
    %2522 = vmatpush2.bf16.msra.mxu0 %v1229
    %2523 = vmatprep.subr.bf16.mxu0 %v1224
    %2524 = vmatpush2.bf16.msra.mxu0 %v1223
    %2525 = vmatprep.subr.bf16.mxu0 %v1218
    %2526 = vmatpush2.bf16.msra.mxu0 %v1217
    %2527 = vmatprep.subr.bf16.mxu0 %v1212
    %2528 = vmatpush2.bf16.msra.mxu0 %v1211
    %2529 = vmatprep.mubr.bf16.mxu0 %v2413
    %2530 = vmatmul.mubr.bf16.gmra.mxu0 %v2411
    %v2531 = vpop.f32.mrf.mxu0
    %v2532 = vadd.f32 %v859, %v2531
    %v2533 = vpop.f32.mrf.mxu0
    %v2534 = vadd.f32 %v863, %v2533
    %v2535 = vpop.f32.mrf.mxu0
    %v2536 = vpop.f32.mrf.mxu0
    %2537 = vdwg.mxu0
    %v2538 = vld [vmem:[%s1655] sm:$0xff]
    %v2539 = vld [vmem:[%s1655 + $0x8] sm:$0xff]
    %v2540 = vld [vmem:[%s1655 + $0x10] sm:$0xff]
    %v2541 = vld [vmem:[%s1651 + $0x18] sm:$0xff]
    %v2542 = vld [vmem:[%s1651 + $0x20] sm:$0xff]
    %v2543 = vld [vmem:[%s1651 + $0x28] sm:$0xff]
    %v2544 = vadd.f32 %v2538, %v2450
    %v2545 = vxor.u32 %v2544, 2147483648
    %v2546 = vmul.f32 %v2545, 1.442695
    %v2547 = vpow.pop %v2546
    %v2548 = vadd.f32 %v2547, 1.0
    %v2549 = vrcp.pop %v2548
    %v2550 = vmul.f32 1.0, %v2549
    %v2551 = vadd.f32 %v2539, %v2452
    %v2552 = vxor.u32 %v2551, 2147483648
    %v2553 = vmul.f32 %v2552, 1.442695
    %v2554 = vpow.pop %v2553
    %v2555 = vadd.f32 %v2554, 1.0
    %v2556 = vrcp.pop %v2555
    %v2557 = vmul.f32 1.0, %v2556
    %v2558 = vmul.f32 %v2550, %v2491
    %v2559 = vadd.f32 %v2540, %v2558
    %v2560 = vtanh.pop %v2559
    %v2561 = vsub.f32 1.0, %v2557
    %v2562 = vmul.f32 %v2561, %v2560
    %v2563 = vmul.f32 %v2557, %v2389
    %v2564 = vadd.f32 %v2562, %v2563
    %v2565 = vadd.f32 %v2541, %v2493
    %v2566 = vxor.u32 %v2565, 2147483648
    %v2567 = vmul.f32 %v2566, 1.442695
    %v2568 = vpow.pop %v2567
    %v2569 = vadd.f32 %v2568, 1.0
    %v2570 = vrcp.pop %v2569
    %v2571 = vmul.f32 1.0, %v2570
    %v2572 = vadd.f32 %v2542, %v2532
    %v2573 = vxor.u32 %v2572, 2147483648
    %v2574 = vmul.f32 %v2573, 1.442695
    %v2575 = vpow.pop %v2574
    %v2576 = vadd.f32 %v2575, 1.0
    %v2577 = vrcp.pop %v2576
    %v2578 = vmul.f32 1.0, %v2577
    %v2579 = vmul.f32 %v2571, %v2534
    %v2580 = vadd.f32 %v2543, %v2579
    %v2581 = vtanh.pop %v2580
    %v2582 = vsub.f32 1.0, %v2578
    %v2583 = vmul.f32 %v2582, %v2581
    %v2584 = vmul.f32 %v2578, %v2410
    %v2585 = vadd.f32 %v2583, %v2584
    %v2586 = vpack.c.bf16 %v2564, %v2564
    %2587 = vst [vmem:[%s1705] sm:$0xf] %v2586
    %v2588 = vpack.c.bf16 %v2585, %v2585
    %2589 = vst [vmem:[%s1702 + $0x4] sm:$0xf] %v2588
    %2590 = vmatprep.subr.bf16.mxu0 %v1202
    %2591 = vmatpush1.bf16.msra.mxu0 %v1201
    %2592 = vmatprep.subr.bf16.mxu0 %v1196
    %2593 = vmatpush1.bf16.msra.mxu0 %v1195
    %2594 = vmatprep.subr.bf16.mxu0 %v1190
    %2595 = vmatpush1.bf16.msra.mxu0 %v1189
    %2596 = vmatprep.subr.bf16.mxu0 %v1184
    %2597 = vmatpush1.bf16.msra.mxu0 %v1183
    %2598 = vmatprep.subr.bf16.mxu0 %v1178
    %2599 = vmatpush1.bf16.msra.mxu0 %v1177
    %2600 = vmatprep.subr.bf16.mxu0 %v1172
    %2601 = vmatpush1.bf16.msra.mxu0 %v1171
    %2602 = vmatprep.subr.bf16.mxu0 %v1166
    %2603 = vmatpush1.bf16.msra.mxu0 %v1165
    %2604 = vmatprep.subr.bf16.mxu0 %v1160
    %2605 = vmatpush1.bf16.msra.mxu0 %v1159
    %2606 = vmatprep.subr.bf16.mxu0 %v1250
    %2607 = vmatpush2.bf16.msra.mxu0 %v1249
    %2608 = vmatprep.subr.bf16.mxu0 %v1244
    %2609 = vmatpush2.bf16.msra.mxu0 %v1243
    %2610 = vmatprep.subr.bf16.mxu0 %v1238
    %2611 = vmatpush2.bf16.msra.mxu0 %v1237
    %2612 = vmatprep.subr.bf16.mxu0 %v1232
    %2613 = vmatpush2.bf16.msra.mxu0 %v1231
    %2614 = vmatprep.subr.bf16.mxu0 %v1226
    %2615 = vmatpush2.bf16.msra.mxu0 %v1225
    %2616 = vmatprep.subr.bf16.mxu0 %v1220
    %2617 = vmatpush2.bf16.msra.mxu0 %v1219
    %2618 = vmatprep.subr.bf16.mxu0 %v1214
    %2619 = vmatpush2.bf16.msra.mxu0 %v1213
    %2620 = vmatprep.subr.bf16.mxu0 %v1208
    %2621 = vmatpush2.bf16.msra.mxu0 %v1207
    %2622 = vmatprep.mubr.bf16.mxu0 %v2588
    %2623 = vmatmul.mubr.bf16.gmra.mxu0 %v2586
    %v2624 = vpop.f32.mrf.mxu0
    %v2625 = vadd.f32 %v843, %v2624
    %v2626 = vpop.f32.mrf.mxu0
    %v2627 = vadd.f32 %v847, %v2626
    %v2628 = vpop.f32.mrf.mxu0
    %v2629 = vpop.f32.mrf.mxu0
    %2630 = vdwg.mxu0
    %2631 = vmatprep.subr.bf16.mxu0 %v1204
    %2632 = vmatpush1.bf16.msra.mxu0 %v1203
    %2633 = vmatprep.subr.bf16.mxu0 %v1198
    %2634 = vmatpush1.bf16.msra.mxu0 %v1197
    %2635 = vmatprep.subr.bf16.mxu0 %v1192
    %2636 = vmatpush1.bf16.msra.mxu0 %v1191
    %2637 = vmatprep.subr.bf16.mxu0 %v1186
    %2638 = vmatpush1.bf16.msra.mxu0 %v1185
    %2639 = vmatprep.subr.bf16.mxu0 %v1180
    %2640 = vmatpush1.bf16.msra.mxu0 %v1179
    %2641 = vmatprep.subr.bf16.mxu0 %v1174
    %2642 = vmatpush1.bf16.msra.mxu0 %v1173
    %2643 = vmatprep.subr.bf16.mxu0 %v1168
    %2644 = vmatpush1.bf16.msra.mxu0 %v1167
    %2645 = vmatprep.subr.bf16.mxu0 %v1162
    %2646 = vmatpush1.bf16.msra.mxu0 %v1161
    %2647 = vmatprep.subr.bf16.mxu0 %v1252
    %2648 = vmatpush2.bf16.msra.mxu0 %v1251
    %2649 = vmatprep.subr.bf16.mxu0 %v1246
    %2650 = vmatpush2.bf16.msra.mxu0 %v1245
    %2651 = vmatprep.subr.bf16.mxu0 %v1240
    %2652 = vmatpush2.bf16.msra.mxu0 %v1239
    %2653 = vmatprep.subr.bf16.mxu0 %v1234
    %2654 = vmatpush2.bf16.msra.mxu0 %v1233
    %2655 = vmatprep.subr.bf16.mxu0 %v1228
    %2656 = vmatpush2.bf16.msra.mxu0 %v1227
    %2657 = vmatprep.subr.bf16.mxu0 %v1222
    %2658 = vmatpush2.bf16.msra.mxu0 %v1221
    %2659 = vmatprep.subr.bf16.mxu0 %v1216
    %2660 = vmatpush2.bf16.msra.mxu0 %v1215
    %2661 = vmatprep.subr.bf16.mxu0 %v1210
    %2662 = vmatpush2.bf16.msra.mxu0 %v1209
    %2663 = vmatprep.mubr.bf16.mxu0 %v2588
    %2664 = vmatmul.mubr.bf16.gmra.mxu0 %v2586
    %v2665 = vpop.f32.mrf.mxu0
    %v2666 = vadd.f32 %v851, %v2665
    %v2667 = vpop.f32.mrf.mxu0
    %v2668 = vadd.f32 %v855, %v2667
    %v2669 = vpop.f32.mrf.mxu0
    %v2670 = vpop.f32.mrf.mxu0
    %2671 = vdwg.mxu0
    %2672 = vmatprep.subr.bf16.mxu0 %v1206
    %2673 = vmatpush1.bf16.msra.mxu0 %v1205
    %2674 = vmatprep.subr.bf16.mxu0 %v1200
    %2675 = vmatpush1.bf16.msra.mxu0 %v1199
    %2676 = vmatprep.subr.bf16.mxu0 %v1194
    %2677 = vmatpush1.bf16.msra.mxu0 %v1193
    %2678 = vmatprep.subr.bf16.mxu0 %v1188
    %2679 = vmatpush1.bf16.msra.mxu0 %v1187
    %2680 = vmatprep.subr.bf16.mxu0 %v1182
    %2681 = vmatpush1.bf16.msra.mxu0 %v1181
    %2682 = vmatprep.subr.bf16.mxu0 %v1176
    %2683 = vmatpush1.bf16.msra.mxu0 %v1175
    %2684 = vmatprep.subr.bf16.mxu0 %v1170
    %2685 = vmatpush1.bf16.msra.mxu0 %v1169
    %2686 = vmatprep.subr.bf16.mxu0 %v1164
    %2687 = vmatpush1.bf16.msra.mxu0 %v1163
    %2688 = vmatprep.subr.bf16.mxu0 %v1254
    %2689 = vmatpush2.bf16.msra.mxu0 %v1253
    %2690 = vmatprep.subr.bf16.mxu0 %v1248
    %2691 = vmatpush2.bf16.msra.mxu0 %v1247
    %2692 = vmatprep.subr.bf16.mxu0 %v1242
    %2693 = vmatpush2.bf16.msra.mxu0 %v1241
    %2694 = vmatprep.subr.bf16.mxu0 %v1236
    %2695 = vmatpush2.bf16.msra.mxu0 %v1235
    %2696 = vmatprep.subr.bf16.mxu0 %v1230
    %2697 = vmatpush2.bf16.msra.mxu0 %v1229
    %2698 = vmatprep.subr.bf16.mxu0 %v1224
    %2699 = vmatpush2.bf16.msra.mxu0 %v1223
    %2700 = vmatprep.subr.bf16.mxu0 %v1218
    %2701 = vmatpush2.bf16.msra.mxu0 %v1217
    %2702 = vmatprep.subr.bf16.mxu0 %v1212
    %2703 = vmatpush2.bf16.msra.mxu0 %v1211
    %2704 = vmatprep.mubr.bf16.mxu0 %v2588
    %2705 = vmatmul.mubr.bf16.gmra.mxu0 %v2586
    %v2706 = vpop.f32.mrf.mxu0
    %v2707 = vadd.f32 %v859, %v2706
    %v2708 = vpop.f32.mrf.mxu0
    %v2709 = vadd.f32 %v863, %v2708
    %v2710 = vpop.f32.mrf.mxu0
    %v2711 = vpop.f32.mrf.mxu0
    %2712 = vdwg.mxu0
    %v2713 = vld [vmem:[%s1477] sm:$0xff]
    %v2714 = vld [vmem:[%s1477 + $0x8] sm:$0xff]
    %v2715 = vld [vmem:[%s1477 + $0x10] sm:$0xff]
    %v2716 = vld [vmem:[#allocation2 + $0x18] sm:$0xff]
    %v2717 = vld [vmem:[#allocation2 + $0x20] sm:$0xff]
    %v2718 = vld [vmem:[#allocation2 + $0x28] sm:$0xff]
    %v2719 = vadd.f32 %v2713, %v2625
    %v2720 = vxor.u32 %v2719, 2147483648
    %v2721 = vmul.f32 %v2720, 1.442695
    %v2722 = vpow.pop %v2721
    %v2723 = vadd.f32 %v2722, 1.0
    %v2724 = vrcp.pop %v2723
    %v2725 = vmul.f32 1.0, %v2724
    %v2726 = vadd.f32 %v2714, %v2627
    %v2727 = vxor.u32 %v2726, 2147483648
    %v2728 = vmul.f32 %v2727, 1.442695
    %v2729 = vpow.pop %v2728
    %v2730 = vadd.f32 %v2729, 1.0
    %v2731 = vrcp.pop %v2730
    %v2732 = vmul.f32 1.0, %v2731
    %v2733 = vmul.f32 %v2725, %v2666
    %v2734 = vadd.f32 %v2715, %v2733
    %v2735 = vtanh.pop %v2734
    %v2736 = vsub.f32 1.0, %v2732
    %v2737 = vmul.f32 %v2736, %v2735
    %v2738 = vmul.f32 %v2732, %v2564
    %v2739 = vadd.f32 %v2737, %v2738
    %v2740 = vadd.f32 %v2716, %v2668
    %v2741 = vxor.u32 %v2740, 2147483648
    %v2742 = vmul.f32 %v2741, 1.442695
    %v2743 = vpow.pop %v2742
    %v2744 = vadd.f32 %v2743, 1.0
    %v2745 = vrcp.pop %v2744
    %v2746 = vmul.f32 1.0, %v2745
    %v2747 = vadd.f32 %v2717, %v2707
    %v2748 = vxor.u32 %v2747, 2147483648
    %v2749 = vmul.f32 %v2748, 1.442695
    %v2750 = vpow.pop %v2749
    %v2751 = vadd.f32 %v2750, 1.0
    %v2752 = vrcp.pop %v2751
    %v2753 = vmul.f32 1.0, %v2752
    %v2754 = vmul.f32 %v2746, %v2709
    %v2755 = vadd.f32 %v2718, %v2754
    %v2756 = vtanh.pop %v2755
    %v2757 = vsub.f32 1.0, %v2753
    %v2758 = vmul.f32 %v2757, %v2756
    %v2759 = vmul.f32 %v2753, %v2585
    %v2760 = vadd.f32 %v2758, %v2759
    %v2761 = vpack.c.bf16 %v2739, %v2739
    %2762 = vst [vmem:[%s1526] sm:$0xf] %v2761
    %v2763 = vpack.c.bf16 %v2760, %v2760
    %2764 = vst [vmem:[#allocation11 + $0x4] sm:$0xf] %v2763
    // Predicated region
    $region38: #{tpu_custom_call.1} parent=1 // pred_check
      _
    $region39: #{tpu_custom_call.1} parent=1 // pred_check_branch
      %2766 = sbr.rel (0) target = $region41
    $region40: #{tpu_custom_call.1} parent=1 // pred_region
      %s2768 = ssub.s32 1024, 1024
      %2769 = vsyncadd [#allocation5], %s2768
      %s2770 = sshll.u32 [#allocation11], 4
      %s2771 = int_to_ptr.vmem [resolvable:$true] %s2770
      %2776 = dma.vmem_to_hbm [thread:$0]  %s2771, 1024, %s5, [#allocation5], 128, 128, 8
    $region41: #{tpu_custom_call.1} parent=1 // pred_fallthru
      _
    // Predicated region
    $region42: #{tpu_custom_call.1} parent=1 // pred_check
      _
    $region43: #{tpu_custom_call.1} parent=1 // pred_check_branch
      %2778 = sbr.rel (0) target = $region45
    $region44: #{tpu_custom_call.1} parent=1 // pred_region
      %2779 = dma.done [#allocation5], 1024
    $region45: #{tpu_custom_call.1} parent=1 // pred_fallthru
      _
    %2780 = vsyncpa [#allocation4], 1
    %2781 = vsyncpa [#allocation7], 1
    %2782 = vsyncpa [#allocation10], 1
    %2783 = vsyncpa [#allocation5], 1

</llo_original>
